<compile_context>
chip_gen: v5e
topology: v5e:2x2
jax: 0.10.0
libtpu: 0.0.40
codegen_flags: <defaults>
</compile_context>

<pallas_src>
import math
import numpy as np
import jax
import jax.numpy as jnp
from jax.experimental import pallas as pl
from jax.experimental.pallas import tpu as pltpu


# ---------------------------------------------------------------------------
# Kernel 1: fused QKV projection (+ folded RoPE permutation) + per-head
#           RMS-norm + rotary embedding.  Everything stays lane-dense.
# ---------------------------------------------------------------------------
def make_qkv_kernel(n_head, head_dim, eps, att_scale):
    C = n_head * head_dim

    def kernel(x_ref, w_ref, pool_ref, bcast_ref, cos_ref, sin_ref,
               q_ref, k_ref, v_ref):
        x = x_ref[0]                                                    # (tp, C) bf16
        # One fused matmul: [q | k | v | q@P | k@P], P = within-head half-swap.
        out = jnp.dot(x, w_ref[...], preferred_element_type=jnp.float32)   # (tp, 5C)

        q = out[:, 0 * C:1 * C]
        k = out[:, 1 * C:2 * C]
        v = out[:, 2 * C:3 * C]
        qr = out[:, 3 * C:4 * C]        # q with head-halves swapped
        kr = out[:, 4 * C:5 * C]        # k with head-halves swapped

        cos = cos_ref[...].astype(jnp.float32)                          # (tp, C)
        sin = sin_ref[...].astype(jnp.float32)                          # (+sin | -sin)

        def rms_scale(u, gain):
            # Per-head mean of squares via a lane-dense bf16 pooling matmul,
            # then broadcast the per-head scale back to full lane width.
            ms = jnp.dot((u * u).astype(jnp.bfloat16), pool_ref[...],
                         preferred_element_type=jnp.float32)            # (tp, HP)
            s = (jax.lax.rsqrt(ms + eps) * gain).astype(jnp.bfloat16)
            return jnp.dot(s, bcast_ref[...],
                           preferred_element_type=jnp.float32)          # (tp, C)

        sq = rms_scale(q, att_scale)        # 1/sqrt(D) folded into q's scale
        sk = rms_scale(k, 1.0)

        # RoPE: the per-head RMS scale commutes with the within-head half-swap,
        # so (q@P) * sq is exactly the rotated, normalized q.
        q_ref[0] = ((q * sq) * cos + (qr * sq) * sin).astype(jnp.bfloat16)
        k_ref[0] = ((k * sk) * cos + (kr * sk) * sin).astype(jnp.bfloat16)
        v_ref[0] = v.astype(jnp.bfloat16)

    return kernel


# ---------------------------------------------------------------------------
# Kernel 2: flash attention (online softmax, causal block skipping, split
#           masked/unmasked paths, lane-dense head groups).
# ---------------------------------------------------------------------------
def make_flash_kernel(block_q, block_k, group, head_dim, mask_value=-1e30):

    def kernel(q_ref, k_ref, v_ref, o_ref, m_ref, l_ref, acc_ref):
        ki = pl.program_id(3)
        q_start = pl.program_id(2) * block_q
        k_start = ki * block_k

        @pl.when(ki == 0)
        def _init():
            m_ref[...] = jnp.full((group, block_q, 1), mask_value, jnp.float32)
            l_ref[...] = jnp.zeros((group, block_q, 1), jnp.float32)
            acc_ref[...] = jnp.zeros((group, block_q, head_dim), jnp.float32)

        def process(apply_mask):
            q = q_ref[0]                                                # (tq, G*D) bf16
            k = k_ref[0]                                                # (tk, G*D)
            v = v_ref[0]
            if apply_mask:
                row = jax.lax.broadcasted_iota(jnp.int32, (block_q, block_k), 0) + q_start
                col = jax.lax.broadcasted_iota(jnp.int32, (block_q, block_k), 1) + k_start
                keep = col <= row
            dn = (((1,), (1,)), ((), ()))                               # contract last dims
            for h in range(group):                                      # static, small
                sl = slice(h * head_dim, (h + 1) * head_dim)
                s = jax.lax.dot_general(q[:, sl], k[:, sl], dn,
                                        preferred_element_type=jnp.float32)  # (tq, tk)
                if apply_mask:
                    s = jnp.where(keep, s, mask_value)
                m_prev = m_ref[h]                                       # (tq, 1)
                m_new = jnp.maximum(m_prev, jnp.max(s, axis=-1, keepdims=True))
                alpha = jnp.exp(m_prev - m_new)
                p = jnp.exp(s - m_new)
                if apply_mask:
                    p = jnp.where(keep, p, 0.0)   # robust even for fully-masked rows
                l_ref[h] = alpha * l_ref[h] + jnp.sum(p, axis=-1, keepdims=True)
                pv = jnp.dot(p.astype(v.dtype), v[:, sl],
                             preferred_element_type=jnp.float32)        # (tq, D)
                acc_ref[h] = alpha * acc_ref[h] + pv
                m_ref[h] = m_new

        # Diagonal-straddling blocks need the causal mask ...
        @pl.when(jnp.logical_and(k_start < q_start + block_q,
                                 k_start + block_k > q_start + 1))
        def _masked():
            process(True)

        # ... blocks fully at/below the diagonal skip all mask math.
        @pl.when(k_start + block_k <= q_start + 1)
        def _unmasked():
            process(False)

        @pl.when(ki == pl.num_programs(3) - 1)
        def _finalize():
            outs = []
            for h in range(group):
                inv = pl.reciprocal(l_ref[h], approx=False)             # (tq, 1)
                outs.append(acc_ref[h] * inv)                           # (tq, D)
            o_ref[0] = jnp.concatenate(outs, axis=-1).astype(o_ref.dtype)

    return kernel


# ---------------------------------------------------------------------------
# Kernel 3: output projection.
# ---------------------------------------------------------------------------
def proj_kernel(y_ref, w_ref, o_ref):
    o_ref[0] = jnp.dot(y_ref[0], w_ref[...],
                       preferred_element_type=jnp.float32).astype(o_ref.dtype)


# ---------------------------------------------------------------------------
# Wrapper.
# ---------------------------------------------------------------------------
def _vmem_limit_bytes():
    # v5e/v6e have 128 MiB of VMEM per core; v7x only 64 MiB -> smaller budget.
    try:
        kind = jax.devices()[0].device_kind.lower()
    except Exception:
        kind = ""
    return (48 if "v7" in kind else 96) * 1024 * 1024


def causal_self_attention(x, wq, wk, wv, wproj, n_head, *,
                          block_q=256, block_k=256, block_t=256):
    B, T, C = x.shape
    assert C % n_head == 0
    head_dim = C // n_head
    assert head_dim % 2 == 0
    eps = float(jnp.finfo(jnp.float32).eps)
    att_scale = 1.0 / math.sqrt(head_dim)

    block_q = min(block_q, T)
    block_k = min(block_k, T)
    block_t = min(block_t, T)
    assert T % block_q == 0 and T % block_k == 0 and T % block_t == 0

    # Heads per flash grid step: keep the fused lane width group*head_dim a
    # multiple of 128 (lane-dense blocks of the (B, T, C) intermediates) and
    # cap it at 512 lanes; pick the largest qualifying divisor of n_head.
    group = n_head
    for g in range(1, n_head + 1):
        gd = g * head_dim
        if n_head % g == 0 and gd <= 512 and (gd % 128 == 0 or gd == C):
            group = g
    n_groups = n_head // group
    GD = group * head_dim

    f32, bf16 = jnp.float32, jnp.bfloat16

    # --- rotary cache (matches Rotary.forward: bf16 cos/sin), full lane width.
    half = head_dim // 2
    inv_freq = 1.0 / (10000.0 ** (jnp.arange(0, head_dim, 2, dtype=f32) / head_dim))
    freqs = jnp.outer(jnp.arange(T, dtype=f32), inv_freq)               # (T, D/2)
    cos_h = jnp.cos(freqs).astype(bf16)
    sin_h = jnp.sin(freqs).astype(bf16)
    cos_full = jnp.tile(jnp.concatenate([cos_h, cos_h], axis=1), (1, n_head))   # (T, C)
    sin_full = jnp.tile(jnp.concatenate([sin_h, -sin_h], axis=1), (1, n_head))  # (T, C)

    # --- per-head pooling / broadcast matrices (lane-aligned, bf16-exact values).
    HP = ((n_head + 127) // 128) * 128
    head_of_col = np.arange(C) // head_dim
    local = np.arange(C) % head_dim
    pool = np.zeros((C, HP), np.float32)
    pool[np.arange(C), head_of_col] = 1.0 / head_dim
    bcast = np.zeros((HP, C), np.float32)
    bcast[head_of_col, np.arange(C)] = 1.0
    pool = jnp.asarray(pool, dtype=bf16)
    bcast = jnp.asarray(bcast, dtype=bf16)

    # --- fold the RoPE half-swap permutation into the QKV weights:
    #     one (C, 5C) matmul emits [q | k | v | q@P | k@P].
    partner = jnp.asarray(head_of_col * head_dim + (local + half) % head_dim)
    w_big = jnp.concatenate(
        [wq.T, wk.T, wv.T, wq.T[:, partner], wk.T[:, partner]], axis=1).astype(bf16)
    w_out = wproj.T.astype(bf16)                                         # (C, C)

    x_bf = x.astype(bf16)
    vmem_bytes = _vmem_limit_bytes()

    def cparams(sem):
        return pltpu.CompilerParams(dimension_semantics=sem,
                                    vmem_limit_bytes=vmem_bytes)

    n_tp = T // block_t
    n_tq = T // block_q
    n_tk = T // block_k

    # ---- kernel 1: fused QKV + RMS-norm + RoPE  ->  lane-dense (B, T, C) bf16.
    # TODO(synk): on v7x at large C, single-buffer the constant operands
    # (pipeline_mode=pl.Buffered(1) on W/pool/bcast) to halve their VMEM footprint.
    qkv_fn = pl.pallas_call(
        make_qkv_kernel(n_head, head_dim, eps, att_scale),
        out_shape=tuple(jax.ShapeDtypeStruct((B, T, C), bf16) for _ in range(3)),
        grid_spec=pltpu.PrefetchScalarGridSpec(
            num_scalar_prefetch=0,
            grid=(B, n_tp),
            in_specs=[
                pl.BlockSpec((1, block_t, C), lambda b, t: (b, t, 0)),   # x
                pl.BlockSpec((C, 5 * C), lambda b, t: (0, 0)),           # W_qkv (+perm)
                pl.BlockSpec((C, HP), lambda b, t: (0, 0)),              # pool
                pl.BlockSpec((HP, C), lambda b, t: (0, 0)),              # bcast
                pl.BlockSpec((block_t, C), lambda b, t: (t, 0)),         # cos
                pl.BlockSpec((block_t, C), lambda b, t: (t, 0)),         # sin
            ],
            out_specs=[
                pl.BlockSpec((1, block_t, C), lambda b, t: (b, t, 0)),
                pl.BlockSpec((1, block_t, C), lambda b, t: (b, t, 0)),
                pl.BlockSpec((1, block_t, C), lambda b, t: (b, t, 0)),
            ],
        ),
        compiler_params=cparams(("parallel", "parallel")),
    )
    q, k, v = qkv_fn(x_bf, w_big, pool, bcast, cos_full, sin_full)

    # ---- kernel 2: flash attention over lane-dense head groups --------------
    def q_map(b, g, qi, ki):
        return (b, qi, g)

    def kv_map(b, g, qi, ki):
        # Clamp skipped (fully above-diagonal) KV blocks to the last needed one
        # so the block index does not change -> no redundant DMA for skipped steps.
        last = (qi * block_q + block_q - 1) // block_k
        return (b, jnp.minimum(ki, last), g)

    def o_map(b, g, qi, ki):
        return (b, qi, g)

    # TODO(synk): optionally flatten (qi, ki) into a triangular 1-D grid so
    # above-diagonal steps never become grid steps at all.
    attn_fn = pl.pallas_call(
        make_flash_kernel(block_q, block_k, group, head_dim),
        out_shape=jax.ShapeDtypeStruct((B, T, C), bf16),
        grid_spec=pltpu.PrefetchScalarGridSpec(
            num_scalar_prefetch=0,
            grid=(B, n_groups, n_tq, n_tk),
            in_specs=[
                pl.BlockSpec((1, block_q, GD), q_map),
                pl.BlockSpec((1, block_k, GD), kv_map),
                pl.BlockSpec((1, block_k, GD), kv_map),
            ],
            out_specs=pl.BlockSpec((1, block_q, GD), o_map),
            scratch_shapes=[
                pltpu.VMEM((group, block_q, 1), jnp.float32),            # m
                pltpu.VMEM((group, block_q, 1), jnp.float32),            # l
                pltpu.VMEM((group, block_q, head_dim), jnp.float32),     # acc
            ],
        ),
        compiler_params=cparams(("parallel", "parallel", "parallel", "arbitrary")),
    )
    y = attn_fn(q, k, v)

    # ---- kernel 3: output projection -----------------------------------------
    proj_fn = pl.pallas_call(
        proj_kernel,
        out_shape=jax.ShapeDtypeStruct((B, T, C), x.dtype),
        grid_spec=pltpu.PrefetchScalarGridSpec(
            num_scalar_prefetch=0,
            grid=(B, n_tp),
            in_specs=[
                pl.BlockSpec((1, block_t, C), lambda b, t: (b, t, 0)),
                pl.BlockSpec((C, C), lambda b, t: (0, 0)),
            ],
            out_specs=pl.BlockSpec((1, block_t, C), lambda b, t: (b, t, 0)),
        ),
        compiler_params=cparams(("parallel", "parallel")),
    )
    return proj_fn(y, w_out)


# ---------------------------------------------------------------------------
# Pure-JAX (f32) re-implementation of the PyTorch forward for checking.
# ---------------------------------------------------------------------------
def reference(x, wq, wk, wv, wproj, n_head):
    B, T, C = x.shape
    D = C // n_head
    eps = float(jnp.finfo(x.dtype).eps)

    q = (x @ wq.T).reshape(B, T, n_head, D)
    k = (x @ wk.T).reshape(B, T, n_head, D)
    v = (x @ wv.T).reshape(B, T, n_head, D)

    inv_freq = 1.0 / (10000.0 ** (jnp.arange(0, D, 2, dtype=jnp.float32) / D))
    freqs = jnp.outer(jnp.arange(T, dtype=jnp.float32), inv_freq)
    cos = jnp.cos(freqs).astype(jnp.bfloat16)[None, :, None, :].astype(jnp.float32)
    sin = jnp.sin(freqs).astype(jnp.bfloat16)[None, :, None, :].astype(jnp.float32)

    def rms(a):
        return a * jax.lax.rsqrt(jnp.mean(a * a, axis=-1, keepdims=True) + eps)

    def rope(a):
        a1, a2 = a[..., : D // 2], a[..., D // 2:]
        return jnp.concatenate([a1 * cos + a2 * sin, -a1 * sin + a2 * cos], axis=-1)

    q, k = rope(rms(q)), rope(rms(k))

    qh = q.transpose(0, 2, 1, 3)
    kh = k.transpose(0, 2, 1, 3)
    vh = v.transpose(0, 2, 1, 3)
    s = jnp.einsum("bhqd,bhkd->bhqk", qh, kh) / math.sqrt(D)
    mask = jnp.tril(jnp.ones((T, T), dtype=bool))
    s = jnp.where(mask, s, -jnp.inf)
    p = jax.nn.softmax(s, axis=-1)
    y = jnp.einsum("bhqk,bhkd->bhqd", p, vh)
    y = y.transpose(0, 2, 1, 3).reshape(B, T, C)
    return y @ wproj.T


if __name__ == "__main__":
    B, T, n_head, n_embd = 2, 256, 2, 128                 # head_dim = 64

    key = jax.random.PRNGKey(0)
    kx, kq, kk, kv, kp = jax.random.split(key, 5)
    std = 1.0 / math.sqrt(n_embd)
    x = jax.random.normal(kx, (B, T, n_embd), jnp.float32)
    wq = jax.random.normal(kq, (n_embd, n_embd), jnp.float32) * std
    wk = jax.random.normal(kk, (n_embd, n_embd), jnp.float32) * std
    wv = jax.random.normal(kv, (n_embd, n_embd), jnp.float32) * std
    # NOTE: the PyTorch module zero-inits c_proj.weight (output would be all
    # zeros); use a deterministic nonzero init so the final matmul is exercised.
    wp = jax.random.normal(kp, (n_embd, n_embd), jnp.float32) * std

    out = jax.block_until_ready(causal_self_attention(x, wq, wk, wv, wp, n_head))
    ref = jax.block_until_ready(reference(x, wq, wk, wv, wp, n_head))

    np.testing.assert_allclose(np.asarray(out), np.asarray(ref), rtol=2e-2, atol=2e-2)
    print("KERNEL_OK")
</pallas_src>

<mosaic_0001>
module attributes {stable_mosaic.version = 11 : i64} {
  func.func @kernel(%arg0: i32, %arg1: i32, %arg2: memref<1x256x128xbf16, #tpu.memory_space<vmem>>, %arg3: memref<128x640xbf16, #tpu.memory_space<vmem>>, %arg4: memref<128x128xbf16, #tpu.memory_space<vmem>>, %arg5: memref<128x128xbf16, #tpu.memory_space<vmem>>, %arg6: memref<256x128xbf16, #tpu.memory_space<vmem>>, %arg7: memref<256x128xbf16, #tpu.memory_space<vmem>>, %arg8: memref<1x256x128xbf16, #tpu.memory_space<vmem>>, %arg9: memref<1x256x128xbf16, #tpu.memory_space<vmem>>, %arg10: memref<1x256x128xbf16, #tpu.memory_space<vmem>>) attributes {dimension_semantics = [#tpu.dimension_semantics<parallel>, #tpu.dimension_semantics<parallel>], iteration_bounds = array<i64: 2, 1>, scalar_prefetch = 0 : i64, scratch_operands = 0 : i64, tpu.core_type = #tpu.core_type<tc>, window_params = [{transform_indices = @transform_0, window_bounds = array<i64: 1, 256, 128>}, {pipeline_mode = #tpu.pipeline_mode<synchronous>, transform_indices = @transform_1, window_bounds = array<i64: 128, 640>}, {pipeline_mode = #tpu.pipeline_mode<synchronous>, transform_indices = @transform_2, window_bounds = array<i64: 128, 128>}, {pipeline_mode = #tpu.pipeline_mode<synchronous>, transform_indices = @transform_3, window_bounds = array<i64: 128, 128>}, {transform_indices = @transform_4, window_bounds = array<i64: 256, 128>}, {transform_indices = @transform_5, window_bounds = array<i64: 256, 128>}, {transform_indices = @transform_6, window_bounds = array<i64: 1, 256, 128>}, {transform_indices = @transform_7, window_bounds = array<i64: 1, 256, 128>}, {transform_indices = @transform_8, window_bounds = array<i64: 1, 256, 128>}]} {
    %c0 = arith.constant 0 : index
    %c0_0 = arith.constant 0 : index
    %c0_1 = arith.constant 0 : index
    %0 = vector.load %arg2[%c0, %c0_0, %c0_1] : memref<1x256x128xbf16, #tpu.memory_space<vmem>>, vector<1x256x128xbf16>
    %1 = vector.shape_cast %0 : vector<1x256x128xbf16> to vector<256x128xbf16>
    %c0_2 = arith.constant 0 : index
    %c0_3 = arith.constant 0 : index
    %2 = vector.load %arg3[%c0_2, %c0_3] : memref<128x640xbf16, #tpu.memory_space<vmem>>, vector<128x640xbf16>
    %cst = arith.constant dense<0.000000e+00> : vector<256x640xf32>
    %3 = tpu.matmul %1, %2, %cst {dimension_numbers = #tpu.dot_dimension_numbers<[1], [0], [0], [1], [0, 0, 1, 1], [], []>} : vector<256x128xbf16>, vector<128x640xbf16>, vector<256x640xf32> -> vector<256x640xf32>
    %4 = vector.extract_strided_slice %3 {offsets = [0, 0], sizes = [256, 128], strides = [1, 1]} : vector<256x640xf32> to vector<256x128xf32>
    %5 = vector.extract_strided_slice %3 {offsets = [0, 128], sizes = [256, 128], strides = [1, 1]} : vector<256x640xf32> to vector<256x128xf32>
    %6 = vector.extract_strided_slice %3 {offsets = [0, 256], sizes = [256, 128], strides = [1, 1]} : vector<256x640xf32> to vector<256x128xf32>
    %7 = vector.extract_strided_slice %3 {offsets = [0, 384], sizes = [256, 128], strides = [1, 1]} : vector<256x640xf32> to vector<256x128xf32>
    %8 = vector.extract_strided_slice %3 {offsets = [0, 512], sizes = [256, 128], strides = [1, 1]} : vector<256x640xf32> to vector<256x128xf32>
    %c0_4 = arith.constant 0 : index
    %c0_5 = arith.constant 0 : index
    %9 = vector.load %arg6[%c0_4, %c0_5] : memref<256x128xbf16, #tpu.memory_space<vmem>>, vector<256x128xbf16>
    %10 = arith.extf %9 : vector<256x128xbf16> to vector<256x128xf32>
    %c0_6 = arith.constant 0 : index
    %c0_7 = arith.constant 0 : index
    %11 = vector.load %arg7[%c0_6, %c0_7] : memref<256x128xbf16, #tpu.memory_space<vmem>>, vector<256x128xbf16>
    %12 = arith.extf %11 : vector<256x128xbf16> to vector<256x128xf32>
    %13 = arith.mulf %4, %4 : vector<256x128xf32>
    %14 = arith.truncf %13 : vector<256x128xf32> to vector<256x128xbf16>
    %c0_8 = arith.constant 0 : index
    %c0_9 = arith.constant 0 : index
    %15 = vector.load %arg4[%c0_8, %c0_9] : memref<128x128xbf16, #tpu.memory_space<vmem>>, vector<128x128xbf16>
    %cst_10 = arith.constant dense<0.000000e+00> : vector<256x128xf32>
    %16 = tpu.matmul %14, %15, %cst_10 {dimension_numbers = #tpu.dot_dimension_numbers<[1], [0], [0], [1], [0, 0, 1, 1], [], []>} : vector<256x128xbf16>, vector<128x128xbf16>, vector<256x128xf32> -> vector<256x128xf32>
    %cst_11 = arith.constant 1.1920929E-7 : f32
    %17 = vector.broadcast %cst_11 : f32 to vector<256x128xf32>
    %18 = arith.addf %16, %17 : vector<256x128xf32>
    %19 = math.rsqrt %18 : vector<256x128xf32>
    %cst_12 = arith.constant 1.250000e-01 : f32
    %20 = vector.broadcast %cst_12 : f32 to vector<256x128xf32>
    %21 = arith.mulf %19, %20 : vector<256x128xf32>
    %22 = arith.truncf %21 : vector<256x128xf32> to vector<256x128xbf16>
    %c0_13 = arith.constant 0 : index
    %c0_14 = arith.constant 0 : index
    %23 = vector.load %arg5[%c0_13, %c0_14] : memref<128x128xbf16, #tpu.memory_space<vmem>>, vector<128x128xbf16>
    %cst_15 = arith.constant dense<0.000000e+00> : vector<256x128xf32>
    %24 = tpu.matmul %22, %23, %cst_15 {dimension_numbers = #tpu.dot_dimension_numbers<[1], [0], [0], [1], [0, 0, 1, 1], [], []>} : vector<256x128xbf16>, vector<128x128xbf16>, vector<256x128xf32> -> vector<256x128xf32>
    %25 = arith.mulf %5, %5 : vector<256x128xf32>
    %26 = arith.truncf %25 : vector<256x128xf32> to vector<256x128xbf16>
    %c0_16 = arith.constant 0 : index
    %c0_17 = arith.constant 0 : index
    %27 = vector.load %arg4[%c0_16, %c0_17] : memref<128x128xbf16, #tpu.memory_space<vmem>>, vector<128x128xbf16>
    %cst_18 = arith.constant dense<0.000000e+00> : vector<256x128xf32>
    %28 = tpu.matmul %26, %27, %cst_18 {dimension_numbers = #tpu.dot_dimension_numbers<[1], [0], [0], [1], [0, 0, 1, 1], [], []>} : vector<256x128xbf16>, vector<128x128xbf16>, vector<256x128xf32> -> vector<256x128xf32>
    %cst_19 = arith.constant 1.1920929E-7 : f32
    %29 = vector.broadcast %cst_19 : f32 to vector<256x128xf32>
    %30 = arith.addf %28, %29 : vector<256x128xf32>
    %31 = math.rsqrt %30 : vector<256x128xf32>
    %cst_20 = arith.constant 1.000000e+00 : f32
    %32 = vector.broadcast %cst_20 : f32 to vector<256x128xf32>
    %33 = arith.mulf %31, %32 : vector<256x128xf32>
    %34 = arith.truncf %33 : vector<256x128xf32> to vector<256x128xbf16>
    %c0_21 = arith.constant 0 : index
    %c0_22 = arith.constant 0 : index
    %35 = vector.load %arg5[%c0_21, %c0_22] : memref<128x128xbf16, #tpu.memory_space<vmem>>, vector<128x128xbf16>
    %cst_23 = arith.constant dense<0.000000e+00> : vector<256x128xf32>
    %36 = tpu.matmul %34, %35, %cst_23 {dimension_numbers = #tpu.dot_dimension_numbers<[1], [0], [0], [1], [0, 0, 1, 1], [], []>} : vector<256x128xbf16>, vector<128x128xbf16>, vector<256x128xf32> -> vector<256x128xf32>
    %37 = arith.mulf %4, %24 : vector<256x128xf32>
    %38 = arith.mulf %37, %10 : vector<256x128xf32>
    %39 = arith.mulf %7, %24 : vector<256x128xf32>
    %40 = arith.mulf %39, %12 : vector<256x128xf32>
    %41 = arith.addf %38, %40 : vector<256x128xf32>
    %42 = arith.truncf %41 : vector<256x128xf32> to vector<256x128xbf16>
    %c0_24 = arith.constant 0 : index
    %c0_25 = arith.constant 0 : index
    %c0_26 = arith.constant 0 : index
    %43 = vector.load %arg8[%c0_24, %c0_25, %c0_26] : memref<1x256x128xbf16, #tpu.memory_space<vmem>>, vector<1x256x128xbf16>
    %44 = vector.shape_cast %43 : vector<1x256x128xbf16> to vector<256x128xbf16>
    %45 = vector.shape_cast %42 : vector<256x128xbf16> to vector<1x256x128xbf16>
    tpu.vector_store %arg8[%c0_24, %c0_25, %c0_26], %45 {strides = array<i32>} : memref<1x256x128xbf16, #tpu.memory_space<vmem>>, vector<1x256x128xbf16>,
    %46 = arith.mulf %5, %36 : vector<256x128xf32>
    %47 = arith.mulf %46, %10 : vector<256x128xf32>
    %48 = arith.mulf %8, %36 : vector<256x128xf32>
    %49 = arith.mulf %48, %12 : vector<256x128xf32>
    %50 = arith.addf %47, %49 : vector<256x128xf32>
    %51 = arith.truncf %50 : vector<256x128xf32> to vector<256x128xbf16>
    %c0_27 = arith.constant 0 : index
    %c0_28 = arith.constant 0 : index
    %c0_29 = arith.constant 0 : index
    %52 = vector.load %arg9[%c0_27, %c0_28, %c0_29] : memref<1x256x128xbf16, #tpu.memory_space<vmem>>, vector<1x256x128xbf16>
    %53 = vector.shape_cast %52 : vector<1x256x128xbf16> to vector<256x128xbf16>
    %54 = vector.shape_cast %51 : vector<256x128xbf16> to vector<1x256x128xbf16>
    tpu.vector_store %arg9[%c0_27, %c0_28, %c0_29], %54 {strides = array<i32>} : memref<1x256x128xbf16, #tpu.memory_space<vmem>>, vector<1x256x128xbf16>,
    %55 = arith.truncf %6 : vector<256x128xf32> to vector<256x128xbf16>
    %c0_30 = arith.constant 0 : index
    %c0_31 = arith.constant 0 : index
    %c0_32 = arith.constant 0 : index
    %56 = vector.load %arg10[%c0_30, %c0_31, %c0_32] : memref<1x256x128xbf16, #tpu.memory_space<vmem>>, vector<1x256x128xbf16>
    %57 = vector.shape_cast %56 : vector<1x256x128xbf16> to vector<256x128xbf16>
    %58 = vector.shape_cast %55 : vector<256x128xbf16> to vector<1x256x128xbf16>
    tpu.vector_store %arg10[%c0_30, %c0_31, %c0_32], %58 {strides = array<i32>} : memref<1x256x128xbf16, #tpu.memory_space<vmem>>, vector<1x256x128xbf16>,
    return
  }
  func.func @transform_0(%arg0: i32, %arg1: i32) -> (i32, i32, i32) {
    %c0_i32 = arith.constant 0 : i32
    %c0_i32_0 = arith.constant 0 : i32
    return %arg0, %arg1, %c0_i32 : i32, i32, i32
  }
  func.func @transform_1(%arg0: i32, %arg1: i32) -> (i32, i32) {
    %c0_i32 = arith.constant 0 : i32
    %c0_i32_0 = arith.constant 0 : i32
    %c0_i32_1 = arith.constant 0 : i32
    return %c0_i32, %c0_i32_0 : i32, i32
  }
  func.func @transform_2(%arg0: i32, %arg1: i32) -> (i32, i32) {
    %c0_i32 = arith.constant 0 : i32
    %c0_i32_0 = arith.constant 0 : i32
    %c0_i32_1 = arith.constant 0 : i32
    return %c0_i32, %c0_i32_0 : i32, i32
  }
  func.func @transform_3(%arg0: i32, %arg1: i32) -> (i32, i32) {
    %c0_i32 = arith.constant 0 : i32
    %c0_i32_0 = arith.constant 0 : i32
    %c0_i32_1 = arith.constant 0 : i32
    return %c0_i32, %c0_i32_0 : i32, i32
  }
  func.func @transform_4(%arg0: i32, %arg1: i32) -> (i32, i32) {
    %c0_i32 = arith.constant 0 : i32
    %c0_i32_0 = arith.constant 0 : i32
    return %arg1, %c0_i32 : i32, i32
  }
  func.func @transform_5(%arg0: i32, %arg1: i32) -> (i32, i32) {
    %c0_i32 = arith.constant 0 : i32
    %c0_i32_0 = arith.constant 0 : i32
    return %arg1, %c0_i32 : i32, i32
  }
  func.func @transform_6(%arg0: i32, %arg1: i32) -> (i32, i32, i32) {
    %c0_i32 = arith.constant 0 : i32
    %c0_i32_0 = arith.constant 0 : i32
    return %arg0, %arg1, %c0_i32 : i32, i32, i32
  }
  func.func @transform_7(%arg0: i32, %arg1: i32) -> (i32, i32, i32) {
    %c0_i32 = arith.constant 0 : i32
    %c0_i32_0 = arith.constant 0 : i32
    return %arg0, %arg1, %c0_i32 : i32, i32, i32
  }
  func.func @transform_8(%arg0: i32, %arg1: i32) -> (i32, i32, i32) {
    %c0_i32 = arith.constant 0 : i32
    %c0_i32_0 = arith.constant 0 : i32
    return %arg0, %arg1, %c0_i32 : i32, i32, i32
  }
}

</mosaic_0001>

<llo_original>
// kernel: tpu_custom_call.1
$region0: #{tpu_custom_call.1}
  #allocation0 [shape = 'u32[]', space=smem, size = 0x4, offset = 0x4, fixed_abs, tag = 'smem constant byte address 0x4 - core index']
  #allocation1 [shape = 'u32[72,128]{1,0:T(1,128)}', space=vmem, size = 0x9000, scoped, tag = 'internal scratch']
  %s0 = inlined_call_operand.hbm [shape: bf16[2,256,128], index: 0, kind: input, shape index: {}]
  %s1 = inlined_call_operand.hbm [shape: bf16[128,640], index: 1, kind: input, shape index: {}]
  %s2 = inlined_call_operand.hbm [shape: bf16[128,128], index: 2, kind: input, shape index: {}]
  %s3 = inlined_call_operand.hbm [shape: bf16[128,128], index: 3, kind: input, shape index: {}]
  %s4 = inlined_call_operand.hbm [shape: bf16[256,128], index: 4, kind: input, shape index: {}]
  %s5 = inlined_call_operand.hbm [shape: bf16[256,128], index: 5, kind: input, shape index: {}]
  %s6 = inlined_call_operand.hbm [shape: bf16[2,256,128], index: 6, kind: output, shape index: {0}]
  %s7 = inlined_call_operand.hbm [shape: bf16[2,256,128], index: 7, kind: output, shape index: {1}]
  %s8 = inlined_call_operand.hbm [shape: bf16[2,256,128], index: 8, kind: output, shape index: {2}]
  %9 = xla_tuple %s6, %s7, %s8
  %s10 = sld [smem:[#allocation0]]
  $region97: #{tpu_custom_call.1} parent=0
    _
  %s12 = ssub.s32 1, %s10
  %s13 = scalar_select 0, %s12, %s10
  $region1: #{tpu_custom_call.1} parent=0
    #allocation2 [shape = 'u8[131072]{0}', space=vmem, size = 0x20000, scoped, tag = 'input window, operand 0']
    #allocation3 [shape = 's32[2]{0}', space=sflag, size = 0x8, scoped, tag = 'scoped memory for tpu_custom_call.1']
    #allocation4 [shape = 's32[2]{0}', space=sflag, size = 0x8, scoped, tag = 'scoped memory for tpu_custom_call.1']
    #allocation5 [shape = 'u8[163840]{0}', space=vmem, size = 0x28000, scoped, tag = 'input window, operand 1, single buffered']
    #allocation6 [shape = 's32[1]{0}', space=sflag, size = 0x4, scoped, tag = 'scoped memory for tpu_custom_call.1']
    #allocation7 [shape = 'u8[32768]{0}', space=vmem, size = 0x8000, scoped, tag = 'input window, operand 2, single buffered']
    #allocation8 [shape = 'u8[32768]{0}', space=vmem, size = 0x8000, scoped, tag = 'input window, operand 3, single buffered']
    #allocation9 [shape = 's32[1]{0}', space=sflag, size = 0x4, scoped, tag = 'scoped memory for tpu_custom_call.1']
    #allocation10 [shape = 'u8[65536]{0}', space=vmem, size = 0x10000, scoped, tag = 'input window, operand 4, single buffered']
    #allocation11 [shape = 'u8[65536]{0}', space=vmem, size = 0x10000, scoped, tag = 'input window, operand 5, single buffered']
    #allocation12 [shape = 's32[1]{0}', space=sflag, size = 0x4, scoped, tag = 'scoped memory for tpu_custom_call.1']
    #allocation13 [shape = 'u8[131072]{0}', space=vmem, size = 0x20000, scoped, tag = 'output window, operand 0']
    #allocation14 [shape = 'u8[131072]{0}', space=vmem, size = 0x20000, scoped, tag = 'output window, operand 1']
    #allocation15 [shape = 's32[2]{0}', space=sflag, size = 0x8, scoped, tag = 'scoped memory for tpu_custom_call.1']
    #allocation16 [shape = 'u8[131072]{0}', space=vmem, size = 0x20000, scoped, tag = 'output window, operand 2']
    %14 = vsyncpa [#allocation3], 0
    %s15 = scalar_lea.sflag [#allocation3], 1
    %16 = vsyncpa %s15, 0
    %17 = vsyncpa [#allocation6], 0
    %18 = vsyncpa [#allocation9], 0
    %19 = vsyncpa [#allocation12], 0
    %20 = vsyncpa [#allocation4], 0
    %s21 = scalar_lea.sflag [#allocation4], 1
    %22 = vsyncpa %s21, 0
    %23 = vsyncpa [#allocation15], 0
    %s24 = scalar_lea.sflag [#allocation15], 1
    %25 = vsyncpa %s24, 0
    loop: start=0, step=1, limit=4
    $region2: #{tpu_custom_call.1} parent=1 // loop_pre_header
      _
    $region3: #{tpu_custom_call.1} parent=1 // loop_header
      %s27 = sphi 0, %s31
      %p28 = scmp.ge.s32.totalorder %s27, 4
      %s34 = sphi 0, %s46
      %s35 = sphi 0, %s42
      %s36 = sphi 0, %s34
      %s37 = sphi 0, %s35
      %s38 = sphi 0, %s36
      %s39 = sphi 0, %s37
      %s51 = sphi 0, %s53
      %s54 = sphi 0, %s51
      %s55 = sphi 0, %s54
      %s71 = sphi 0, %s55
      %s75 = sphi 0, %s75
      %s77 = sphi 0, %s75
      %s78 = sphi 0, %s77
      %s92 = sphi 0, %s78
      %s96 = sphi 0, %s96
      %s98 = sphi 0, %s96
      %s99 = sphi 0, %s98
      %s113 = sphi 0, %s99
      %s117 = sphi 0, %s117
      %s119 = sphi 0, %s117
      %s120 = sphi 0, %s119
      %s134 = sphi 0, %s120
      %s140 = sphi 0, %s142
      %s143 = sphi 0, %s140
      %s144 = sphi 0, %s143
      %s160 = sphi 0, %s144
      %s166 = sphi 0, %s168
      %s169 = sphi 0, %s166
      %s170 = sphi 0, %s169
      %s186 = sphi 0, %s170
      %s194 = sphi 0, %s196
      %s197 = sphi 0, %s194
      %s198 = sphi 0, %s197
      %s214 = sphi 0, %s198
      %s222 = sphi 0, %s224
      %s225 = sphi 0, %s222
      %s226 = sphi 0, %s225
      %s242 = sphi 0, %s226
      %s250 = sphi 0, %s252
      %s253 = sphi 0, %s250
      %s254 = sphi 0, %s253
      %s270 = sphi 0, %s254
    $region4: #{tpu_custom_call.1} parent=1 // loop_header_branch
      %30 = sbr.rel (%p28) target = $region8
    $region5: #{tpu_custom_call.1} parent=1 // loop_body
      %s32 = ssub.s32 %s27, 1
      %s33 = ssub.s32 %s27, 2
      %s40 = sadd.s32 1, %s35
      %p41 = scmp.ge.s32.totalorder %s40, 1
      %s42 = scalar_select %p41, 0, %s40
      %s43 = sadd.s32 1, %s34
      %s44 = scalar_select %p41, %s43, %s34
      %p45 = scmp.ge.s32.totalorder %s44, 2
      %s46 = scalar_select %p45, 0, %s44
      %s47 = ssub.s32 %s34, %s46
      %s48 = ssub.s32 %s35, %s42
      %s49 = sor.u32 %s47, %s48
      %p50 = scmp.eq.s32.totalorder %s49, 0
      %s52 = sadd.s32 %s51, 1
      %s53 = scalar_select %p50, %s51, %s52
      %p56 = pneg %p50
      %p57 = scmp.eq.s32.totalorder %s27, 1
      %p58 = por %p56, %p57
      %p59 = scmp.ne.s32.totalorder %s51, %s54
      %p60 = scmp.eq.s32.totalorder %s27, 0
      %p61 = por %p59, %p60
      %p62 = scmp.ne.s32.totalorder %s51, %s54
      %p63 = scmp.eq.s32.totalorder %s32, 1
      %p64 = por %p62, %p63
      %p65 = scmp.ne.s32.totalorder %s54, %s55
      %p66 = scmp.eq.s32.totalorder %s32, 0
      %p67 = por %p65, %p66
      %p68 = scmp.ne.s32.totalorder %s54, %s55
      %p69 = scmp.eq.s32.totalorder %s33, 1
      %p70 = por %p68, %p69
      %p72 = scmp.ne.s32.totalorder %s55, %s71
      %p73 = scmp.eq.s32.totalorder %s33, 0
      %p74 = por %p72, %p73
      %s76 = sadd.s32 %s75, 1
      %p79 = scmp.eq.s32.totalorder %s27, 1
      %p80 = scmp.ne.s32.totalorder %s75, %s77
      %p81 = scmp.eq.s32.totalorder %s27, 0
      %p82 = por %p80, %p81
      %p83 = scmp.ne.s32.totalorder %s75, %s77
      %p84 = scmp.eq.s32.totalorder %s32, 1
      %p85 = por %p83, %p84
      %p86 = scmp.ne.s32.totalorder %s77, %s78
      %p87 = scmp.eq.s32.totalorder %s32, 0
      %p88 = por %p86, %p87
      %p89 = scmp.ne.s32.totalorder %s77, %s78
      %p90 = scmp.eq.s32.totalorder %s33, 1
      %p91 = por %p89, %p90
      %p93 = scmp.ne.s32.totalorder %s78, %s92
      %p94 = scmp.eq.s32.totalorder %s33, 0
      %p95 = por %p93, %p94
      %s97 = sadd.s32 %s96, 1
      %p100 = scmp.eq.s32.totalorder %s27, 1
      %p101 = scmp.ne.s32.totalorder %s96, %s98
      %p102 = scmp.eq.s32.totalorder %s27, 0
      %p103 = por %p101, %p102
      %p104 = scmp.ne.s32.totalorder %s96, %s98
      %p105 = scmp.eq.s32.totalorder %s32, 1
      %p106 = por %p104, %p105
      %p107 = scmp.ne.s32.totalorder %s98, %s99
      %p108 = scmp.eq.s32.totalorder %s32, 0
      %p109 = por %p107, %p108
      %p110 = scmp.ne.s32.totalorder %s98, %s99
      %p111 = scmp.eq.s32.totalorder %s33, 1
      %p112 = por %p110, %p111
      %p114 = scmp.ne.s32.totalorder %s99, %s113
      %p115 = scmp.eq.s32.totalorder %s33, 0
      %p116 = por %p114, %p115
      %s118 = sadd.s32 %s117, 1
      %p121 = scmp.eq.s32.totalorder %s27, 1
      %p122 = scmp.ne.s32.totalorder %s117, %s119
      %p123 = scmp.eq.s32.totalorder %s27, 0
      %p124 = por %p122, %p123
      %p125 = scmp.ne.s32.totalorder %s117, %s119
      %p126 = scmp.eq.s32.totalorder %s32, 1
      %p127 = por %p125, %p126
      %p128 = scmp.ne.s32.totalorder %s119, %s120
      %p129 = scmp.eq.s32.totalorder %s32, 0
      %p130 = por %p128, %p129
      %p131 = scmp.ne.s32.totalorder %s119, %s120
      %p132 = scmp.eq.s32.totalorder %s33, 1
      %p133 = por %p131, %p132
      %p135 = scmp.ne.s32.totalorder %s120, %s134
      %p136 = scmp.eq.s32.totalorder %s33, 0
      %p137 = por %p135, %p136
      %s138 = ssub.s32 %s35, %s42
      %p139 = scmp.eq.s32.totalorder %s138, 0
      %s141 = sadd.s32 %s140, 1
      %s142 = scalar_select %p139, %s140, %s141
      %p145 = pneg %p139
      %p146 = scmp.eq.s32.totalorder %s27, 1
      %p147 = por %p145, %p146
      %p148 = scmp.ne.s32.totalorder %s140, %s143
      %p149 = scmp.eq.s32.totalorder %s27, 0
      %p150 = por %p148, %p149
      %p151 = scmp.ne.s32.totalorder %s140, %s143
      %p152 = scmp.eq.s32.totalorder %s32, 1
      %p153 = por %p151, %p152
      %p154 = scmp.ne.s32.totalorder %s143, %s144
      %p155 = scmp.eq.s32.totalorder %s32, 0
      %p156 = por %p154, %p155
      %p157 = scmp.ne.s32.totalorder %s143, %s144
      %p158 = scmp.eq.s32.totalorder %s33, 1
      %p159 = por %p157, %p158
      %p161 = scmp.ne.s32.totalorder %s144, %s160
      %p162 = scmp.eq.s32.totalorder %s33, 0
      %p163 = por %p161, %p162
      %s164 = ssub.s32 %s35, %s42
      %p165 = scmp.eq.s32.totalorder %s164, 0
      %s167 = sadd.s32 %s166, 1
      %s168 = scalar_select %p165, %s166, %s167
      %p171 = pneg %p165
      %p172 = scmp.eq.s32.totalorder %s27, 1
      %p173 = por %p171, %p172
      %p174 = scmp.ne.s32.totalorder %s166, %s169
      %p175 = scmp.eq.s32.totalorder %s27, 0
      %p176 = por %p174, %p175
      %p177 = scmp.ne.s32.totalorder %s166, %s169
      %p178 = scmp.eq.s32.totalorder %s32, 1
      %p179 = por %p177, %p178
      %p180 = scmp.ne.s32.totalorder %s169, %s170
      %p181 = scmp.eq.s32.totalorder %s32, 0
      %p182 = por %p180, %p181
      %p183 = scmp.ne.s32.totalorder %s169, %s170
      %p184 = scmp.eq.s32.totalorder %s33, 1
      %p185 = por %p183, %p184
      %p187 = scmp.ne.s32.totalorder %s170, %s186
      %p188 = scmp.eq.s32.totalorder %s33, 0
      %p189 = por %p187, %p188
      %s190 = ssub.s32 %s34, %s46
      %s191 = ssub.s32 %s35, %s42
      %s192 = sor.u32 %s190, %s191
      %p193 = scmp.eq.s32.totalorder %s192, 0
      %s195 = sadd.s32 %s194, 1
      %s196 = scalar_select %p193, %s194, %s195
      %p199 = pneg %p193
      %p200 = scmp.eq.s32.totalorder %s27, 1
      %p201 = por %p199, %p200
      %p202 = scmp.ne.s32.totalorder %s194, %s197
      %p203 = scmp.eq.s32.totalorder %s27, 0
      %p204 = por %p202, %p203
      %p205 = scmp.ne.s32.totalorder %s194, %s197
      %p206 = scmp.eq.s32.totalorder %s32, 1
      %p207 = por %p205, %p206
      %p208 = scmp.ne.s32.totalorder %s197, %s198
      %p209 = scmp.eq.s32.totalorder %s32, 0
      %p210 = por %p208, %p209
      %p211 = scmp.ne.s32.totalorder %s197, %s198
      %p212 = scmp.eq.s32.totalorder %s33, 1
      %p213 = por %p211, %p212
      %p215 = scmp.ne.s32.totalorder %s198, %s214
      %p216 = scmp.eq.s32.totalorder %s33, 0
      %p217 = por %p215, %p216
      %s218 = ssub.s32 %s34, %s46
      %s219 = ssub.s32 %s35, %s42
      %s220 = sor.u32 %s218, %s219
      %p221 = scmp.eq.s32.totalorder %s220, 0
      %s223 = sadd.s32 %s222, 1
      %s224 = scalar_select %p221, %s222, %s223
      %p227 = pneg %p221
      %p228 = scmp.eq.s32.totalorder %s27, 1
      %p229 = por %p227, %p228
      %p230 = scmp.ne.s32.totalorder %s222, %s225
      %p231 = scmp.eq.s32.totalorder %s27, 0
      %p232 = por %p230, %p231
      %p233 = scmp.ne.s32.totalorder %s222, %s225
      %p234 = scmp.eq.s32.totalorder %s32, 1
      %p235 = por %p233, %p234
      %p236 = scmp.ne.s32.totalorder %s225, %s226
      %p237 = scmp.eq.s32.totalorder %s32, 0
      %p238 = por %p236, %p237
      %p239 = scmp.ne.s32.totalorder %s225, %s226
      %p240 = scmp.eq.s32.totalorder %s33, 1
      %p241 = por %p239, %p240
      %p243 = scmp.ne.s32.totalorder %s226, %s242
      %p244 = scmp.eq.s32.totalorder %s33, 0
      %p245 = por %p243, %p244
      %s246 = ssub.s32 %s34, %s46
      %s247 = ssub.s32 %s35, %s42
      %s248 = sor.u32 %s246, %s247
      %p249 = scmp.eq.s32.totalorder %s248, 0
      %s251 = sadd.s32 %s250, 1
      %s252 = scalar_select %p249, %s250, %s251
      %p255 = pneg %p249
      %p256 = scmp.eq.s32.totalorder %s27, 1
      %p257 = por %p255, %p256
      %p258 = scmp.ne.s32.totalorder %s250, %s253
      %p259 = scmp.eq.s32.totalorder %s27, 0
      %p260 = por %p258, %p259
      %p261 = scmp.ne.s32.totalorder %s250, %s253
      %p262 = scmp.eq.s32.totalorder %s32, 1
      %p263 = por %p261, %p262
      %p264 = scmp.ne.s32.totalorder %s253, %s254
      %p265 = scmp.eq.s32.totalorder %s32, 0
      %p266 = por %p264, %p265
      %p267 = scmp.ne.s32.totalorder %s253, %s254
      %p268 = scmp.eq.s32.totalorder %s33, 1
      %p269 = por %p267, %p268
      %p271 = scmp.ne.s32.totalorder %s254, %s270
      %p272 = scmp.eq.s32.totalorder %s33, 0
      %p273 = por %p271, %p272
      %p274 = scmp.le.s32.totalorder 1, %s27
      %p275 = scmp.lt.s32.totalorder %s27, 3
      %p276 = pnand %p274, %p275
      %p277 = pneg %p276
      // Predicated region
      $region9: #{tpu_custom_call.1} parent=5 // pred_check
        _
      $region10: #{tpu_custom_call.1} parent=5 // pred_check_branch
        %279 = sbr.rel (%p276) target = $region12
      $region11: #{tpu_custom_call.1} parent=5 // pred_region
        %s280 = ssub.s32 %s27, 1
        // Predicated region
        $region13: #{tpu_custom_call.1} parent=11 // pred_check
          %p281 = pneg %p88
        $region14: #{tpu_custom_call.1} parent=11 // pred_check_branch
          %283 = sbr.rel (%p281) target = $region16
        $region15: #{tpu_custom_call.1} parent=11 // pred_region
          %285 = vsyncadd [#allocation6], 0
          %s286 = sshll.u32 %s1, 4
          %s287 = int_to_ptr.hbm [resolvable:$true] %s286
          %s288 = sshll.u32 [#allocation5], 4
          %s289 = int_to_ptr.vmem [resolvable:$true] %s288
          %294 = dma.hbm_to_vmem [thread:$0]  %s287, 5120, %s289, [#allocation6], 320, 320, 20
        $region16: #{tpu_custom_call.1} parent=11 // pred_fallthru
          _
        // Predicated region
        $region17: #{tpu_custom_call.1} parent=11 // pred_check
          %p295 = pneg %p109
        $region18: #{tpu_custom_call.1} parent=11 // pred_check_branch
          %297 = sbr.rel (%p295) target = $region20
        $region19: #{tpu_custom_call.1} parent=11 // pred_region
          %299 = vsyncadd [#allocation6], 0
          %s300 = sshll.u32 %s2, 4
          %s301 = int_to_ptr.hbm [resolvable:$true] %s300
          %s302 = sshll.u32 [#allocation7], 4
          %s303 = int_to_ptr.vmem [resolvable:$true] %s302
          %308 = dma.hbm_to_vmem [thread:$0]  %s301, 1024, %s303, [#allocation6], 64, 64, 4
        $region20: #{tpu_custom_call.1} parent=11 // pred_fallthru
          _
        // Predicated region
        $region21: #{tpu_custom_call.1} parent=11 // pred_check
          %p309 = pneg %p130
        $region22: #{tpu_custom_call.1} parent=11 // pred_check_branch
          %311 = sbr.rel (%p309) target = $region24
        $region23: #{tpu_custom_call.1} parent=11 // pred_region
          %313 = vsyncadd [#allocation9], 0
          %s314 = sshll.u32 %s3, 4
          %s315 = int_to_ptr.hbm [resolvable:$true] %s314
          %s316 = sshll.u32 [#allocation8], 4
          %s317 = int_to_ptr.vmem [resolvable:$true] %s316
          %322 = dma.hbm_to_vmem [thread:$0]  %s315, 1024, %s317, [#allocation9], 64, 64, 4
        $region24: #{tpu_custom_call.1} parent=11 // pred_fallthru
          _
        // Predicated region
        $region25: #{tpu_custom_call.1} parent=11 // pred_check
          %p323 = pneg %p156
        $region26: #{tpu_custom_call.1} parent=11 // pred_check_branch
          %325 = sbr.rel (%p323) target = $region28
        $region27: #{tpu_custom_call.1} parent=11 // pred_region
          %s326 = smul.u32 32, %s37
          %328 = vsyncadd [#allocation9], 0
          %s329 = smul.addr %s326, 4
          %s330 = scalar_lea.hbm %s4, %s329
          %s331 = sshll.u32 %s330, 4
          %s332 = int_to_ptr.hbm [resolvable:$true] %s331
          %s333 = sshll.u32 [#allocation10], 4
          %s334 = int_to_ptr.vmem [resolvable:$true] %s333
          %339 = dma.hbm_to_vmem [thread:$0]  %s332, 2048, %s334, [#allocation9], 64, 64, 4
        $region28: #{tpu_custom_call.1} parent=11 // pred_fallthru
          _
        // Predicated region
        $region29: #{tpu_custom_call.1} parent=11 // pred_check
          %p340 = pneg %p182
        $region30: #{tpu_custom_call.1} parent=11 // pred_check_branch
          %342 = sbr.rel (%p340) target = $region32
        $region31: #{tpu_custom_call.1} parent=11 // pred_region
          %s343 = smul.u32 32, %s37
          %345 = vsyncadd [#allocation12], 0
          %s346 = smul.addr %s343, 4
          %s347 = scalar_lea.hbm %s5, %s346
          %s348 = sshll.u32 %s347, 4
          %s349 = int_to_ptr.hbm [resolvable:$true] %s348
          %s350 = sshll.u32 [#allocation11], 4
          %s351 = int_to_ptr.vmem [resolvable:$true] %s350
          %356 = dma.hbm_to_vmem [thread:$0]  %s349, 2048, %s351, [#allocation12], 64, 64, 4
        $region32: #{tpu_custom_call.1} parent=11 // pred_fallthru
          _
      $region12: #{tpu_custom_call.1} parent=5 // pred_fallthru
        _
      %p357 = scmp.lt.s32.totalorder %s27, 2
      // Predicated region
      $region33: #{tpu_custom_call.1} parent=5 // pred_check
        %p358 = pneg %p357
      $region34: #{tpu_custom_call.1} parent=5 // pred_check_branch
        %360 = sbr.rel (%p358) target = $region36
      $region35: #{tpu_custom_call.1} parent=5 // pred_region
        // Predicated region
        $region37: #{tpu_custom_call.1} parent=35 // pred_check
          %p361 = pneg %p61
        $region38: #{tpu_custom_call.1} parent=35 // pred_check_branch
          %363 = sbr.rel (%p361) target = $region40
        $region39: #{tpu_custom_call.1} parent=35 // pred_region
          %s364 = sand.u32 %s51, 1
          %s365 = scalar_lea.sflag [#allocation3], %s364
          %s366 = sand.u32 %s51, 1
          %s367 = smul.addr %s366, 128
          %s368 = scalar_lea.vmem [#allocation2], %s367
          %s369 = smul.u32 32, %s35
          %371 = vsyncadd %s365, 0
          %s372 = smul.addr %s34, 32
          %s373 = sadd.s32 %s369, %s372
          %s374 = smul.addr %s373, 4
          %s375 = scalar_lea.hbm %s0, %s374
          %s376 = sshll.u32 %s375, 4
          %s377 = int_to_ptr.hbm [resolvable:$true] %s376
          %s378 = sshll.u32 %s368, 4
          %s379 = int_to_ptr.vmem [resolvable:$true] %s378
          %384 = dma.hbm_to_vmem [thread:$0]  %s377, 2048, %s379, %s365, 64, 64, 4
        $region40: #{tpu_custom_call.1} parent=35 // pred_fallthru
          _
      $region36: #{tpu_custom_call.1} parent=5 // pred_fallthru
        _
      %p385 = scmp.le.s32.totalorder 1, %s27
      %p386 = scmp.lt.s32.totalorder %s27, 3
      %p387 = pnand %p385, %p386
      %p388 = pneg %p387
      // Predicated region
      $region41: #{tpu_custom_call.1} parent=5 // pred_check
        _
      $region42: #{tpu_custom_call.1} parent=5 // pred_check_branch
        %390 = sbr.rel (%p387) target = $region44
      $region43: #{tpu_custom_call.1} parent=5 // pred_region
        %s391 = ssub.s32 %s27, 1
        %s392 = sand.u32 %s54, 1
        %s393 = scalar_lea.sflag [#allocation3], %s392
        %s394 = sand.u32 %s54, 1
        %s395 = smul.addr %s394, 128
        %s396 = scalar_lea.vmem [#allocation2], %s395
        // Predicated region
        $region45: #{tpu_custom_call.1} parent=43 // pred_check
          %p397 = pneg %p67
        $region46: #{tpu_custom_call.1} parent=43 // pred_check_branch
          %399 = sbr.rel (%p397) target = $region48
        $region47: #{tpu_custom_call.1} parent=43 // pred_region
          %401 = dma.done %s393, 2048
        $region48: #{tpu_custom_call.1} parent=43 // pred_fallthru
          _
        // Predicated region
        $region49: #{tpu_custom_call.1} parent=43 // pred_check
          %p402 = pneg %p88
        $region50: #{tpu_custom_call.1} parent=43 // pred_check_branch
          %404 = sbr.rel (%p402) target = $region52
        $region51: #{tpu_custom_call.1} parent=43 // pred_region
          %406 = dma.done [#allocation6], 5120
        $region52: #{tpu_custom_call.1} parent=43 // pred_fallthru
          _
        // Predicated region
        $region53: #{tpu_custom_call.1} parent=43 // pred_check
          %p407 = pneg %p109
        $region54: #{tpu_custom_call.1} parent=43 // pred_check_branch
          %409 = sbr.rel (%p407) target = $region56
        $region55: #{tpu_custom_call.1} parent=43 // pred_region
          %411 = dma.done [#allocation6], 1024
        $region56: #{tpu_custom_call.1} parent=43 // pred_fallthru
          _
        // Predicated region
        $region57: #{tpu_custom_call.1} parent=43 // pred_check
          %p412 = pneg %p130
        $region58: #{tpu_custom_call.1} parent=43 // pred_check_branch
          %414 = sbr.rel (%p412) target = $region60
        $region59: #{tpu_custom_call.1} parent=43 // pred_region
          %416 = dma.done [#allocation9], 1024
        $region60: #{tpu_custom_call.1} parent=43 // pred_fallthru
          _
        // Predicated region
        $region61: #{tpu_custom_call.1} parent=43 // pred_check
          %p417 = pneg %p156
        $region62: #{tpu_custom_call.1} parent=43 // pred_check_branch
          %419 = sbr.rel (%p417) target = $region64
        $region63: #{tpu_custom_call.1} parent=43 // pred_region
          %421 = dma.done [#allocation9], 2048
        $region64: #{tpu_custom_call.1} parent=43 // pred_fallthru
          _
        // Predicated region
        $region65: #{tpu_custom_call.1} parent=43 // pred_check
          %p422 = pneg %p182
        $region66: #{tpu_custom_call.1} parent=43 // pred_check_branch
          %424 = sbr.rel (%p422) target = $region68
        $region67: #{tpu_custom_call.1} parent=43 // pred_region
          %426 = dma.done [#allocation12], 2048
        $region68: #{tpu_custom_call.1} parent=43 // pred_fallthru
          _
        %s427 = sand.u32 %s54, 1
        %s428 = scalar_lea.sflag [#allocation3], %s427
        %s429 = sand.u32 %s54, 1
        %s430 = smul.addr %s429, 128
        %s431 = scalar_lea.vmem [#allocation2], %s430
        %p432 = pneg %p67
        %p433 = pneg %p64
        %p434 = pneg %p88
        %p435 = pneg %p85
        %p436 = pneg %p109
        %p437 = pneg %p106
        %p438 = pneg %p130
        %p439 = pneg %p127
        %p440 = pneg %p156
        %p441 = pneg %p153
        %p442 = pneg %p182
        %p443 = pneg %p179
        %p444 = pneg %p210
        %p445 = pneg %p207
        %s446 = sand.u32 %s197, 1
        %s447 = scalar_lea.sflag [#allocation4], %s446
        %s448 = sand.u32 %s197, 1
        %s449 = smul.addr %s448, 128
        %s450 = scalar_lea.vmem [#allocation13], %s449
        %p451 = pneg %p238
        %p452 = pneg %p235
        %s453 = sand.u32 %s32, 1
        %s454 = scalar_lea.sflag [#allocation15], %s453
        %s455 = sand.u32 %s225, 1
        %s456 = smul.addr %s455, 128
        %s457 = scalar_lea.vmem [#allocation14], %s456
        %p458 = pneg %p266
        %p459 = pneg %p263
        %s460 = sand.u32 %s32, 1
        %s461 = scalar_lea.sflag [#allocation15], %s460
        %s462 = sand.u32 %s253, 1
        %s463 = smul.addr %s462, 128
        %s464 = scalar_lea.vmem [#allocation16], %s463
        %s465 = smul.u32 32, %s37
        %s466 = smul.u32 32, %s37
        %s467 = smul.u32 32, %s37
        %s468 = smul.u32 32, %s37
        %s469 = smul.u32 32, %s37
        %s470 = smul.u32 32, %s37
        %v471 = vld [vmem:[%s396] sm:$0xf]
        %v472 = vld [vmem:[%s396 + $0x4] sm:$0xf]
        %v473 = vld [vmem:[%s396 + $0x8] sm:$0xf]
        %v474 = vld [vmem:[%s396 + $0xc] sm:$0xf]
        %v475 = vld [vmem:[%s396 + $0x10] sm:$0xf]
        %v476 = vld [vmem:[%s396 + $0x14] sm:$0xf]
        %v477 = vld [vmem:[%s396 + $0x18] sm:$0xf]
        %v478 = vld [vmem:[%s396 + $0x1c] sm:$0xf]
        %v479 = vld [vmem:[%s396 + $0x20] sm:$0xf]
        %v480 = vld [vmem:[%s396 + $0x24] sm:$0xf]
        %v481 = vld [vmem:[%s396 + $0x28] sm:$0xf]
        %v482 = vld [vmem:[%s396 + $0x2c] sm:$0xf]
        %v483 = vld [vmem:[%s396 + $0x30] sm:$0xf]
        %v484 = vld [vmem:[%s396 + $0x34] sm:$0xf]
        %v485 = vld [vmem:[%s396 + $0x38] sm:$0xf]
        %v486 = vld [vmem:[%s396 + $0x3c] sm:$0xf]
        %v487 = vld [vmem:[%s396 + $0x40] sm:$0xf]
        %v488 = vld [vmem:[%s396 + $0x44] sm:$0xf]
        %v489 = vld [vmem:[%s396 + $0x48] sm:$0xf]
        %v490 = vld [vmem:[%s396 + $0x4c] sm:$0xf]
        %v491 = vld [vmem:[%s396 + $0x50] sm:$0xf]
        %v492 = vld [vmem:[%s396 + $0x54] sm:$0xf]
        %v493 = vld [vmem:[%s396 + $0x58] sm:$0xf]
        %v494 = vld [vmem:[%s396 + $0x5c] sm:$0xf]
        %v495 = vld [vmem:[%s396 + $0x60] sm:$0xf]
        %v496 = vld [vmem:[%s396 + $0x64] sm:$0xf]
        %v497 = vld [vmem:[%s396 + $0x68] sm:$0xf]
        %v498 = vld [vmem:[%s396 + $0x6c] sm:$0xf]
        %v499 = vld [vmem:[%s396 + $0x70] sm:$0xf]
        %v500 = vld [vmem:[%s396 + $0x74] sm:$0xf]
        %v501 = vld [vmem:[%s396 + $0x78] sm:$0xf]
        %v502 = vld [vmem:[%s396 + $0x7c] sm:$0xf]
        %v503 = vld [vmem:[#allocation5] sm:$0xff]
        %v504 = vld [vmem:[#allocation5 + $0x8] sm:$0xff]
        %v505 = vld [vmem:[#allocation5 + $0x10] sm:$0xf]
        %v506 = vld [vmem:[#allocation5 + $0x14] sm:$0xff]
        %v507 = vld [vmem:[#allocation5 + $0x1c] sm:$0xff]
        %v508 = vld [vmem:[#allocation5 + $0x24] sm:$0xf]
        %v509 = vld [vmem:[#allocation5 + $0x28] sm:$0xff]
        %v510 = vld [vmem:[#allocation5 + $0x30] sm:$0xff]
        %v511 = vld [vmem:[#allocation5 + $0x38] sm:$0xf]
        %v512 = vld [vmem:[#allocation5 + $0x3c] sm:$0xff]
        %v513 = vld [vmem:[#allocation5 + $0x44] sm:$0xff]
        %v514 = vld [vmem:[#allocation5 + $0x4c] sm:$0xf]
        %v515 = vld [vmem:[#allocation5 + $0x50] sm:$0xff]
        %v516 = vld [vmem:[#allocation5 + $0x58] sm:$0xff]
        %v517 = vld [vmem:[#allocation5 + $0x60] sm:$0xf]
        %v518 = vld [vmem:[#allocation5 + $0x64] sm:$0xff]
        %v519 = vld [vmem:[#allocation5 + $0x6c] sm:$0xff]
        %v520 = vld [vmem:[#allocation5 + $0x74] sm:$0xf]
        %v521 = vld [vmem:[#allocation5 + $0x78] sm:$0xff]
        %v522 = vld [vmem:[#allocation5 + $0x80] sm:$0xff]
        %v523 = vld [vmem:[#allocation5 + $0x88] sm:$0xf]
        %v524 = vld [vmem:[#allocation5 + $0x8c] sm:$0xff]
        %v525 = vld [vmem:[#allocation5 + $0x94] sm:$0xff]
        %v526 = vld [vmem:[#allocation5 + $0x9c] sm:$0xf]
        %v527 = vld [vmem:[#allocation5 + $0xa0] sm:$0xff]
        %v528 = vld [vmem:[#allocation5 + $0xa8] sm:$0xff]
        %v529 = vld [vmem:[#allocation5 + $0xb0] sm:$0xf]
        %v530 = vld [vmem:[#allocation5 + $0xb4] sm:$0xff]
        %v531 = vld [vmem:[#allocation5 + $0xbc] sm:$0xff]
        %v532 = vld [vmem:[#allocation5 + $0xc4] sm:$0xf]
        %v533 = vld [vmem:[#allocation5 + $0xc8] sm:$0xff]
        %v534 = vld [vmem:[#allocation5 + $0xd0] sm:$0xff]
        %v535 = vld [vmem:[#allocation5 + $0xd8] sm:$0xf]
        %v536 = vld [vmem:[#allocation5 + $0xdc] sm:$0xff]
        %v537 = vld [vmem:[#allocation5 + $0xe4] sm:$0xff]
        %v538 = vld [vmem:[#allocation5 + $0xec] sm:$0xf]
        %v539 = vld [vmem:[#allocation5 + $0xf0] sm:$0xff]
        %v540 = vld [vmem:[#allocation5 + $0xf8] sm:$0xff]
        %v541 = vld [vmem:[#allocation5 + $0x100] sm:$0xf]
        %v542 = vld [vmem:[#allocation5 + $0x104] sm:$0xff]
        %v543 = vld [vmem:[#allocation5 + $0x10c] sm:$0xff]
        %v544 = vld [vmem:[#allocation5 + $0x114] sm:$0xf]
        %v545 = vld [vmem:[#allocation5 + $0x118] sm:$0xff]
        %v546 = vld [vmem:[#allocation5 + $0x120] sm:$0xff]
        %v547 = vld [vmem:[#allocation5 + $0x128] sm:$0xf]
        %v548 = vld [vmem:[#allocation5 + $0x12c] sm:$0xff]
        %v549 = vld [vmem:[#allocation5 + $0x134] sm:$0xff]
        %v550 = vld [vmem:[#allocation5 + $0x13c] sm:$0xf]
        %v583 = vunpack.c.l.b16 %v471
        %v584 = vunpack.c.l.b16 %v472
        %v585 = vunpack.c.l.b16 %v473
        %v586 = vunpack.c.l.b16 %v474
        %v587 = vunpack.c.l.b16 %v475
        %v588 = vunpack.c.l.b16 %v476
        %v589 = vunpack.c.l.b16 %v477
        %v590 = vunpack.c.l.b16 %v478
        %v591 = vunpack.c.l.b16 %v479
        %v592 = vunpack.c.l.b16 %v480
        %v593 = vunpack.c.l.b16 %v481
        %v594 = vunpack.c.l.b16 %v482
        %v595 = vunpack.c.l.b16 %v483
        %v596 = vunpack.c.l.b16 %v484
        %v597 = vunpack.c.l.b16 %v485
        %v598 = vunpack.c.l.b16 %v486
        %v599 = vunpack.c.l.b16 %v487
        %v600 = vunpack.c.l.b16 %v488
        %v601 = vunpack.c.l.b16 %v489
        %v602 = vunpack.c.l.b16 %v490
        %v603 = vunpack.c.l.b16 %v491
        %v604 = vunpack.c.l.b16 %v492
        %v605 = vunpack.c.l.b16 %v493
        %v606 = vunpack.c.l.b16 %v494
        %v607 = vunpack.c.l.b16 %v495
        %v608 = vunpack.c.l.b16 %v496
        %v609 = vunpack.c.l.b16 %v497
        %v610 = vunpack.c.l.b16 %v498
        %v611 = vunpack.c.l.b16 %v499
        %v612 = vunpack.c.l.b16 %v500
        %v613 = vunpack.c.l.b16 %v501
        %v614 = vunpack.c.l.b16 %v502
        %v615 = vpack.c.b16 %v584, %v583
        %v616 = vpack.c.b16 %v586, %v585
        %v617 = vpack.c.b16 %v588, %v587
        %v618 = vpack.c.b16 %v590, %v589
        %v619 = vpack.c.b16 %v592, %v591
        %v620 = vpack.c.b16 %v594, %v593
        %v621 = vpack.c.b16 %v596, %v595
        %v622 = vpack.c.b16 %v598, %v597
        %v623 = vpack.c.b16 %v600, %v599
        %v624 = vpack.c.b16 %v602, %v601
        %v625 = vpack.c.b16 %v604, %v603
        %v626 = vpack.c.b16 %v606, %v605
        %v627 = vpack.c.b16 %v608, %v607
        %v628 = vpack.c.b16 %v610, %v609
        %v629 = vpack.c.b16 %v612, %v611
        %v630 = vpack.c.b16 %v614, %v613
        %v695 = vunpack.c.l.b16 %v503
        %v696 = vunpack.c.h.b16 %v503
        %v697 = vunpack.c.l.b16 %v504
        %v698 = vunpack.c.h.b16 %v504
        %v699 = vunpack.c.l.b16 %v505
        %v700 = vunpack.c.l.b16 %v506
        %v701 = vunpack.c.h.b16 %v506
        %v702 = vunpack.c.l.b16 %v507
        %v703 = vunpack.c.h.b16 %v507
        %v704 = vunpack.c.l.b16 %v508
        %v705 = vunpack.c.l.b16 %v509
        %v706 = vunpack.c.h.b16 %v509
        %v707 = vunpack.c.l.b16 %v510
        %v708 = vunpack.c.h.b16 %v510
        %v709 = vunpack.c.l.b16 %v511
        %v710 = vunpack.c.l.b16 %v512
        %v711 = vunpack.c.h.b16 %v512
        %v712 = vunpack.c.l.b16 %v513
        %v713 = vunpack.c.h.b16 %v513
        %v714 = vunpack.c.l.b16 %v514
        %v715 = vunpack.c.l.b16 %v515
        %v716 = vunpack.c.h.b16 %v515
        %v717 = vunpack.c.l.b16 %v516
        %v718 = vunpack.c.h.b16 %v516
        %v719 = vunpack.c.l.b16 %v517
        %v720 = vunpack.c.l.b16 %v518
        %v721 = vunpack.c.h.b16 %v518
        %v722 = vunpack.c.l.b16 %v519
        %v723 = vunpack.c.h.b16 %v519
        %v724 = vunpack.c.l.b16 %v520
        %v725 = vunpack.c.l.b16 %v521
        %v726 = vunpack.c.h.b16 %v521
        %v727 = vunpack.c.l.b16 %v522
        %v728 = vunpack.c.h.b16 %v522
        %v729 = vunpack.c.l.b16 %v523
        %v730 = vunpack.c.l.b16 %v524
        %v731 = vunpack.c.h.b16 %v524
        %v732 = vunpack.c.l.b16 %v525
        %v733 = vunpack.c.h.b16 %v525
        %v734 = vunpack.c.l.b16 %v526
        %v735 = vunpack.c.l.b16 %v527
        %v736 = vunpack.c.h.b16 %v527
        %v737 = vunpack.c.l.b16 %v528
        %v738 = vunpack.c.h.b16 %v528
        %v739 = vunpack.c.l.b16 %v529
        %v740 = vunpack.c.l.b16 %v530
        %v741 = vunpack.c.h.b16 %v530
        %v742 = vunpack.c.l.b16 %v531
        %v743 = vunpack.c.h.b16 %v531
        %v744 = vunpack.c.l.b16 %v532
        %v745 = vunpack.c.l.b16 %v533
        %v746 = vunpack.c.h.b16 %v533
        %v747 = vunpack.c.l.b16 %v534
        %v748 = vunpack.c.h.b16 %v534
        %v749 = vunpack.c.l.b16 %v535
        %v750 = vunpack.c.l.b16 %v536
        %v751 = vunpack.c.h.b16 %v536
        %v752 = vunpack.c.l.b16 %v537
        %v753 = vunpack.c.h.b16 %v537
        %v754 = vunpack.c.l.b16 %v538
        %v755 = vunpack.c.l.b16 %v539
        %v756 = vunpack.c.h.b16 %v539
        %v757 = vunpack.c.l.b16 %v540
        %v758 = vunpack.c.h.b16 %v540
        %v759 = vunpack.c.l.b16 %v541
        %v760 = vunpack.c.l.b16 %v542
        %v761 = vunpack.c.h.b16 %v542
        %v762 = vunpack.c.l.b16 %v543
        %v763 = vunpack.c.h.b16 %v543
        %v764 = vunpack.c.l.b16 %v544
        %v765 = vunpack.c.l.b16 %v545
        %v766 = vunpack.c.h.b16 %v545
        %v767 = vunpack.c.l.b16 %v546
        %v768 = vunpack.c.h.b16 %v546
        %v769 = vunpack.c.l.b16 %v547
        %v770 = vunpack.c.l.b16 %v548
        %v771 = vunpack.c.h.b16 %v548
        %v772 = vunpack.c.l.b16 %v549
        %v773 = vunpack.c.h.b16 %v549
        %v774 = vunpack.c.l.b16 %v550
        %v775 = vpack.c.b16 %v700, %v695
        %v776 = vpack.c.b16 %v701, %v696
        %v777 = vpack.c.b16 %v702, %v697
        %v778 = vpack.c.b16 %v703, %v698
        %v779 = vpack.c.b16 %v704, %v699
        %v780 = vpack.c.b16 %v710, %v705
        %v781 = vpack.c.b16 %v711, %v706
        %v782 = vpack.c.b16 %v712, %v707
        %v783 = vpack.c.b16 %v713, %v708
        %v784 = vpack.c.b16 %v714, %v709
        %v785 = vpack.c.b16 %v720, %v715
        %v786 = vpack.c.b16 %v721, %v716
        %v787 = vpack.c.b16 %v722, %v717
        %v788 = vpack.c.b16 %v723, %v718
        %v789 = vpack.c.b16 %v724, %v719
        %v790 = vpack.c.b16 %v730, %v725
        %v791 = vpack.c.b16 %v731, %v726
        %v792 = vpack.c.b16 %v732, %v727
        %v793 = vpack.c.b16 %v733, %v728
        %v794 = vpack.c.b16 %v734, %v729
        %v795 = vpack.c.b16 %v740, %v735
        %v796 = vpack.c.b16 %v741, %v736
        %v797 = vpack.c.b16 %v742, %v737
        %v798 = vpack.c.b16 %v743, %v738
        %v799 = vpack.c.b16 %v744, %v739
        %v800 = vpack.c.b16 %v750, %v745
        %v801 = vpack.c.b16 %v751, %v746
        %v802 = vpack.c.b16 %v752, %v747
        %v803 = vpack.c.b16 %v753, %v748
        %v804 = vpack.c.b16 %v754, %v749
        %v805 = vpack.c.b16 %v760, %v755
        %v806 = vpack.c.b16 %v761, %v756
        %v807 = vpack.c.b16 %v762, %v757
        %v808 = vpack.c.b16 %v763, %v758
        %v809 = vpack.c.b16 %v764, %v759
        %v810 = vpack.c.b16 %v770, %v765
        %v811 = vpack.c.b16 %v771, %v766
        %v812 = vpack.c.b16 %v772, %v767
        %v813 = vpack.c.b16 %v773, %v768
        %v814 = vpack.c.b16 %v774, %v769
        %855 = vmatpush.bf16.msra.mxu0 %v810
        %856 = vmatpush.bf16.msra.mxu0 %v805
        %857 = vmatpush.bf16.msra.mxu0 %v800
        %858 = vmatpush.bf16.msra.mxu0 %v795
        %859 = vmatpush.bf16.msra.mxu0 %v790
        %860 = vmatpush.bf16.msra.mxu0 %v785
        %861 = vmatpush.bf16.msra.mxu0 %v780
        %862 = vmatpush.bf16.msra.mxu0 %v775
        %863 = vmatmul.bf16.gmra.mxu0 %v615
        %v864 = vpop.f32.mrf.mxu0
        %v865 = vadd.f32 0.0, %v864
        %v866 = vpop.f32.mrf.mxu0
        %v867 = vadd.f32 0.0, %v866
        %868 = vmatmul.bf16.gmra.mxu0 %v616
        %v869 = vpop.f32.mrf.mxu0
        %v870 = vadd.f32 0.0, %v869
        %v871 = vpop.f32.mrf.mxu0
        %v872 = vadd.f32 0.0, %v871
        %873 = vmatmul.bf16.gmra.mxu0 %v617
        %v874 = vpop.f32.mrf.mxu0
        %v875 = vadd.f32 0.0, %v874
        %v876 = vpop.f32.mrf.mxu0
        %v877 = vadd.f32 0.0, %v876
        %878 = vmatmul.bf16.gmra.mxu0 %v618
        %v879 = vpop.f32.mrf.mxu0
        %v880 = vadd.f32 0.0, %v879
        %v881 = vpop.f32.mrf.mxu0
        %v882 = vadd.f32 0.0, %v881
        %883 = vmatmul.bf16.gmra.mxu0 %v619
        %v884 = vpop.f32.mrf.mxu0
        %v885 = vadd.f32 0.0, %v884
        %v886 = vpop.f32.mrf.mxu0
        %v887 = vadd.f32 0.0, %v886
        %888 = vmatmul.bf16.gmra.mxu0 %v620
        %v889 = vpop.f32.mrf.mxu0
        %v890 = vadd.f32 0.0, %v889
        %v891 = vpop.f32.mrf.mxu0
        %v892 = vadd.f32 0.0, %v891
        %893 = vmatmul.bf16.gmra.mxu0 %v621
        %v894 = vpop.f32.mrf.mxu0
        %v895 = vadd.f32 0.0, %v894
        %v896 = vpop.f32.mrf.mxu0
        %v897 = vadd.f32 0.0, %v896
        %898 = vmatmul.bf16.gmra.mxu0 %v622
        %v899 = vpop.f32.mrf.mxu0
        %v900 = vadd.f32 0.0, %v899
        %v901 = vpop.f32.mrf.mxu0
        %v902 = vadd.f32 0.0, %v901
        %903 = vmatmul.bf16.gmra.mxu0 %v623
        %v904 = vpop.f32.mrf.mxu0
        %v905 = vadd.f32 0.0, %v904
        %v906 = vpop.f32.mrf.mxu0
        %v907 = vadd.f32 0.0, %v906
        %908 = vmatmul.bf16.gmra.mxu0 %v624
        %v909 = vpop.f32.mrf.mxu0
        %v910 = vadd.f32 0.0, %v909
        %v911 = vpop.f32.mrf.mxu0
        %v912 = vadd.f32 0.0, %v911
        %913 = vmatmul.bf16.gmra.mxu0 %v625
        %v914 = vpop.f32.mrf.mxu0
        %v915 = vadd.f32 0.0, %v914
        %v916 = vpop.f32.mrf.mxu0
        %v917 = vadd.f32 0.0, %v916
        %918 = vmatmul.bf16.gmra.mxu0 %v626
        %v919 = vpop.f32.mrf.mxu0
        %v920 = vadd.f32 0.0, %v919
        %v921 = vpop.f32.mrf.mxu0
        %v922 = vadd.f32 0.0, %v921
        %923 = vmatmul.bf16.gmra.mxu0 %v627
        %v924 = vpop.f32.mrf.mxu0
        %v925 = vadd.f32 0.0, %v924
        %v926 = vpop.f32.mrf.mxu0
        %v927 = vadd.f32 0.0, %v926
        %928 = vmatmul.bf16.gmra.mxu0 %v628
        %v929 = vpop.f32.mrf.mxu0
        %v930 = vadd.f32 0.0, %v929
        %v931 = vpop.f32.mrf.mxu0
        %v932 = vadd.f32 0.0, %v931
        %933 = vmatmul.bf16.gmra.mxu0 %v629
        %v934 = vpop.f32.mrf.mxu0
        %v935 = vadd.f32 0.0, %v934
        %v936 = vpop.f32.mrf.mxu0
        %v937 = vadd.f32 0.0, %v936
        %938 = vmatmul.bf16.gmra.mxu0 %v630
        %v939 = vpop.f32.mrf.mxu0
        %v940 = vadd.f32 0.0, %v939
        %v941 = vpop.f32.mrf.mxu0
        %v942 = vadd.f32 0.0, %v941
        %943 = vdwg.mxu0
        %944 = vmatpush.bf16.msra.mxu0 %v811
        %945 = vmatpush.bf16.msra.mxu0 %v806
        %946 = vmatpush.bf16.msra.mxu0 %v801
        %947 = vmatpush.bf16.msra.mxu0 %v796
        %948 = vmatpush.bf16.msra.mxu0 %v791
        %949 = vmatpush.bf16.msra.mxu0 %v786
        %950 = vmatpush.bf16.msra.mxu0 %v781
        %951 = vmatpush.bf16.msra.mxu0 %v776
        %952 = vmatmul.bf16.gmra.mxu0 %v615
        %v953 = vpop.f32.mrf.mxu0
        %v954 = vadd.f32 0.0, %v953
        %v955 = vpop.f32.mrf.mxu0
        %v956 = vadd.f32 0.0, %v955
        %957 = vmatmul.bf16.gmra.mxu0 %v616
        %v958 = vpop.f32.mrf.mxu0
        %v959 = vadd.f32 0.0, %v958
        %v960 = vpop.f32.mrf.mxu0
        %v961 = vadd.f32 0.0, %v960
        %962 = vmatmul.bf16.gmra.mxu0 %v617
        %v963 = vpop.f32.mrf.mxu0
        %v964 = vadd.f32 0.0, %v963
        %v965 = vpop.f32.mrf.mxu0
        %v966 = vadd.f32 0.0, %v965
        %967 = vmatmul.bf16.gmra.mxu0 %v618
        %v968 = vpop.f32.mrf.mxu0
        %v969 = vadd.f32 0.0, %v968
        %v970 = vpop.f32.mrf.mxu0
        %v971 = vadd.f32 0.0, %v970
        %972 = vmatmul.bf16.gmra.mxu0 %v619
        %v973 = vpop.f32.mrf.mxu0
        %v974 = vadd.f32 0.0, %v973
        %v975 = vpop.f32.mrf.mxu0
        %v976 = vadd.f32 0.0, %v975
        %977 = vmatmul.bf16.gmra.mxu0 %v620
        %v978 = vpop.f32.mrf.mxu0
        %v979 = vadd.f32 0.0, %v978
        %v980 = vpop.f32.mrf.mxu0
        %v981 = vadd.f32 0.0, %v980
        %982 = vmatmul.bf16.gmra.mxu0 %v621
        %v983 = vpop.f32.mrf.mxu0
        %v984 = vadd.f32 0.0, %v983
        %v985 = vpop.f32.mrf.mxu0
        %v986 = vadd.f32 0.0, %v985
        %987 = vmatmul.bf16.gmra.mxu0 %v622
        %v988 = vpop.f32.mrf.mxu0
        %v989 = vadd.f32 0.0, %v988
        %v990 = vpop.f32.mrf.mxu0
        %v991 = vadd.f32 0.0, %v990
        %992 = vmatmul.bf16.gmra.mxu0 %v623
        %v993 = vpop.f32.mrf.mxu0
        %v994 = vadd.f32 0.0, %v993
        %v995 = vpop.f32.mrf.mxu0
        %v996 = vadd.f32 0.0, %v995
        %997 = vmatmul.bf16.gmra.mxu0 %v624
        %v998 = vpop.f32.mrf.mxu0
        %v999 = vadd.f32 0.0, %v998
        %v1000 = vpop.f32.mrf.mxu0
        %v1001 = vadd.f32 0.0, %v1000
        %1002 = vmatmul.bf16.gmra.mxu0 %v625
        %v1003 = vpop.f32.mrf.mxu0
        %v1004 = vadd.f32 0.0, %v1003
        %v1005 = vpop.f32.mrf.mxu0
        %v1006 = vadd.f32 0.0, %v1005
        %1007 = vmatmul.bf16.gmra.mxu0 %v626
        %v1008 = vpop.f32.mrf.mxu0
        %v1009 = vadd.f32 0.0, %v1008
        %v1010 = vpop.f32.mrf.mxu0
        %v1011 = vadd.f32 0.0, %v1010
        %1012 = vmatmul.bf16.gmra.mxu0 %v627
        %v1013 = vpop.f32.mrf.mxu0
        %v1014 = vadd.f32 0.0, %v1013
        %v1015 = vpop.f32.mrf.mxu0
        %v1016 = vadd.f32 0.0, %v1015
        %1017 = vmatmul.bf16.gmra.mxu0 %v628
        %v1018 = vpop.f32.mrf.mxu0
        %v1019 = vadd.f32 0.0, %v1018
        %v1020 = vpop.f32.mrf.mxu0
        %v1021 = vadd.f32 0.0, %v1020
        %1022 = vmatmul.bf16.gmra.mxu0 %v629
        %v1023 = vpop.f32.mrf.mxu0
        %v1024 = vadd.f32 0.0, %v1023
        %v1025 = vpop.f32.mrf.mxu0
        %v1026 = vadd.f32 0.0, %v1025
        %1027 = vmatmul.bf16.gmra.mxu0 %v630
        %v1028 = vpop.f32.mrf.mxu0
        %v1029 = vadd.f32 0.0, %v1028
        %v1030 = vpop.f32.mrf.mxu0
        %v1031 = vadd.f32 0.0, %v1030
        %1032 = vdwg.mxu0
        %1033 = vmatpush.bf16.msra.mxu0 %v812
        %1034 = vmatpush.bf16.msra.mxu0 %v807
        %1035 = vmatpush.bf16.msra.mxu0 %v802
        %1036 = vmatpush.bf16.msra.mxu0 %v797
        %1037 = vmatpush.bf16.msra.mxu0 %v792
        %1038 = vmatpush.bf16.msra.mxu0 %v787
        %1039 = vmatpush.bf16.msra.mxu0 %v782
        %1040 = vmatpush.bf16.msra.mxu0 %v777
        %1041 = vmatmul.bf16.gmra.mxu0 %v615
        %v1042 = vpop.f32.mrf.mxu0
        %v1043 = vadd.f32 0.0, %v1042
        %v1044 = vpop.f32.mrf.mxu0
        %v1045 = vadd.f32 0.0, %v1044
        %1046 = vmatmul.bf16.gmra.mxu0 %v616
        %v1047 = vpop.f32.mrf.mxu0
        %v1048 = vadd.f32 0.0, %v1047
        %v1049 = vpop.f32.mrf.mxu0
        %v1050 = vadd.f32 0.0, %v1049
        %1051 = vmatmul.bf16.gmra.mxu0 %v617
        %v1052 = vpop.f32.mrf.mxu0
        %v1053 = vadd.f32 0.0, %v1052
        %v1054 = vpop.f32.mrf.mxu0
        %v1055 = vadd.f32 0.0, %v1054
        %1056 = vmatmul.bf16.gmra.mxu0 %v618
        %v1057 = vpop.f32.mrf.mxu0
        %v1058 = vadd.f32 0.0, %v1057
        %v1059 = vpop.f32.mrf.mxu0
        %v1060 = vadd.f32 0.0, %v1059
        %1061 = vmatmul.bf16.gmra.mxu0 %v619
        %v1062 = vpop.f32.mrf.mxu0
        %v1063 = vadd.f32 0.0, %v1062
        %v1064 = vpop.f32.mrf.mxu0
        %v1065 = vadd.f32 0.0, %v1064
        %1066 = vmatmul.bf16.gmra.mxu0 %v620
        %v1067 = vpop.f32.mrf.mxu0
        %v1068 = vadd.f32 0.0, %v1067
        %v1069 = vpop.f32.mrf.mxu0
        %v1070 = vadd.f32 0.0, %v1069
        %1071 = vmatmul.bf16.gmra.mxu0 %v621
        %v1072 = vpop.f32.mrf.mxu0
        %v1073 = vadd.f32 0.0, %v1072
        %v1074 = vpop.f32.mrf.mxu0
        %v1075 = vadd.f32 0.0, %v1074
        %1076 = vmatmul.bf16.gmra.mxu0 %v622
        %v1077 = vpop.f32.mrf.mxu0
        %v1078 = vadd.f32 0.0, %v1077
        %v1079 = vpop.f32.mrf.mxu0
        %v1080 = vadd.f32 0.0, %v1079
        %1081 = vmatmul.bf16.gmra.mxu0 %v623
        %v1082 = vpop.f32.mrf.mxu0
        %v1083 = vadd.f32 0.0, %v1082
        %v1084 = vpop.f32.mrf.mxu0
        %v1085 = vadd.f32 0.0, %v1084
        %1086 = vmatmul.bf16.gmra.mxu0 %v624
        %v1087 = vpop.f32.mrf.mxu0
        %v1088 = vadd.f32 0.0, %v1087
        %v1089 = vpop.f32.mrf.mxu0
        %v1090 = vadd.f32 0.0, %v1089
        %1091 = vmatmul.bf16.gmra.mxu0 %v625
        %v1092 = vpop.f32.mrf.mxu0
        %v1093 = vadd.f32 0.0, %v1092
        %v1094 = vpop.f32.mrf.mxu0
        %v1095 = vadd.f32 0.0, %v1094
        %1096 = vmatmul.bf16.gmra.mxu0 %v626
        %v1097 = vpop.f32.mrf.mxu0
        %v1098 = vadd.f32 0.0, %v1097
        %v1099 = vpop.f32.mrf.mxu0
        %v1100 = vadd.f32 0.0, %v1099
        %1101 = vmatmul.bf16.gmra.mxu0 %v627
        %v1102 = vpop.f32.mrf.mxu0
        %v1103 = vadd.f32 0.0, %v1102
        %v1104 = vpop.f32.mrf.mxu0
        %v1105 = vadd.f32 0.0, %v1104
        %1106 = vmatmul.bf16.gmra.mxu0 %v628
        %v1107 = vpop.f32.mrf.mxu0
        %v1108 = vadd.f32 0.0, %v1107
        %v1109 = vpop.f32.mrf.mxu0
        %v1110 = vadd.f32 0.0, %v1109
        %1111 = vmatmul.bf16.gmra.mxu0 %v629
        %v1112 = vpop.f32.mrf.mxu0
        %v1113 = vadd.f32 0.0, %v1112
        %v1114 = vpop.f32.mrf.mxu0
        %v1115 = vadd.f32 0.0, %v1114
        %1116 = vmatmul.bf16.gmra.mxu0 %v630
        %v1117 = vpop.f32.mrf.mxu0
        %v1118 = vadd.f32 0.0, %v1117
        %v1119 = vpop.f32.mrf.mxu0
        %v1120 = vadd.f32 0.0, %v1119
        %1121 = vdwg.mxu0
        %1122 = vmatpush.bf16.msra.mxu0 %v813
        %1123 = vmatpush.bf16.msra.mxu0 %v808
        %1124 = vmatpush.bf16.msra.mxu0 %v803
        %1125 = vmatpush.bf16.msra.mxu0 %v798
        %1126 = vmatpush.bf16.msra.mxu0 %v793
        %1127 = vmatpush.bf16.msra.mxu0 %v788
        %1128 = vmatpush.bf16.msra.mxu0 %v783
        %1129 = vmatpush.bf16.msra.mxu0 %v778
        %1130 = vmatmul.bf16.gmra.mxu0 %v615
        %v1131 = vpop.f32.mrf.mxu0
        %v1132 = vadd.f32 0.0, %v1131
        %v1133 = vpop.f32.mrf.mxu0
        %v1134 = vadd.f32 0.0, %v1133
        %1135 = vmatmul.bf16.gmra.mxu0 %v616
        %v1136 = vpop.f32.mrf.mxu0
        %v1137 = vadd.f32 0.0, %v1136
        %v1138 = vpop.f32.mrf.mxu0
        %v1139 = vadd.f32 0.0, %v1138
        %1140 = vmatmul.bf16.gmra.mxu0 %v617
        %v1141 = vpop.f32.mrf.mxu0
        %v1142 = vadd.f32 0.0, %v1141
        %v1143 = vpop.f32.mrf.mxu0
        %v1144 = vadd.f32 0.0, %v1143
        %1145 = vmatmul.bf16.gmra.mxu0 %v618
        %v1146 = vpop.f32.mrf.mxu0
        %v1147 = vadd.f32 0.0, %v1146
        %v1148 = vpop.f32.mrf.mxu0
        %v1149 = vadd.f32 0.0, %v1148
        %1150 = vmatmul.bf16.gmra.mxu0 %v619
        %v1151 = vpop.f32.mrf.mxu0
        %v1152 = vadd.f32 0.0, %v1151
        %v1153 = vpop.f32.mrf.mxu0
        %v1154 = vadd.f32 0.0, %v1153
        %1155 = vmatmul.bf16.gmra.mxu0 %v620
        %v1156 = vpop.f32.mrf.mxu0
        %v1157 = vadd.f32 0.0, %v1156
        %v1158 = vpop.f32.mrf.mxu0
        %v1159 = vadd.f32 0.0, %v1158
        %1160 = vmatmul.bf16.gmra.mxu0 %v621
        %v1161 = vpop.f32.mrf.mxu0
        %v1162 = vadd.f32 0.0, %v1161
        %v1163 = vpop.f32.mrf.mxu0
        %v1164 = vadd.f32 0.0, %v1163
        %1165 = vmatmul.bf16.gmra.mxu0 %v622
        %v1166 = vpop.f32.mrf.mxu0
        %v1167 = vadd.f32 0.0, %v1166
        %v1168 = vpop.f32.mrf.mxu0
        %v1169 = vadd.f32 0.0, %v1168
        %1170 = vmatmul.bf16.gmra.mxu0 %v623
        %v1171 = vpop.f32.mrf.mxu0
        %v1172 = vadd.f32 0.0, %v1171
        %v1173 = vpop.f32.mrf.mxu0
        %v1174 = vadd.f32 0.0, %v1173
        %1175 = vmatmul.bf16.gmra.mxu0 %v624
        %v1176 = vpop.f32.mrf.mxu0
        %v1177 = vadd.f32 0.0, %v1176
        %v1178 = vpop.f32.mrf.mxu0
        %v1179 = vadd.f32 0.0, %v1178
        %1180 = vmatmul.bf16.gmra.mxu0 %v625
        %v1181 = vpop.f32.mrf.mxu0
        %v1182 = vadd.f32 0.0, %v1181
        %v1183 = vpop.f32.mrf.mxu0
        %v1184 = vadd.f32 0.0, %v1183
        %1185 = vmatmul.bf16.gmra.mxu0 %v626
        %v1186 = vpop.f32.mrf.mxu0
        %v1187 = vadd.f32 0.0, %v1186
        %v1188 = vpop.f32.mrf.mxu0
        %v1189 = vadd.f32 0.0, %v1188
        %1190 = vmatmul.bf16.gmra.mxu0 %v627
        %v1191 = vpop.f32.mrf.mxu0
        %v1192 = vadd.f32 0.0, %v1191
        %v1193 = vpop.f32.mrf.mxu0
        %v1194 = vadd.f32 0.0, %v1193
        %1195 = vmatmul.bf16.gmra.mxu0 %v628
        %v1196 = vpop.f32.mrf.mxu0
        %v1197 = vadd.f32 0.0, %v1196
        %v1198 = vpop.f32.mrf.mxu0
        %v1199 = vadd.f32 0.0, %v1198
        %1200 = vmatmul.bf16.gmra.mxu0 %v629
        %v1201 = vpop.f32.mrf.mxu0
        %v1202 = vadd.f32 0.0, %v1201
        %v1203 = vpop.f32.mrf.mxu0
        %v1204 = vadd.f32 0.0, %v1203
        %1205 = vmatmul.bf16.gmra.mxu0 %v630
        %v1206 = vpop.f32.mrf.mxu0
        %v1207 = vadd.f32 0.0, %v1206
        %v1208 = vpop.f32.mrf.mxu0
        %v1209 = vadd.f32 0.0, %v1208
        %1210 = vdwg.mxu0
        %1211 = vmatpush.bf16.msra.mxu0 %v814
        %1212 = vmatpush.bf16.msra.mxu0 %v809
        %1213 = vmatpush.bf16.msra.mxu0 %v804
        %1214 = vmatpush.bf16.msra.mxu0 %v799
        %1215 = vmatpush.bf16.msra.mxu0 %v794
        %1216 = vmatpush.bf16.msra.mxu0 %v789
        %1217 = vmatpush.bf16.msra.mxu0 %v784
        %1218 = vmatpush.bf16.msra.mxu0 %v779
        %1219 = vmatmul.bf16.gmra.mxu0 %v615
        %v1220 = vpop.f32.mrf.mxu0
        %v1221 = vadd.f32 0.0, %v1220
        %v1222 = vpop.f32.mrf.mxu0
        %v1223 = vadd.f32 0.0, %v1222
        %1224 = vmatmul.bf16.gmra.mxu0 %v616
        %v1225 = vpop.f32.mrf.mxu0
        %v1226 = vadd.f32 0.0, %v1225
        %v1227 = vpop.f32.mrf.mxu0
        %v1228 = vadd.f32 0.0, %v1227
        %1229 = vmatmul.bf16.gmra.mxu0 %v617
        %v1230 = vpop.f32.mrf.mxu0
        %v1231 = vadd.f32 0.0, %v1230
        %v1232 = vpop.f32.mrf.mxu0
        %v1233 = vadd.f32 0.0, %v1232
        %1234 = vmatmul.bf16.gmra.mxu0 %v618
        %v1235 = vpop.f32.mrf.mxu0
        %v1236 = vadd.f32 0.0, %v1235
        %v1237 = vpop.f32.mrf.mxu0
        %v1238 = vadd.f32 0.0, %v1237
        %1239 = vmatmul.bf16.gmra.mxu0 %v619
        %v1240 = vpop.f32.mrf.mxu0
        %v1241 = vadd.f32 0.0, %v1240
        %v1242 = vpop.f32.mrf.mxu0
        %v1243 = vadd.f32 0.0, %v1242
        %1244 = vmatmul.bf16.gmra.mxu0 %v620
        %v1245 = vpop.f32.mrf.mxu0
        %v1246 = vadd.f32 0.0, %v1245
        %v1247 = vpop.f32.mrf.mxu0
        %v1248 = vadd.f32 0.0, %v1247
        %1249 = vmatmul.bf16.gmra.mxu0 %v621
        %v1250 = vpop.f32.mrf.mxu0
        %v1251 = vadd.f32 0.0, %v1250
        %v1252 = vpop.f32.mrf.mxu0
        %v1253 = vadd.f32 0.0, %v1252
        %1254 = vmatmul.bf16.gmra.mxu0 %v622
        %v1255 = vpop.f32.mrf.mxu0
        %v1256 = vadd.f32 0.0, %v1255
        %v1257 = vpop.f32.mrf.mxu0
        %v1258 = vadd.f32 0.0, %v1257
        %1259 = vmatmul.bf16.gmra.mxu0 %v623
        %v1260 = vpop.f32.mrf.mxu0
        %v1261 = vadd.f32 0.0, %v1260
        %v1262 = vpop.f32.mrf.mxu0
        %v1263 = vadd.f32 0.0, %v1262
        %1264 = vmatmul.bf16.gmra.mxu0 %v624
        %v1265 = vpop.f32.mrf.mxu0
        %v1266 = vadd.f32 0.0, %v1265
        %v1267 = vpop.f32.mrf.mxu0
        %v1268 = vadd.f32 0.0, %v1267
        %1269 = vmatmul.bf16.gmra.mxu0 %v625
        %v1270 = vpop.f32.mrf.mxu0
        %v1271 = vadd.f32 0.0, %v1270
        %v1272 = vpop.f32.mrf.mxu0
        %v1273 = vadd.f32 0.0, %v1272
        %1274 = vmatmul.bf16.gmra.mxu0 %v626
        %v1275 = vpop.f32.mrf.mxu0
        %v1276 = vadd.f32 0.0, %v1275
        %v1277 = vpop.f32.mrf.mxu0
        %v1278 = vadd.f32 0.0, %v1277
        %1279 = vmatmul.bf16.gmra.mxu0 %v627
        %v1280 = vpop.f32.mrf.mxu0
        %v1281 = vadd.f32 0.0, %v1280
        %v1282 = vpop.f32.mrf.mxu0
        %v1283 = vadd.f32 0.0, %v1282
        %1284 = vmatmul.bf16.gmra.mxu0 %v628
        %v1285 = vpop.f32.mrf.mxu0
        %v1286 = vadd.f32 0.0, %v1285
        %v1287 = vpop.f32.mrf.mxu0
        %v1288 = vadd.f32 0.0, %v1287
        %1289 = vmatmul.bf16.gmra.mxu0 %v629
        %v1290 = vpop.f32.mrf.mxu0
        %v1291 = vadd.f32 0.0, %v1290
        %v1292 = vpop.f32.mrf.mxu0
        %v1293 = vadd.f32 0.0, %v1292
        %1294 = vmatmul.bf16.gmra.mxu0 %v630
        %v1295 = vpop.f32.mrf.mxu0
        %v1296 = vadd.f32 0.0, %v1295
        %v1297 = vpop.f32.mrf.mxu0
        %v1298 = vadd.f32 0.0, %v1297
        %1299 = vdwg.mxu0
        %v1300 = vld [vmem:[#allocation10] sm:$0xf]
        %v1301 = vld [vmem:[#allocation10 + $0x4] sm:$0xf]
        %v1302 = vld [vmem:[#allocation10 + $0x8] sm:$0xf]
        %v1303 = vld [vmem:[#allocation10 + $0xc] sm:$0xf]
        %v1304 = vld [vmem:[#allocation10 + $0x10] sm:$0xf]
        %v1305 = vld [vmem:[#allocation10 + $0x14] sm:$0xf]
        %v1306 = vld [vmem:[#allocation10 + $0x18] sm:$0xf]
        %v1307 = vld [vmem:[#allocation10 + $0x1c] sm:$0xf]
        %v1308 = vld [vmem:[#allocation10 + $0x20] sm:$0xf]
        %v1309 = vld [vmem:[#allocation10 + $0x24] sm:$0xf]
        %v1310 = vld [vmem:[#allocation10 + $0x28] sm:$0xf]
        %v1311 = vld [vmem:[#allocation10 + $0x2c] sm:$0xf]
        %v1312 = vld [vmem:[#allocation10 + $0x30] sm:$0xf]
        %v1313 = vld [vmem:[#allocation10 + $0x34] sm:$0xf]
        %v1314 = vld [vmem:[#allocation10 + $0x38] sm:$0xf]
        %v1315 = vld [vmem:[#allocation10 + $0x3c] sm:$0xf]
        %v1316 = vld [vmem:[#allocation10 + $0x40] sm:$0xf]
        %v1317 = vld [vmem:[#allocation10 + $0x44] sm:$0xf]
        %v1318 = vld [vmem:[#allocation10 + $0x48] sm:$0xf]
        %v1319 = vld [vmem:[#allocation10 + $0x4c] sm:$0xf]
        %v1320 = vld [vmem:[#allocation10 + $0x50] sm:$0xf]
        %v1321 = vld [vmem:[#allocation10 + $0x54] sm:$0xf]
        %v1322 = vld [vmem:[#allocation10 + $0x58] sm:$0xf]
        %v1323 = vld [vmem:[#allocation10 + $0x5c] sm:$0xf]
        %v1324 = vld [vmem:[#allocation10 + $0x60] sm:$0xf]
        %v1325 = vld [vmem:[#allocation10 + $0x64] sm:$0xf]
        %v1326 = vld [vmem:[#allocation10 + $0x68] sm:$0xf]
        %v1327 = vld [vmem:[#allocation10 + $0x6c] sm:$0xf]
        %v1328 = vld [vmem:[#allocation10 + $0x70] sm:$0xf]
        %v1329 = vld [vmem:[#allocation10 + $0x74] sm:$0xf]
        %v1330 = vld [vmem:[#allocation10 + $0x78] sm:$0xf]
        %v1331 = vld [vmem:[#allocation10 + $0x7c] sm:$0xf]
        %v1332 = vunpack.c.l.bf16 %v1300
        %v1333 = vunpack.c.l.bf16 %v1301
        %v1334 = vunpack.c.l.bf16 %v1302
        %v1335 = vunpack.c.l.bf16 %v1303
        %v1336 = vunpack.c.l.bf16 %v1304
        %v1337 = vunpack.c.l.bf16 %v1305
        %v1338 = vunpack.c.l.bf16 %v1306
        %v1339 = vunpack.c.l.bf16 %v1307
        %v1340 = vunpack.c.l.bf16 %v1308
        %v1341 = vunpack.c.l.bf16 %v1309
        %v1342 = vunpack.c.l.bf16 %v1310
        %v1343 = vunpack.c.l.bf16 %v1311
        %v1344 = vunpack.c.l.bf16 %v1312
        %v1345 = vunpack.c.l.bf16 %v1313
        %v1346 = vunpack.c.l.bf16 %v1314
        %v1347 = vunpack.c.l.bf16 %v1315
        %v1348 = vunpack.c.l.bf16 %v1316
        %v1349 = vunpack.c.l.bf16 %v1317
        %v1350 = vunpack.c.l.bf16 %v1318
        %v1351 = vunpack.c.l.bf16 %v1319
        %v1352 = vunpack.c.l.bf16 %v1320
        %v1353 = vunpack.c.l.bf16 %v1321
        %v1354 = vunpack.c.l.bf16 %v1322
        %v1355 = vunpack.c.l.bf16 %v1323
        %v1356 = vunpack.c.l.bf16 %v1324
        %v1357 = vunpack.c.l.bf16 %v1325
        %v1358 = vunpack.c.l.bf16 %v1326
        %v1359 = vunpack.c.l.bf16 %v1327
        %v1360 = vunpack.c.l.bf16 %v1328
        %v1361 = vunpack.c.l.bf16 %v1329
        %v1362 = vunpack.c.l.bf16 %v1330
        %v1363 = vunpack.c.l.bf16 %v1331
        %v1364 = vld [vmem:[#allocation11] sm:$0xf]
        %v1365 = vld [vmem:[#allocation11 + $0x4] sm:$0xf]
        %v1366 = vld [vmem:[#allocation11 + $0x8] sm:$0xf]
        %v1367 = vld [vmem:[#allocation11 + $0xc] sm:$0xf]
        %v1368 = vld [vmem:[#allocation11 + $0x10] sm:$0xf]
        %v1369 = vld [vmem:[#allocation11 + $0x14] sm:$0xf]
        %v1370 = vld [vmem:[#allocation11 + $0x18] sm:$0xf]
        %v1371 = vld [vmem:[#allocation11 + $0x1c] sm:$0xf]
        %v1372 = vld [vmem:[#allocation11 + $0x20] sm:$0xf]
        %v1373 = vld [vmem:[#allocation11 + $0x24] sm:$0xf]
        %v1374 = vld [vmem:[#allocation11 + $0x28] sm:$0xf]
        %v1375 = vld [vmem:[#allocation11 + $0x2c] sm:$0xf]
        %v1376 = vld [vmem:[#allocation11 + $0x30] sm:$0xf]
        %v1377 = vld [vmem:[#allocation11 + $0x34] sm:$0xf]
        %v1378 = vld [vmem:[#allocation11 + $0x38] sm:$0xf]
        %v1379 = vld [vmem:[#allocation11 + $0x3c] sm:$0xf]
        %v1380 = vld [vmem:[#allocation11 + $0x40] sm:$0xf]
        %v1381 = vld [vmem:[#allocation11 + $0x44] sm:$0xf]
        %v1382 = vld [vmem:[#allocation11 + $0x48] sm:$0xf]
        %v1383 = vld [vmem:[#allocation11 + $0x4c] sm:$0xf]
        %v1384 = vld [vmem:[#allocation11 + $0x50] sm:$0xf]
        %v1385 = vld [vmem:[#allocation11 + $0x54] sm:$0xf]
        %v1386 = vld [vmem:[#allocation11 + $0x58] sm:$0xf]
        %v1387 = vld [vmem:[#allocation11 + $0x5c] sm:$0xf]
        %v1388 = vld [vmem:[#allocation11 + $0x60] sm:$0xf]
        %v1389 = vld [vmem:[#allocation11 + $0x64] sm:$0xf]
        %v1390 = vld [vmem:[#allocation11 + $0x68] sm:$0xf]
        %v1391 = vld [vmem:[#allocation11 + $0x6c] sm:$0xf]
        %v1392 = vld [vmem:[#allocation11 + $0x70] sm:$0xf]
        %v1393 = vld [vmem:[#allocation11 + $0x74] sm:$0xf]
        %v1394 = vld [vmem:[#allocation11 + $0x78] sm:$0xf]
        %v1395 = vld [vmem:[#allocation11 + $0x7c] sm:$0xf]
        %v1396 = vunpack.c.l.bf16 %v1364
        %v1397 = vunpack.c.l.bf16 %v1365
        %v1398 = vunpack.c.l.bf16 %v1366
        %v1399 = vunpack.c.l.bf16 %v1367
        %v1400 = vunpack.c.l.bf16 %v1368
        %v1401 = vunpack.c.l.bf16 %v1369
        %v1402 = vunpack.c.l.bf16 %v1370
        %v1403 = vunpack.c.l.bf16 %v1371
        %v1404 = vunpack.c.l.bf16 %v1372
        %v1405 = vunpack.c.l.bf16 %v1373
        %v1406 = vunpack.c.l.bf16 %v1374
        %v1407 = vunpack.c.l.bf16 %v1375
        %v1408 = vunpack.c.l.bf16 %v1376
        %v1409 = vunpack.c.l.bf16 %v1377
        %v1410 = vunpack.c.l.bf16 %v1378
        %v1411 = vunpack.c.l.bf16 %v1379
        %v1412 = vunpack.c.l.bf16 %v1380
        %v1413 = vunpack.c.l.bf16 %v1381
        %v1414 = vunpack.c.l.bf16 %v1382
        %v1415 = vunpack.c.l.bf16 %v1383
        %v1416 = vunpack.c.l.bf16 %v1384
        %v1417 = vunpack.c.l.bf16 %v1385
        %v1418 = vunpack.c.l.bf16 %v1386
        %v1419 = vunpack.c.l.bf16 %v1387
        %v1420 = vunpack.c.l.bf16 %v1388
        %v1421 = vunpack.c.l.bf16 %v1389
        %v1422 = vunpack.c.l.bf16 %v1390
        %v1423 = vunpack.c.l.bf16 %v1391
        %v1424 = vunpack.c.l.bf16 %v1392
        %v1425 = vunpack.c.l.bf16 %v1393
        %v1426 = vunpack.c.l.bf16 %v1394
        %v1427 = vunpack.c.l.bf16 %v1395
        %v1428 = vmul.f32 %v865, %v865
        %v1429 = vmul.f32 %v867, %v867
        %v1430 = vmul.f32 %v870, %v870
        %v1431 = vmul.f32 %v872, %v872
        %v1432 = vmul.f32 %v875, %v875
        %v1433 = vmul.f32 %v877, %v877
        %v1434 = vmul.f32 %v880, %v880
        %v1435 = vmul.f32 %v882, %v882
        %v1436 = vmul.f32 %v885, %v885
        %v1437 = vmul.f32 %v887, %v887
        %v1438 = vmul.f32 %v890, %v890
        %v1439 = vmul.f32 %v892, %v892
        %v1440 = vmul.f32 %v895, %v895
        %v1441 = vmul.f32 %v897, %v897
        %v1442 = vmul.f32 %v900, %v900
        %v1443 = vmul.f32 %v902, %v902
        %v1444 = vmul.f32 %v905, %v905
        %v1445 = vmul.f32 %v907, %v907
        %v1446 = vmul.f32 %v910, %v910
        %v1447 = vmul.f32 %v912, %v912
        %v1448 = vmul.f32 %v915, %v915
        %v1449 = vmul.f32 %v917, %v917
        %v1450 = vmul.f32 %v920, %v920
        %v1451 = vmul.f32 %v922, %v922
        %v1452 = vmul.f32 %v925, %v925
        %v1453 = vmul.f32 %v927, %v927
        %v1454 = vmul.f32 %v930, %v930
        %v1455 = vmul.f32 %v932, %v932
        %v1456 = vmul.f32 %v935, %v935
        %v1457 = vmul.f32 %v937, %v937
        %v1458 = vmul.f32 %v940, %v940
        %v1459 = vmul.f32 %v942, %v942
        %v1460 = vpack.c.bf16 %v1429, %v1428
        %v1461 = vpack.c.bf16 %v1431, %v1430
        %v1462 = vpack.c.bf16 %v1433, %v1432
        %v1463 = vpack.c.bf16 %v1435, %v1434
        %v1464 = vpack.c.bf16 %v1437, %v1436
        %v1465 = vpack.c.bf16 %v1439, %v1438
        %v1466 = vpack.c.bf16 %v1441, %v1440
        %v1467 = vpack.c.bf16 %v1443, %v1442
        %v1468 = vpack.c.bf16 %v1445, %v1444
        %v1469 = vpack.c.bf16 %v1447, %v1446
        %v1470 = vpack.c.bf16 %v1449, %v1448
        %v1471 = vpack.c.bf16 %v1451, %v1450
        %v1472 = vpack.c.bf16 %v1453, %v1452
        %v1473 = vpack.c.bf16 %v1455, %v1454
        %v1474 = vpack.c.bf16 %v1457, %v1456
        %v1475 = vpack.c.bf16 %v1459, %v1458
        %v1476 = vld [vmem:[#allocation7] sm:$0xf]
        %v1477 = vld [vmem:[#allocation7 + $0x4] sm:$0xf]
        %v1478 = vld [vmem:[#allocation7 + $0x8] sm:$0xf]
        %v1479 = vld [vmem:[#allocation7 + $0xc] sm:$0xf]
        %v1480 = vld [vmem:[#allocation7 + $0x10] sm:$0xf]
        %v1481 = vld [vmem:[#allocation7 + $0x14] sm:$0xf]
        %v1482 = vld [vmem:[#allocation7 + $0x18] sm:$0xf]
        %v1483 = vld [vmem:[#allocation7 + $0x1c] sm:$0xf]
        %v1484 = vld [vmem:[#allocation7 + $0x20] sm:$0xf]
        %v1485 = vld [vmem:[#allocation7 + $0x24] sm:$0xf]
        %v1486 = vld [vmem:[#allocation7 + $0x28] sm:$0xf]
        %v1487 = vld [vmem:[#allocation7 + $0x2c] sm:$0xf]
        %v1488 = vld [vmem:[#allocation7 + $0x30] sm:$0xf]
        %v1489 = vld [vmem:[#allocation7 + $0x34] sm:$0xf]
        %v1490 = vld [vmem:[#allocation7 + $0x38] sm:$0xf]
        %v1491 = vld [vmem:[#allocation7 + $0x3c] sm:$0xf]
        %v1508 = vunpack.c.l.b16 %v1476
        %v1509 = vunpack.c.l.b16 %v1477
        %v1510 = vunpack.c.l.b16 %v1478
        %v1511 = vunpack.c.l.b16 %v1479
        %v1512 = vunpack.c.l.b16 %v1480
        %v1513 = vunpack.c.l.b16 %v1481
        %v1514 = vunpack.c.l.b16 %v1482
        %v1515 = vunpack.c.l.b16 %v1483
        %v1516 = vunpack.c.l.b16 %v1484
        %v1517 = vunpack.c.l.b16 %v1485
        %v1518 = vunpack.c.l.b16 %v1486
        %v1519 = vunpack.c.l.b16 %v1487
        %v1520 = vunpack.c.l.b16 %v1488
        %v1521 = vunpack.c.l.b16 %v1489
        %v1522 = vunpack.c.l.b16 %v1490
        %v1523 = vunpack.c.l.b16 %v1491
        %v1524 = vpack.c.b16 %v1509, %v1508
        %v1525 = vpack.c.b16 %v1511, %v1510
        %v1526 = vpack.c.b16 %v1513, %v1512
        %v1527 = vpack.c.b16 %v1515, %v1514
        %v1528 = vpack.c.b16 %v1517, %v1516
        %v1529 = vpack.c.b16 %v1519, %v1518
        %v1530 = vpack.c.b16 %v1521, %v1520
        %v1531 = vpack.c.b16 %v1523, %v1522
        %1540 = vmatpush.bf16.msra.mxu0 %v1531
        %1541 = vmatpush.bf16.msra.mxu0 %v1530
        %1542 = vmatpush.bf16.msra.mxu0 %v1529
        %1543 = vmatpush.bf16.msra.mxu0 %v1528
        %1544 = vmatpush.bf16.msra.mxu0 %v1527
        %1545 = vmatpush.bf16.msra.mxu0 %v1526
        %1546 = vmatpush.bf16.msra.mxu0 %v1525
        %1547 = vmatpush.bf16.msra.mxu0 %v1524
        %1548 = vmatmul.bf16.gmra.mxu0 %v1460
        %v1549 = vpop.f32.mrf.mxu0
        %v1550 = vadd.f32 1.1920929e-07, %v1549
        %v1551 = vpop.f32.mrf.mxu0
        %v1552 = vadd.f32 1.1920929e-07, %v1551
        %1553 = vmatmul.bf16.gmra.mxu0 %v1461
        %v1554 = vpop.f32.mrf.mxu0
        %v1555 = vadd.f32 1.1920929e-07, %v1554
        %v1556 = vpop.f32.mrf.mxu0
        %v1557 = vadd.f32 1.1920929e-07, %v1556
        %1558 = vmatmul.bf16.gmra.mxu0 %v1462
        %v1559 = vpop.f32.mrf.mxu0
        %v1560 = vadd.f32 1.1920929e-07, %v1559
        %v1561 = vpop.f32.mrf.mxu0
        %v1562 = vadd.f32 1.1920929e-07, %v1561
        %1563 = vmatmul.bf16.gmra.mxu0 %v1463
        %v1564 = vpop.f32.mrf.mxu0
        %v1565 = vadd.f32 1.1920929e-07, %v1564
        %v1566 = vpop.f32.mrf.mxu0
        %v1567 = vadd.f32 1.1920929e-07, %v1566
        %1568 = vmatmul.bf16.gmra.mxu0 %v1464
        %v1569 = vpop.f32.mrf.mxu0
        %v1570 = vadd.f32 1.1920929e-07, %v1569
        %v1571 = vpop.f32.mrf.mxu0
        %v1572 = vadd.f32 1.1920929e-07, %v1571
        %1573 = vmatmul.bf16.gmra.mxu0 %v1465
        %v1574 = vpop.f32.mrf.mxu0
        %v1575 = vadd.f32 1.1920929e-07, %v1574
        %v1576 = vpop.f32.mrf.mxu0
        %v1577 = vadd.f32 1.1920929e-07, %v1576
        %1578 = vmatmul.bf16.gmra.mxu0 %v1466
        %v1579 = vpop.f32.mrf.mxu0
        %v1580 = vadd.f32 1.1920929e-07, %v1579
        %v1581 = vpop.f32.mrf.mxu0
        %v1582 = vadd.f32 1.1920929e-07, %v1581
        %1583 = vmatmul.bf16.gmra.mxu0 %v1467
        %v1584 = vpop.f32.mrf.mxu0
        %v1585 = vadd.f32 1.1920929e-07, %v1584
        %v1586 = vpop.f32.mrf.mxu0
        %v1587 = vadd.f32 1.1920929e-07, %v1586
        %1588 = vmatmul.bf16.gmra.mxu0 %v1468
        %v1589 = vpop.f32.mrf.mxu0
        %v1590 = vadd.f32 1.1920929e-07, %v1589
        %v1591 = vpop.f32.mrf.mxu0
        %v1592 = vadd.f32 1.1920929e-07, %v1591
        %1593 = vmatmul.bf16.gmra.mxu0 %v1469
        %v1594 = vpop.f32.mrf.mxu0
        %v1595 = vadd.f32 1.1920929e-07, %v1594
        %v1596 = vpop.f32.mrf.mxu0
        %v1597 = vadd.f32 1.1920929e-07, %v1596
        %1598 = vmatmul.bf16.gmra.mxu0 %v1470
        %v1599 = vpop.f32.mrf.mxu0
        %v1600 = vadd.f32 1.1920929e-07, %v1599
        %v1601 = vpop.f32.mrf.mxu0
        %v1602 = vadd.f32 1.1920929e-07, %v1601
        %1603 = vmatmul.bf16.gmra.mxu0 %v1471
        %v1604 = vpop.f32.mrf.mxu0
        %v1605 = vadd.f32 1.1920929e-07, %v1604
        %v1606 = vpop.f32.mrf.mxu0
        %v1607 = vadd.f32 1.1920929e-07, %v1606
        %1608 = vmatmul.bf16.gmra.mxu0 %v1472
        %v1609 = vpop.f32.mrf.mxu0
        %v1610 = vadd.f32 1.1920929e-07, %v1609
        %v1611 = vpop.f32.mrf.mxu0
        %v1612 = vadd.f32 1.1920929e-07, %v1611
        %1613 = vmatmul.bf16.gmra.mxu0 %v1473
        %v1614 = vpop.f32.mrf.mxu0
        %v1615 = vadd.f32 1.1920929e-07, %v1614
        %v1616 = vpop.f32.mrf.mxu0
        %v1617 = vadd.f32 1.1920929e-07, %v1616
        %1618 = vmatmul.bf16.gmra.mxu0 %v1474
        %v1619 = vpop.f32.mrf.mxu0
        %v1620 = vadd.f32 1.1920929e-07, %v1619
        %v1621 = vpop.f32.mrf.mxu0
        %v1622 = vadd.f32 1.1920929e-07, %v1621
        %1623 = vmatmul.bf16.gmra.mxu0 %v1475
        %v1624 = vpop.f32.mrf.mxu0
        %v1625 = vadd.f32 1.1920929e-07, %v1624
        %v1626 = vpop.f32.mrf.mxu0
        %v1627 = vadd.f32 1.1920929e-07, %v1626
        %1628 = vdwg.mxu0
        %v1629 = vrsqrt.pop %v1550
        %v1630 = vmul.f32 %v1629, %v1550
        %v1631 = vmul.f32 %v1630, %v1629
        %v1632 = vmul.f32 0.5, %v1631
        %v1633 = vsub.f32 1.5, %v1632
        %v1634 = vmul.f32 %v1629, %v1633
        %vm1635 = vweird.f32 %v1550
        %vm1636 = vweird.f32 %v1629
        %vm1637 = vmor %vm1635, %vm1636
        %v1638 = vsel %vm1637, %v1629, %v1634
        %v1639 = vrsqrt.pop %v1552
        %v1640 = vmul.f32 %v1639, %v1552
        %v1641 = vmul.f32 %v1640, %v1639
        %v1642 = vmul.f32 0.5, %v1641
        %v1643 = vsub.f32 1.5, %v1642
        %v1644 = vmul.f32 %v1639, %v1643
        %vm1645 = vweird.f32 %v1552
        %vm1646 = vweird.f32 %v1639
        %vm1647 = vmor %vm1645, %vm1646
        %v1648 = vsel %vm1647, %v1639, %v1644
        %v1649 = vrsqrt.pop %v1555
        %v1650 = vmul.f32 %v1649, %v1555
        %v1651 = vmul.f32 %v1650, %v1649
        %v1652 = vmul.f32 0.5, %v1651
        %v1653 = vsub.f32 1.5, %v1652
        %v1654 = vmul.f32 %v1649, %v1653
        %vm1655 = vweird.f32 %v1555
        %vm1656 = vweird.f32 %v1649
        %vm1657 = vmor %vm1655, %vm1656
        %v1658 = vsel %vm1657, %v1649, %v1654
        %v1659 = vrsqrt.pop %v1557
        %v1660 = vmul.f32 %v1659, %v1557
        %v1661 = vmul.f32 %v1660, %v1659
        %v1662 = vmul.f32 0.5, %v1661
        %v1663 = vsub.f32 1.5, %v1662
        %v1664 = vmul.f32 %v1659, %v1663
        %vm1665 = vweird.f32 %v1557
        %vm1666 = vweird.f32 %v1659
        %vm1667 = vmor %vm1665, %vm1666
        %v1668 = vsel %vm1667, %v1659, %v1664
        %v1669 = vrsqrt.pop %v1560
        %v1670 = vmul.f32 %v1669, %v1560
        %v1671 = vmul.f32 %v1670, %v1669
        %v1672 = vmul.f32 0.5, %v1671
        %v1673 = vsub.f32 1.5, %v1672
        %v1674 = vmul.f32 %v1669, %v1673
        %vm1675 = vweird.f32 %v1560
        %vm1676 = vweird.f32 %v1669
        %vm1677 = vmor %vm1675, %vm1676
        %v1678 = vsel %vm1677, %v1669, %v1674
        %v1679 = vrsqrt.pop %v1562
        %v1680 = vmul.f32 %v1679, %v1562
        %v1681 = vmul.f32 %v1680, %v1679
        %v1682 = vmul.f32 0.5, %v1681
        %v1683 = vsub.f32 1.5, %v1682
        %v1684 = vmul.f32 %v1679, %v1683
        %vm1685 = vweird.f32 %v1562
        %vm1686 = vweird.f32 %v1679
        %vm1687 = vmor %vm1685, %vm1686
        %v1688 = vsel %vm1687, %v1679, %v1684
        %v1689 = vrsqrt.pop %v1565
        %v1690 = vmul.f32 %v1689, %v1565
        %v1691 = vmul.f32 %v1690, %v1689
        %v1692 = vmul.f32 0.5, %v1691
        %v1693 = vsub.f32 1.5, %v1692
        %v1694 = vmul.f32 %v1689, %v1693
        %vm1695 = vweird.f32 %v1565
        %vm1696 = vweird.f32 %v1689
        %vm1697 = vmor %vm1695, %vm1696
        %v1698 = vsel %vm1697, %v1689, %v1694
        %v1699 = vrsqrt.pop %v1567
        %v1700 = vmul.f32 %v1699, %v1567
        %v1701 = vmul.f32 %v1700, %v1699
        %v1702 = vmul.f32 0.5, %v1701
        %v1703 = vsub.f32 1.5, %v1702
        %v1704 = vmul.f32 %v1699, %v1703
        %vm1705 = vweird.f32 %v1567
        %vm1706 = vweird.f32 %v1699
        %vm1707 = vmor %vm1705, %vm1706
        %v1708 = vsel %vm1707, %v1699, %v1704
        %v1709 = vrsqrt.pop %v1570
        %v1710 = vmul.f32 %v1709, %v1570
        %v1711 = vmul.f32 %v1710, %v1709
        %v1712 = vmul.f32 0.5, %v1711
        %v1713 = vsub.f32 1.5, %v1712
        %v1714 = vmul.f32 %v1709, %v1713
        %vm1715 = vweird.f32 %v1570
        %vm1716 = vweird.f32 %v1709
        %vm1717 = vmor %vm1715, %vm1716
        %v1718 = vsel %vm1717, %v1709, %v1714
        %v1719 = vrsqrt.pop %v1572
        %v1720 = vmul.f32 %v1719, %v1572
        %v1721 = vmul.f32 %v1720, %v1719
        %v1722 = vmul.f32 0.5, %v1721
        %v1723 = vsub.f32 1.5, %v1722
        %v1724 = vmul.f32 %v1719, %v1723
        %vm1725 = vweird.f32 %v1572
        %vm1726 = vweird.f32 %v1719
        %vm1727 = vmor %vm1725, %vm1726
        %v1728 = vsel %vm1727, %v1719, %v1724
        %v1729 = vrsqrt.pop %v1575
        %v1730 = vmul.f32 %v1729, %v1575
        %v1731 = vmul.f32 %v1730, %v1729
        %v1732 = vmul.f32 0.5, %v1731
        %v1733 = vsub.f32 1.5, %v1732
        %v1734 = vmul.f32 %v1729, %v1733
        %vm1735 = vweird.f32 %v1575
        %vm1736 = vweird.f32 %v1729
        %vm1737 = vmor %vm1735, %vm1736
        %v1738 = vsel %vm1737, %v1729, %v1734
        %v1739 = vrsqrt.pop %v1577
        %v1740 = vmul.f32 %v1739, %v1577
        %v1741 = vmul.f32 %v1740, %v1739
        %v1742 = vmul.f32 0.5, %v1741
        %v1743 = vsub.f32 1.5, %v1742
        %v1744 = vmul.f32 %v1739, %v1743
        %vm1745 = vweird.f32 %v1577
        %vm1746 = vweird.f32 %v1739
        %vm1747 = vmor %vm1745, %vm1746
        %v1748 = vsel %vm1747, %v1739, %v1744
        %v1749 = vrsqrt.pop %v1580
        %v1750 = vmul.f32 %v1749, %v1580
        %v1751 = vmul.f32 %v1750, %v1749
        %v1752 = vmul.f32 0.5, %v1751
        %v1753 = vsub.f32 1.5, %v1752
        %v1754 = vmul.f32 %v1749, %v1753
        %vm1755 = vweird.f32 %v1580
        %vm1756 = vweird.f32 %v1749
        %vm1757 = vmor %vm1755, %vm1756
        %v1758 = vsel %vm1757, %v1749, %v1754
        %v1759 = vrsqrt.pop %v1582
        %v1760 = vmul.f32 %v1759, %v1582
        %v1761 = vmul.f32 %v1760, %v1759
        %v1762 = vmul.f32 0.5, %v1761
        %v1763 = vsub.f32 1.5, %v1762
        %v1764 = vmul.f32 %v1759, %v1763
        %vm1765 = vweird.f32 %v1582
        %vm1766 = vweird.f32 %v1759
        %vm1767 = vmor %vm1765, %vm1766
        %v1768 = vsel %vm1767, %v1759, %v1764
        %v1769 = vrsqrt.pop %v1585
        %v1770 = vmul.f32 %v1769, %v1585
        %v1771 = vmul.f32 %v1770, %v1769
        %v1772 = vmul.f32 0.5, %v1771
        %v1773 = vsub.f32 1.5, %v1772
        %v1774 = vmul.f32 %v1769, %v1773
        %vm1775 = vweird.f32 %v1585
        %vm1776 = vweird.f32 %v1769
        %vm1777 = vmor %vm1775, %vm1776
        %v1778 = vsel %vm1777, %v1769, %v1774
        %v1779 = vrsqrt.pop %v1587
        %v1780 = vmul.f32 %v1779, %v1587
        %v1781 = vmul.f32 %v1780, %v1779
        %v1782 = vmul.f32 0.5, %v1781
        %v1783 = vsub.f32 1.5, %v1782
        %v1784 = vmul.f32 %v1779, %v1783
        %vm1785 = vweird.f32 %v1587
        %vm1786 = vweird.f32 %v1779
        %vm1787 = vmor %vm1785, %vm1786
        %v1788 = vsel %vm1787, %v1779, %v1784
        %v1789 = vrsqrt.pop %v1590
        %v1790 = vmul.f32 %v1789, %v1590
        %v1791 = vmul.f32 %v1790, %v1789
        %v1792 = vmul.f32 0.5, %v1791
        %v1793 = vsub.f32 1.5, %v1792
        %v1794 = vmul.f32 %v1789, %v1793
        %vm1795 = vweird.f32 %v1590
        %vm1796 = vweird.f32 %v1789
        %vm1797 = vmor %vm1795, %vm1796
        %v1798 = vsel %vm1797, %v1789, %v1794
        %v1799 = vrsqrt.pop %v1592
        %v1800 = vmul.f32 %v1799, %v1592
        %v1801 = vmul.f32 %v1800, %v1799
        %v1802 = vmul.f32 0.5, %v1801
        %v1803 = vsub.f32 1.5, %v1802
        %v1804 = vmul.f32 %v1799, %v1803
        %vm1805 = vweird.f32 %v1592
        %vm1806 = vweird.f32 %v1799
        %vm1807 = vmor %vm1805, %vm1806
        %v1808 = vsel %vm1807, %v1799, %v1804
        %v1809 = vrsqrt.pop %v1595
        %v1810 = vmul.f32 %v1809, %v1595
        %v1811 = vmul.f32 %v1810, %v1809
        %v1812 = vmul.f32 0.5, %v1811
        %v1813 = vsub.f32 1.5, %v1812
        %v1814 = vmul.f32 %v1809, %v1813
        %vm1815 = vweird.f32 %v1595
        %vm1816 = vweird.f32 %v1809
        %vm1817 = vmor %vm1815, %vm1816
        %v1818 = vsel %vm1817, %v1809, %v1814
        %v1819 = vrsqrt.pop %v1597
        %v1820 = vmul.f32 %v1819, %v1597
        %v1821 = vmul.f32 %v1820, %v1819
        %v1822 = vmul.f32 0.5, %v1821
        %v1823 = vsub.f32 1.5, %v1822
        %v1824 = vmul.f32 %v1819, %v1823
        %vm1825 = vweird.f32 %v1597
        %vm1826 = vweird.f32 %v1819
        %vm1827 = vmor %vm1825, %vm1826
        %v1828 = vsel %vm1827, %v1819, %v1824
        %v1829 = vrsqrt.pop %v1600
        %v1830 = vmul.f32 %v1829, %v1600
        %v1831 = vmul.f32 %v1830, %v1829
        %v1832 = vmul.f32 0.5, %v1831
        %v1833 = vsub.f32 1.5, %v1832
        %v1834 = vmul.f32 %v1829, %v1833
        %vm1835 = vweird.f32 %v1600
        %vm1836 = vweird.f32 %v1829
        %vm1837 = vmor %vm1835, %vm1836
        %v1838 = vsel %vm1837, %v1829, %v1834
        %v1839 = vrsqrt.pop %v1602
        %v1840 = vmul.f32 %v1839, %v1602
        %v1841 = vmul.f32 %v1840, %v1839
        %v1842 = vmul.f32 0.5, %v1841
        %v1843 = vsub.f32 1.5, %v1842
        %v1844 = vmul.f32 %v1839, %v1843
        %vm1845 = vweird.f32 %v1602
        %vm1846 = vweird.f32 %v1839
        %vm1847 = vmor %vm1845, %vm1846
        %v1848 = vsel %vm1847, %v1839, %v1844
        %v1849 = vrsqrt.pop %v1605
        %v1850 = vmul.f32 %v1849, %v1605
        %v1851 = vmul.f32 %v1850, %v1849
        %v1852 = vmul.f32 0.5, %v1851
        %v1853 = vsub.f32 1.5, %v1852
        %v1854 = vmul.f32 %v1849, %v1853
        %vm1855 = vweird.f32 %v1605
        %vm1856 = vweird.f32 %v1849
        %vm1857 = vmor %vm1855, %vm1856
        %v1858 = vsel %vm1857, %v1849, %v1854
        %v1859 = vrsqrt.pop %v1607
        %v1860 = vmul.f32 %v1859, %v1607
        %v1861 = vmul.f32 %v1860, %v1859
        %v1862 = vmul.f32 0.5, %v1861
        %v1863 = vsub.f32 1.5, %v1862
        %v1864 = vmul.f32 %v1859, %v1863
        %vm1865 = vweird.f32 %v1607
        %vm1866 = vweird.f32 %v1859
        %vm1867 = vmor %vm1865, %vm1866
        %v1868 = vsel %vm1867, %v1859, %v1864
        %v1869 = vrsqrt.pop %v1610
        %v1870 = vmul.f32 %v1869, %v1610
        %v1871 = vmul.f32 %v1870, %v1869
        %v1872 = vmul.f32 0.5, %v1871
        %v1873 = vsub.f32 1.5, %v1872
        %v1874 = vmul.f32 %v1869, %v1873
        %vm1875 = vweird.f32 %v1610
        %vm1876 = vweird.f32 %v1869
        %vm1877 = vmor %vm1875, %vm1876
        %v1878 = vsel %vm1877, %v1869, %v1874
        %v1879 = vrsqrt.pop %v1612
        %v1880 = vmul.f32 %v1879, %v1612
        %v1881 = vmul.f32 %v1880, %v1879
        %v1882 = vmul.f32 0.5, %v1881
        %v1883 = vsub.f32 1.5, %v1882
        %v1884 = vmul.f32 %v1879, %v1883
        %vm1885 = vweird.f32 %v1612
        %vm1886 = vweird.f32 %v1879
        %vm1887 = vmor %vm1885, %vm1886
        %v1888 = vsel %vm1887, %v1879, %v1884
        %v1889 = vrsqrt.pop %v1615
        %v1890 = vmul.f32 %v1889, %v1615
        %v1891 = vmul.f32 %v1890, %v1889
        %v1892 = vmul.f32 0.5, %v1891
        %v1893 = vsub.f32 1.5, %v1892
        %v1894 = vmul.f32 %v1889, %v1893
        %vm1895 = vweird.f32 %v1615
        %vm1896 = vweird.f32 %v1889
        %vm1897 = vmor %vm1895, %vm1896
        %v1898 = vsel %vm1897, %v1889, %v1894
        %v1899 = vrsqrt.pop %v1617
        %v1900 = vmul.f32 %v1899, %v1617
        %v1901 = vmul.f32 %v1900, %v1899
        %v1902 = vmul.f32 0.5, %v1901
        %v1903 = vsub.f32 1.5, %v1902
        %v1904 = vmul.f32 %v1899, %v1903
        %vm1905 = vweird.f32 %v1617
        %vm1906 = vweird.f32 %v1899
        %vm1907 = vmor %vm1905, %vm1906
        %v1908 = vsel %vm1907, %v1899, %v1904
        %v1909 = vrsqrt.pop %v1620
        %v1910 = vmul.f32 %v1909, %v1620
        %v1911 = vmul.f32 %v1910, %v1909
        %v1912 = vmul.f32 0.5, %v1911
        %v1913 = vsub.f32 1.5, %v1912
        %v1914 = vmul.f32 %v1909, %v1913
        %vm1915 = vweird.f32 %v1620
        %vm1916 = vweird.f32 %v1909
        %vm1917 = vmor %vm1915, %vm1916
        %v1918 = vsel %vm1917, %v1909, %v1914
        %v1919 = vrsqrt.pop %v1622
        %v1920 = vmul.f32 %v1919, %v1622
        %v1921 = vmul.f32 %v1920, %v1919
        %v1922 = vmul.f32 0.5, %v1921
        %v1923 = vsub.f32 1.5, %v1922
        %v1924 = vmul.f32 %v1919, %v1923
        %vm1925 = vweird.f32 %v1622
        %vm1926 = vweird.f32 %v1919
        %vm1927 = vmor %vm1925, %vm1926
        %v1928 = vsel %vm1927, %v1919, %v1924
        %v1929 = vrsqrt.pop %v1625
        %v1930 = vmul.f32 %v1929, %v1625
        %v1931 = vmul.f32 %v1930, %v1929
        %v1932 = vmul.f32 0.5, %v1931
        %v1933 = vsub.f32 1.5, %v1932
        %v1934 = vmul.f32 %v1929, %v1933
        %vm1935 = vweird.f32 %v1625
        %vm1936 = vweird.f32 %v1929
        %vm1937 = vmor %vm1935, %vm1936
        %v1938 = vsel %vm1937, %v1929, %v1934
        %v1939 = vrsqrt.pop %v1627
        %v1940 = vmul.f32 %v1939, %v1627
        %v1941 = vmul.f32 %v1940, %v1939
        %v1942 = vmul.f32 0.5, %v1941
        %v1943 = vsub.f32 1.5, %v1942
        %v1944 = vmul.f32 %v1939, %v1943
        %vm1945 = vweird.f32 %v1627
        %vm1946 = vweird.f32 %v1939
        %vm1947 = vmor %vm1945, %vm1946
        %v1948 = vsel %vm1947, %v1939, %v1944
        %v1949 = vmul.f32 %v1638, 0.125
        %v1950 = vmul.f32 %v1648, 0.125
        %v1951 = vmul.f32 %v1658, 0.125
        %v1952 = vmul.f32 %v1668, 0.125
        %v1953 = vmul.f32 %v1678, 0.125
        %v1954 = vmul.f32 %v1688, 0.125
        %v1955 = vmul.f32 %v1698, 0.125
        %v1956 = vmul.f32 %v1708, 0.125
        %v1957 = vmul.f32 %v1718, 0.125
        %v1958 = vmul.f32 %v1728, 0.125
        %v1959 = vmul.f32 %v1738, 0.125
        %v1960 = vmul.f32 %v1748, 0.125
        %v1961 = vmul.f32 %v1758, 0.125
        %v1962 = vmul.f32 %v1768, 0.125
        %v1963 = vmul.f32 %v1778, 0.125
        %v1964 = vmul.f32 %v1788, 0.125
        %v1965 = vmul.f32 %v1798, 0.125
        %v1966 = vmul.f32 %v1808, 0.125
        %v1967 = vmul.f32 %v1818, 0.125
        %v1968 = vmul.f32 %v1828, 0.125
        %v1969 = vmul.f32 %v1838, 0.125
        %v1970 = vmul.f32 %v1848, 0.125
        %v1971 = vmul.f32 %v1858, 0.125
        %v1972 = vmul.f32 %v1868, 0.125
        %v1973 = vmul.f32 %v1878, 0.125
        %v1974 = vmul.f32 %v1888, 0.125
        %v1975 = vmul.f32 %v1898, 0.125
        %v1976 = vmul.f32 %v1908, 0.125
        %v1977 = vmul.f32 %v1918, 0.125
        %v1978 = vmul.f32 %v1928, 0.125
        %v1979 = vmul.f32 %v1938, 0.125
        %v1980 = vmul.f32 %v1948, 0.125
        %v1981 = vpack.c.bf16 %v1950, %v1949
        %v1982 = vpack.c.bf16 %v1952, %v1951
        %v1983 = vpack.c.bf16 %v1954, %v1953
        %v1984 = vpack.c.bf16 %v1956, %v1955
        %v1985 = vpack.c.bf16 %v1958, %v1957
        %v1986 = vpack.c.bf16 %v1960, %v1959
        %v1987 = vpack.c.bf16 %v1962, %v1961
        %v1988 = vpack.c.bf16 %v1964, %v1963
        %v1989 = vpack.c.bf16 %v1966, %v1965
        %v1990 = vpack.c.bf16 %v1968, %v1967
        %v1991 = vpack.c.bf16 %v1970, %v1969
        %v1992 = vpack.c.bf16 %v1972, %v1971
        %v1993 = vpack.c.bf16 %v1974, %v1973
        %v1994 = vpack.c.bf16 %v1976, %v1975
        %v1995 = vpack.c.bf16 %v1978, %v1977
        %v1996 = vpack.c.bf16 %v1980, %v1979
        %v1997 = vld [vmem:[#allocation8] sm:$0xf]
        %v1998 = vld [vmem:[#allocation8 + $0x4] sm:$0xf]
        %v1999 = vld [vmem:[#allocation8 + $0x8] sm:$0xf]
        %v2000 = vld [vmem:[#allocation8 + $0xc] sm:$0xf]
        %v2001 = vld [vmem:[#allocation8 + $0x10] sm:$0xf]
        %v2002 = vld [vmem:[#allocation8 + $0x14] sm:$0xf]
        %v2003 = vld [vmem:[#allocation8 + $0x18] sm:$0xf]
        %v2004 = vld [vmem:[#allocation8 + $0x1c] sm:$0xf]
        %v2005 = vld [vmem:[#allocation8 + $0x20] sm:$0xf]
        %v2006 = vld [vmem:[#allocation8 + $0x24] sm:$0xf]
        %v2007 = vld [vmem:[#allocation8 + $0x28] sm:$0xf]
        %v2008 = vld [vmem:[#allocation8 + $0x2c] sm:$0xf]
        %v2009 = vld [vmem:[#allocation8 + $0x30] sm:$0xf]
        %v2010 = vld [vmem:[#allocation8 + $0x34] sm:$0xf]
        %v2011 = vld [vmem:[#allocation8 + $0x38] sm:$0xf]
        %v2012 = vld [vmem:[#allocation8 + $0x3c] sm:$0xf]
        %v2029 = vunpack.c.l.b16 %v1997
        %v2030 = vunpack.c.l.b16 %v1998
        %v2031 = vunpack.c.l.b16 %v1999
        %v2032 = vunpack.c.l.b16 %v2000
        %v2033 = vunpack.c.l.b16 %v2001
        %v2034 = vunpack.c.l.b16 %v2002
        %v2035 = vunpack.c.l.b16 %v2003
        %v2036 = vunpack.c.l.b16 %v2004
        %v2037 = vunpack.c.l.b16 %v2005
        %v2038 = vunpack.c.l.b16 %v2006
        %v2039 = vunpack.c.l.b16 %v2007
        %v2040 = vunpack.c.l.b16 %v2008
        %v2041 = vunpack.c.l.b16 %v2009
        %v2042 = vunpack.c.l.b16 %v2010
        %v2043 = vunpack.c.l.b16 %v2011
        %v2044 = vunpack.c.l.b16 %v2012
        %v2045 = vpack.c.b16 %v2030, %v2029
        %v2046 = vpack.c.b16 %v2032, %v2031
        %v2047 = vpack.c.b16 %v2034, %v2033
        %v2048 = vpack.c.b16 %v2036, %v2035
        %v2049 = vpack.c.b16 %v2038, %v2037
        %v2050 = vpack.c.b16 %v2040, %v2039
        %v2051 = vpack.c.b16 %v2042, %v2041
        %v2052 = vpack.c.b16 %v2044, %v2043
        %2061 = vmatpush.bf16.msra.mxu0 %v2052
        %2062 = vmatpush.bf16.msra.mxu0 %v2051
        %2063 = vmatpush.bf16.msra.mxu0 %v2050
        %2064 = vmatpush.bf16.msra.mxu0 %v2049
        %2065 = vmatpush.bf16.msra.mxu0 %v2048
        %2066 = vmatpush.bf16.msra.mxu0 %v2047
        %2067 = vmatpush.bf16.msra.mxu0 %v2046
        %2068 = vmatpush.bf16.msra.mxu0 %v2045
        %2069 = vmatmul.bf16.gmra.mxu0 %v1981
        %v2070 = vpop.f32.mrf.mxu0
        %v2071 = vadd.f32 0.0, %v2070
        %v2072 = vpop.f32.mrf.mxu0
        %v2073 = vadd.f32 0.0, %v2072
        %2074 = vmatmul.bf16.gmra.mxu0 %v1982
        %v2075 = vpop.f32.mrf.mxu0
        %v2076 = vadd.f32 0.0, %v2075
        %v2077 = vpop.f32.mrf.mxu0
        %v2078 = vadd.f32 0.0, %v2077
        %2079 = vmatmul.bf16.gmra.mxu0 %v1983
        %v2080 = vpop.f32.mrf.mxu0
        %v2081 = vadd.f32 0.0, %v2080
        %v2082 = vpop.f32.mrf.mxu0
        %v2083 = vadd.f32 0.0, %v2082
        %2084 = vmatmul.bf16.gmra.mxu0 %v1984
        %v2085 = vpop.f32.mrf.mxu0
        %v2086 = vadd.f32 0.0, %v2085
        %v2087 = vpop.f32.mrf.mxu0
        %v2088 = vadd.f32 0.0, %v2087
        %2089 = vmatmul.bf16.gmra.mxu0 %v1985
        %v2090 = vpop.f32.mrf.mxu0
        %v2091 = vadd.f32 0.0, %v2090
        %v2092 = vpop.f32.mrf.mxu0
        %v2093 = vadd.f32 0.0, %v2092
        %2094 = vmatmul.bf16.gmra.mxu0 %v1986
        %v2095 = vpop.f32.mrf.mxu0
        %v2096 = vadd.f32 0.0, %v2095
        %v2097 = vpop.f32.mrf.mxu0
        %v2098 = vadd.f32 0.0, %v2097
        %2099 = vmatmul.bf16.gmra.mxu0 %v1987
        %v2100 = vpop.f32.mrf.mxu0
        %v2101 = vadd.f32 0.0, %v2100
        %v2102 = vpop.f32.mrf.mxu0
        %v2103 = vadd.f32 0.0, %v2102
        %2104 = vmatmul.bf16.gmra.mxu0 %v1988
        %v2105 = vpop.f32.mrf.mxu0
        %v2106 = vadd.f32 0.0, %v2105
        %v2107 = vpop.f32.mrf.mxu0
        %v2108 = vadd.f32 0.0, %v2107
        %2109 = vmatmul.bf16.gmra.mxu0 %v1989
        %v2110 = vpop.f32.mrf.mxu0
        %v2111 = vadd.f32 0.0, %v2110
        %v2112 = vpop.f32.mrf.mxu0
        %v2113 = vadd.f32 0.0, %v2112
        %2114 = vmatmul.bf16.gmra.mxu0 %v1990
        %v2115 = vpop.f32.mrf.mxu0
        %v2116 = vadd.f32 0.0, %v2115
        %v2117 = vpop.f32.mrf.mxu0
        %v2118 = vadd.f32 0.0, %v2117
        %2119 = vmatmul.bf16.gmra.mxu0 %v1991
        %v2120 = vpop.f32.mrf.mxu0
        %v2121 = vadd.f32 0.0, %v2120
        %v2122 = vpop.f32.mrf.mxu0
        %v2123 = vadd.f32 0.0, %v2122
        %2124 = vmatmul.bf16.gmra.mxu0 %v1992
        %v2125 = vpop.f32.mrf.mxu0
        %v2126 = vadd.f32 0.0, %v2125
        %v2127 = vpop.f32.mrf.mxu0
        %v2128 = vadd.f32 0.0, %v2127
        %2129 = vmatmul.bf16.gmra.mxu0 %v1993
        %v2130 = vpop.f32.mrf.mxu0
        %v2131 = vadd.f32 0.0, %v2130
        %v2132 = vpop.f32.mrf.mxu0
        %v2133 = vadd.f32 0.0, %v2132
        %2134 = vmatmul.bf16.gmra.mxu0 %v1994
        %v2135 = vpop.f32.mrf.mxu0
        %v2136 = vadd.f32 0.0, %v2135
        %v2137 = vpop.f32.mrf.mxu0
        %v2138 = vadd.f32 0.0, %v2137
        %2139 = vmatmul.bf16.gmra.mxu0 %v1995
        %v2140 = vpop.f32.mrf.mxu0
        %v2141 = vadd.f32 0.0, %v2140
        %v2142 = vpop.f32.mrf.mxu0
        %v2143 = vadd.f32 0.0, %v2142
        %2144 = vmatmul.bf16.gmra.mxu0 %v1996
        %v2145 = vpop.f32.mrf.mxu0
        %v2146 = vadd.f32 0.0, %v2145
        %v2147 = vpop.f32.mrf.mxu0
        %v2148 = vadd.f32 0.0, %v2147
        %2149 = vdwg.mxu0
        %v2150 = vmul.f32 %v954, %v954
        %v2151 = vmul.f32 %v956, %v956
        %v2152 = vmul.f32 %v959, %v959
        %v2153 = vmul.f32 %v961, %v961
        %v2154 = vmul.f32 %v964, %v964
        %v2155 = vmul.f32 %v966, %v966
        %v2156 = vmul.f32 %v969, %v969
        %v2157 = vmul.f32 %v971, %v971
        %v2158 = vmul.f32 %v974, %v974
        %v2159 = vmul.f32 %v976, %v976
        %v2160 = vmul.f32 %v979, %v979
        %v2161 = vmul.f32 %v981, %v981
        %v2162 = vmul.f32 %v984, %v984
        %v2163 = vmul.f32 %v986, %v986
        %v2164 = vmul.f32 %v989, %v989
        %v2165 = vmul.f32 %v991, %v991
        %v2166 = vmul.f32 %v994, %v994
        %v2167 = vmul.f32 %v996, %v996
        %v2168 = vmul.f32 %v999, %v999
        %v2169 = vmul.f32 %v1001, %v1001
        %v2170 = vmul.f32 %v1004, %v1004
        %v2171 = vmul.f32 %v1006, %v1006
        %v2172 = vmul.f32 %v1009, %v1009
        %v2173 = vmul.f32 %v1011, %v1011
        %v2174 = vmul.f32 %v1014, %v1014
        %v2175 = vmul.f32 %v1016, %v1016
        %v2176 = vmul.f32 %v1019, %v1019
        %v2177 = vmul.f32 %v1021, %v1021
        %v2178 = vmul.f32 %v1024, %v1024
        %v2179 = vmul.f32 %v1026, %v1026
        %v2180 = vmul.f32 %v1029, %v1029
        %v2181 = vmul.f32 %v1031, %v1031
        %v2182 = vpack.c.bf16 %v2151, %v2150
        %v2183 = vpack.c.bf16 %v2153, %v2152
        %v2184 = vpack.c.bf16 %v2155, %v2154
        %v2185 = vpack.c.bf16 %v2157, %v2156
        %v2186 = vpack.c.bf16 %v2159, %v2158
        %v2187 = vpack.c.bf16 %v2161, %v2160
        %v2188 = vpack.c.bf16 %v2163, %v2162
        %v2189 = vpack.c.bf16 %v2165, %v2164
        %v2190 = vpack.c.bf16 %v2167, %v2166
        %v2191 = vpack.c.bf16 %v2169, %v2168
        %v2192 = vpack.c.bf16 %v2171, %v2170
        %v2193 = vpack.c.bf16 %v2173, %v2172
        %v2194 = vpack.c.bf16 %v2175, %v2174
        %v2195 = vpack.c.bf16 %v2177, %v2176
        %v2196 = vpack.c.bf16 %v2179, %v2178
        %v2197 = vpack.c.bf16 %v2181, %v2180
        %2198 = vmatpush.bf16.msra.mxu0 %v1531
        %2199 = vmatpush.bf16.msra.mxu0 %v1530
        %2200 = vmatpush.bf16.msra.mxu0 %v1529
        %2201 = vmatpush.bf16.msra.mxu0 %v1528
        %2202 = vmatpush.bf16.msra.mxu0 %v1527
        %2203 = vmatpush.bf16.msra.mxu0 %v1526
        %2204 = vmatpush.bf16.msra.mxu0 %v1525
        %2205 = vmatpush.bf16.msra.mxu0 %v1524
        %2206 = vmatmul.bf16.gmra.mxu0 %v2182
        %v2207 = vpop.f32.mrf.mxu0
        %v2208 = vadd.f32 1.1920929e-07, %v2207
        %v2209 = vpop.f32.mrf.mxu0
        %v2210 = vadd.f32 1.1920929e-07, %v2209
        %2211 = vmatmul.bf16.gmra.mxu0 %v2183
        %v2212 = vpop.f32.mrf.mxu0
        %v2213 = vadd.f32 1.1920929e-07, %v2212
        %v2214 = vpop.f32.mrf.mxu0
        %v2215 = vadd.f32 1.1920929e-07, %v2214
        %2216 = vmatmul.bf16.gmra.mxu0 %v2184
        %v2217 = vpop.f32.mrf.mxu0
        %v2218 = vadd.f32 1.1920929e-07, %v2217
        %v2219 = vpop.f32.mrf.mxu0
        %v2220 = vadd.f32 1.1920929e-07, %v2219
        %2221 = vmatmul.bf16.gmra.mxu0 %v2185
        %v2222 = vpop.f32.mrf.mxu0
        %v2223 = vadd.f32 1.1920929e-07, %v2222
        %v2224 = vpop.f32.mrf.mxu0
        %v2225 = vadd.f32 1.1920929e-07, %v2224
        %2226 = vmatmul.bf16.gmra.mxu0 %v2186
        %v2227 = vpop.f32.mrf.mxu0
        %v2228 = vadd.f32 1.1920929e-07, %v2227
        %v2229 = vpop.f32.mrf.mxu0
        %v2230 = vadd.f32 1.1920929e-07, %v2229
        %2231 = vmatmul.bf16.gmra.mxu0 %v2187
        %v2232 = vpop.f32.mrf.mxu0
        %v2233 = vadd.f32 1.1920929e-07, %v2232
        %v2234 = vpop.f32.mrf.mxu0
        %v2235 = vadd.f32 1.1920929e-07, %v2234
        %2236 = vmatmul.bf16.gmra.mxu0 %v2188
        %v2237 = vpop.f32.mrf.mxu0
        %v2238 = vadd.f32 1.1920929e-07, %v2237
        %v2239 = vpop.f32.mrf.mxu0
        %v2240 = vadd.f32 1.1920929e-07, %v2239
        %2241 = vmatmul.bf16.gmra.mxu0 %v2189
        %v2242 = vpop.f32.mrf.mxu0
        %v2243 = vadd.f32 1.1920929e-07, %v2242
        %v2244 = vpop.f32.mrf.mxu0
        %v2245 = vadd.f32 1.1920929e-07, %v2244
        %2246 = vmatmul.bf16.gmra.mxu0 %v2190
        %v2247 = vpop.f32.mrf.mxu0
        %v2248 = vadd.f32 1.1920929e-07, %v2247
        %v2249 = vpop.f32.mrf.mxu0
        %v2250 = vadd.f32 1.1920929e-07, %v2249
        %2251 = vmatmul.bf16.gmra.mxu0 %v2191
        %v2252 = vpop.f32.mrf.mxu0
        %v2253 = vadd.f32 1.1920929e-07, %v2252
        %v2254 = vpop.f32.mrf.mxu0
        %v2255 = vadd.f32 1.1920929e-07, %v2254
        %2256 = vmatmul.bf16.gmra.mxu0 %v2192
        %v2257 = vpop.f32.mrf.mxu0
        %v2258 = vadd.f32 1.1920929e-07, %v2257
        %v2259 = vpop.f32.mrf.mxu0
        %v2260 = vadd.f32 1.1920929e-07, %v2259
        %2261 = vmatmul.bf16.gmra.mxu0 %v2193
        %v2262 = vpop.f32.mrf.mxu0
        %v2263 = vadd.f32 1.1920929e-07, %v2262
        %v2264 = vpop.f32.mrf.mxu0
        %v2265 = vadd.f32 1.1920929e-07, %v2264
        %2266 = vmatmul.bf16.gmra.mxu0 %v2194
        %v2267 = vpop.f32.mrf.mxu0
        %v2268 = vadd.f32 1.1920929e-07, %v2267
        %v2269 = vpop.f32.mrf.mxu0
        %v2270 = vadd.f32 1.1920929e-07, %v2269
        %2271 = vmatmul.bf16.gmra.mxu0 %v2195
        %v2272 = vpop.f32.mrf.mxu0
        %v2273 = vadd.f32 1.1920929e-07, %v2272
        %v2274 = vpop.f32.mrf.mxu0
        %v2275 = vadd.f32 1.1920929e-07, %v2274
        %2276 = vmatmul.bf16.gmra.mxu0 %v2196
        %v2277 = vpop.f32.mrf.mxu0
        %v2278 = vadd.f32 1.1920929e-07, %v2277
        %v2279 = vpop.f32.mrf.mxu0
        %v2280 = vadd.f32 1.1920929e-07, %v2279
        %2281 = vmatmul.bf16.gmra.mxu0 %v2197
        %v2282 = vpop.f32.mrf.mxu0
        %v2283 = vadd.f32 1.1920929e-07, %v2282
        %v2284 = vpop.f32.mrf.mxu0
        %v2285 = vadd.f32 1.1920929e-07, %v2284
        %2286 = vdwg.mxu0
        %v2287 = vrsqrt.pop %v2208
        %v2288 = vmul.f32 %v2287, %v2208
        %v2289 = vmul.f32 %v2288, %v2287
        %v2290 = vmul.f32 0.5, %v2289
        %v2291 = vsub.f32 1.5, %v2290
        %v2292 = vmul.f32 %v2287, %v2291
        %vm2293 = vweird.f32 %v2208
        %vm2294 = vweird.f32 %v2287
        %vm2295 = vmor %vm2293, %vm2294
        %v2296 = vsel %vm2295, %v2287, %v2292
        %v2297 = vrsqrt.pop %v2210
        %v2298 = vmul.f32 %v2297, %v2210
        %v2299 = vmul.f32 %v2298, %v2297
        %v2300 = vmul.f32 0.5, %v2299
        %v2301 = vsub.f32 1.5, %v2300
        %v2302 = vmul.f32 %v2297, %v2301
        %vm2303 = vweird.f32 %v2210
        %vm2304 = vweird.f32 %v2297
        %vm2305 = vmor %vm2303, %vm2304
        %v2306 = vsel %vm2305, %v2297, %v2302
        %v2307 = vrsqrt.pop %v2213
        %v2308 = vmul.f32 %v2307, %v2213
        %v2309 = vmul.f32 %v2308, %v2307
        %v2310 = vmul.f32 0.5, %v2309
        %v2311 = vsub.f32 1.5, %v2310
        %v2312 = vmul.f32 %v2307, %v2311
        %vm2313 = vweird.f32 %v2213
        %vm2314 = vweird.f32 %v2307
        %vm2315 = vmor %vm2313, %vm2314
        %v2316 = vsel %vm2315, %v2307, %v2312
        %v2317 = vrsqrt.pop %v2215
        %v2318 = vmul.f32 %v2317, %v2215
        %v2319 = vmul.f32 %v2318, %v2317
        %v2320 = vmul.f32 0.5, %v2319
        %v2321 = vsub.f32 1.5, %v2320
        %v2322 = vmul.f32 %v2317, %v2321
        %vm2323 = vweird.f32 %v2215
        %vm2324 = vweird.f32 %v2317
        %vm2325 = vmor %vm2323, %vm2324
        %v2326 = vsel %vm2325, %v2317, %v2322
        %v2327 = vrsqrt.pop %v2218
        %v2328 = vmul.f32 %v2327, %v2218
        %v2329 = vmul.f32 %v2328, %v2327
        %v2330 = vmul.f32 0.5, %v2329
        %v2331 = vsub.f32 1.5, %v2330
        %v2332 = vmul.f32 %v2327, %v2331
        %vm2333 = vweird.f32 %v2218
        %vm2334 = vweird.f32 %v2327
        %vm2335 = vmor %vm2333, %vm2334
        %v2336 = vsel %vm2335, %v2327, %v2332
        %v2337 = vrsqrt.pop %v2220
        %v2338 = vmul.f32 %v2337, %v2220
        %v2339 = vmul.f32 %v2338, %v2337
        %v2340 = vmul.f32 0.5, %v2339
        %v2341 = vsub.f32 1.5, %v2340
        %v2342 = vmul.f32 %v2337, %v2341
        %vm2343 = vweird.f32 %v2220
        %vm2344 = vweird.f32 %v2337
        %vm2345 = vmor %vm2343, %vm2344
        %v2346 = vsel %vm2345, %v2337, %v2342
        %v2347 = vrsqrt.pop %v2223
        %v2348 = vmul.f32 %v2347, %v2223
        %v2349 = vmul.f32 %v2348, %v2347
        %v2350 = vmul.f32 0.5, %v2349
        %v2351 = vsub.f32 1.5, %v2350
        %v2352 = vmul.f32 %v2347, %v2351
        %vm2353 = vweird.f32 %v2223
        %vm2354 = vweird.f32 %v2347
        %vm2355 = vmor %vm2353, %vm2354
        %v2356 = vsel %vm2355, %v2347, %v2352
        %v2357 = vrsqrt.pop %v2225
        %v2358 = vmul.f32 %v2357, %v2225
        %v2359 = vmul.f32 %v2358, %v2357
        %v2360 = vmul.f32 0.5, %v2359
        %v2361 = vsub.f32 1.5, %v2360
        %v2362 = vmul.f32 %v2357, %v2361
        %vm2363 = vweird.f32 %v2225
        %vm2364 = vweird.f32 %v2357
        %vm2365 = vmor %vm2363, %vm2364
        %v2366 = vsel %vm2365, %v2357, %v2362
        %v2367 = vrsqrt.pop %v2228
        %v2368 = vmul.f32 %v2367, %v2228
        %v2369 = vmul.f32 %v2368, %v2367
        %v2370 = vmul.f32 0.5, %v2369
        %v2371 = vsub.f32 1.5, %v2370
        %v2372 = vmul.f32 %v2367, %v2371
        %vm2373 = vweird.f32 %v2228
        %vm2374 = vweird.f32 %v2367
        %vm2375 = vmor %vm2373, %vm2374
        %v2376 = vsel %vm2375, %v2367, %v2372
        %v2377 = vrsqrt.pop %v2230
        %v2378 = vmul.f32 %v2377, %v2230
        %v2379 = vmul.f32 %v2378, %v2377
        %v2380 = vmul.f32 0.5, %v2379
        %v2381 = vsub.f32 1.5, %v2380
        %v2382 = vmul.f32 %v2377, %v2381
        %vm2383 = vweird.f32 %v2230
        %vm2384 = vweird.f32 %v2377
        %vm2385 = vmor %vm2383, %vm2384
        %v2386 = vsel %vm2385, %v2377, %v2382
        %v2387 = vrsqrt.pop %v2233
        %v2388 = vmul.f32 %v2387, %v2233
        %v2389 = vmul.f32 %v2388, %v2387
        %v2390 = vmul.f32 0.5, %v2389
        %v2391 = vsub.f32 1.5, %v2390
        %v2392 = vmul.f32 %v2387, %v2391
        %vm2393 = vweird.f32 %v2233
        %vm2394 = vweird.f32 %v2387
        %vm2395 = vmor %vm2393, %vm2394
        %v2396 = vsel %vm2395, %v2387, %v2392
        %v2397 = vrsqrt.pop %v2235
        %v2398 = vmul.f32 %v2397, %v2235
        %v2399 = vmul.f32 %v2398, %v2397
        %v2400 = vmul.f32 0.5, %v2399
        %v2401 = vsub.f32 1.5, %v2400
        %v2402 = vmul.f32 %v2397, %v2401
        %vm2403 = vweird.f32 %v2235
        %vm2404 = vweird.f32 %v2397
        %vm2405 = vmor %vm2403, %vm2404
        %v2406 = vsel %vm2405, %v2397, %v2402
        %v2407 = vrsqrt.pop %v2238
        %v2408 = vmul.f32 %v2407, %v2238
        %v2409 = vmul.f32 %v2408, %v2407
        %v2410 = vmul.f32 0.5, %v2409
        %v2411 = vsub.f32 1.5, %v2410
        %v2412 = vmul.f32 %v2407, %v2411
        %vm2413 = vweird.f32 %v2238
        %vm2414 = vweird.f32 %v2407
        %vm2415 = vmor %vm2413, %vm2414
        %v2416 = vsel %vm2415, %v2407, %v2412
        %v2417 = vrsqrt.pop %v2240
        %v2418 = vmul.f32 %v2417, %v2240
        %v2419 = vmul.f32 %v2418, %v2417
        %v2420 = vmul.f32 0.5, %v2419
        %v2421 = vsub.f32 1.5, %v2420
        %v2422 = vmul.f32 %v2417, %v2421
        %vm2423 = vweird.f32 %v2240
        %vm2424 = vweird.f32 %v2417
        %vm2425 = vmor %vm2423, %vm2424
        %v2426 = vsel %vm2425, %v2417, %v2422
        %v2427 = vrsqrt.pop %v2243
        %v2428 = vmul.f32 %v2427, %v2243
        %v2429 = vmul.f32 %v2428, %v2427
        %v2430 = vmul.f32 0.5, %v2429
        %v2431 = vsub.f32 1.5, %v2430
        %v2432 = vmul.f32 %v2427, %v2431
        %vm2433 = vweird.f32 %v2243
        %vm2434 = vweird.f32 %v2427
        %vm2435 = vmor %vm2433, %vm2434
        %v2436 = vsel %vm2435, %v2427, %v2432
        %v2437 = vrsqrt.pop %v2245
        %v2438 = vmul.f32 %v2437, %v2245
        %v2439 = vmul.f32 %v2438, %v2437
        %v2440 = vmul.f32 0.5, %v2439
        %v2441 = vsub.f32 1.5, %v2440
        %v2442 = vmul.f32 %v2437, %v2441
        %vm2443 = vweird.f32 %v2245
        %vm2444 = vweird.f32 %v2437
        %vm2445 = vmor %vm2443, %vm2444
        %v2446 = vsel %vm2445, %v2437, %v2442
        %v2447 = vrsqrt.pop %v2248
        %v2448 = vmul.f32 %v2447, %v2248
        %v2449 = vmul.f32 %v2448, %v2447
        %v2450 = vmul.f32 0.5, %v2449
        %v2451 = vsub.f32 1.5, %v2450
        %v2452 = vmul.f32 %v2447, %v2451
        %vm2453 = vweird.f32 %v2248
        %vm2454 = vweird.f32 %v2447
        %vm2455 = vmor %vm2453, %vm2454
        %v2456 = vsel %vm2455, %v2447, %v2452
        %v2457 = vrsqrt.pop %v2250
        %v2458 = vmul.f32 %v2457, %v2250
        %v2459 = vmul.f32 %v2458, %v2457
        %v2460 = vmul.f32 0.5, %v2459
        %v2461 = vsub.f32 1.5, %v2460
        %v2462 = vmul.f32 %v2457, %v2461
        %vm2463 = vweird.f32 %v2250
        %vm2464 = vweird.f32 %v2457
        %vm2465 = vmor %vm2463, %vm2464
        %v2466 = vsel %vm2465, %v2457, %v2462
        %v2467 = vrsqrt.pop %v2253
        %v2468 = vmul.f32 %v2467, %v2253
        %v2469 = vmul.f32 %v2468, %v2467
        %v2470 = vmul.f32 0.5, %v2469
        %v2471 = vsub.f32 1.5, %v2470
        %v2472 = vmul.f32 %v2467, %v2471
        %vm2473 = vweird.f32 %v2253
        %vm2474 = vweird.f32 %v2467
        %vm2475 = vmor %vm2473, %vm2474
        %v2476 = vsel %vm2475, %v2467, %v2472
        %v2477 = vrsqrt.pop %v2255
        %v2478 = vmul.f32 %v2477, %v2255
        %v2479 = vmul.f32 %v2478, %v2477
        %v2480 = vmul.f32 0.5, %v2479
        %v2481 = vsub.f32 1.5, %v2480
        %v2482 = vmul.f32 %v2477, %v2481
        %vm2483 = vweird.f32 %v2255
        %vm2484 = vweird.f32 %v2477
        %vm2485 = vmor %vm2483, %vm2484
        %v2486 = vsel %vm2485, %v2477, %v2482
        %v2487 = vrsqrt.pop %v2258
        %v2488 = vmul.f32 %v2487, %v2258
        %v2489 = vmul.f32 %v2488, %v2487
        %v2490 = vmul.f32 0.5, %v2489
        %v2491 = vsub.f32 1.5, %v2490
        %v2492 = vmul.f32 %v2487, %v2491
        %vm2493 = vweird.f32 %v2258
        %vm2494 = vweird.f32 %v2487
        %vm2495 = vmor %vm2493, %vm2494
        %v2496 = vsel %vm2495, %v2487, %v2492
        %v2497 = vrsqrt.pop %v2260
        %v2498 = vmul.f32 %v2497, %v2260
        %v2499 = vmul.f32 %v2498, %v2497
        %v2500 = vmul.f32 0.5, %v2499
        %v2501 = vsub.f32 1.5, %v2500
        %v2502 = vmul.f32 %v2497, %v2501
        %vm2503 = vweird.f32 %v2260
        %vm2504 = vweird.f32 %v2497
        %vm2505 = vmor %vm2503, %vm2504
        %v2506 = vsel %vm2505, %v2497, %v2502
        %v2507 = vrsqrt.pop %v2263
        %v2508 = vmul.f32 %v2507, %v2263
        %v2509 = vmul.f32 %v2508, %v2507
        %v2510 = vmul.f32 0.5, %v2509
        %v2511 = vsub.f32 1.5, %v2510
        %v2512 = vmul.f32 %v2507, %v2511
        %vm2513 = vweird.f32 %v2263
        %vm2514 = vweird.f32 %v2507
        %vm2515 = vmor %vm2513, %vm2514
        %v2516 = vsel %vm2515, %v2507, %v2512
        %v2517 = vrsqrt.pop %v2265
        %v2518 = vmul.f32 %v2517, %v2265
        %v2519 = vmul.f32 %v2518, %v2517
        %v2520 = vmul.f32 0.5, %v2519
        %v2521 = vsub.f32 1.5, %v2520
        %v2522 = vmul.f32 %v2517, %v2521
        %vm2523 = vweird.f32 %v2265
        %vm2524 = vweird.f32 %v2517
        %vm2525 = vmor %vm2523, %vm2524
        %v2526 = vsel %vm2525, %v2517, %v2522
        %v2527 = vrsqrt.pop %v2268
        %v2528 = vmul.f32 %v2527, %v2268
        %v2529 = vmul.f32 %v2528, %v2527
        %v2530 = vmul.f32 0.5, %v2529
        %v2531 = vsub.f32 1.5, %v2530
        %v2532 = vmul.f32 %v2527, %v2531
        %vm2533 = vweird.f32 %v2268
        %vm2534 = vweird.f32 %v2527
        %vm2535 = vmor %vm2533, %vm2534
        %v2536 = vsel %vm2535, %v2527, %v2532
        %v2537 = vrsqrt.pop %v2270
        %v2538 = vmul.f32 %v2537, %v2270
        %v2539 = vmul.f32 %v2538, %v2537
        %v2540 = vmul.f32 0.5, %v2539
        %v2541 = vsub.f32 1.5, %v2540
        %v2542 = vmul.f32 %v2537, %v2541
        %vm2543 = vweird.f32 %v2270
        %vm2544 = vweird.f32 %v2537
        %vm2545 = vmor %vm2543, %vm2544
        %v2546 = vsel %vm2545, %v2537, %v2542
        %v2547 = vrsqrt.pop %v2273
        %v2548 = vmul.f32 %v2547, %v2273
        %v2549 = vmul.f32 %v2548, %v2547
        %v2550 = vmul.f32 0.5, %v2549
        %v2551 = vsub.f32 1.5, %v2550
        %v2552 = vmul.f32 %v2547, %v2551
        %vm2553 = vweird.f32 %v2273
        %vm2554 = vweird.f32 %v2547
        %vm2555 = vmor %vm2553, %vm2554
        %v2556 = vsel %vm2555, %v2547, %v2552
        %v2557 = vrsqrt.pop %v2275
        %v2558 = vmul.f32 %v2557, %v2275
        %v2559 = vmul.f32 %v2558, %v2557
        %v2560 = vmul.f32 0.5, %v2559
        %v2561 = vsub.f32 1.5, %v2560
        %v2562 = vmul.f32 %v2557, %v2561
        %vm2563 = vweird.f32 %v2275
        %vm2564 = vweird.f32 %v2557
        %vm2565 = vmor %vm2563, %vm2564
        %v2566 = vsel %vm2565, %v2557, %v2562
        %v2567 = vrsqrt.pop %v2278
        %v2568 = vmul.f32 %v2567, %v2278
        %v2569 = vmul.f32 %v2568, %v2567
        %v2570 = vmul.f32 0.5, %v2569
        %v2571 = vsub.f32 1.5, %v2570
        %v2572 = vmul.f32 %v2567, %v2571
        %vm2573 = vweird.f32 %v2278
        %vm2574 = vweird.f32 %v2567
        %vm2575 = vmor %vm2573, %vm2574
        %v2576 = vsel %vm2575, %v2567, %v2572
        %v2577 = vrsqrt.pop %v2280
        %v2578 = vmul.f32 %v2577, %v2280
        %v2579 = vmul.f32 %v2578, %v2577
        %v2580 = vmul.f32 0.5, %v2579
        %v2581 = vsub.f32 1.5, %v2580
        %v2582 = vmul.f32 %v2577, %v2581
        %vm2583 = vweird.f32 %v2280
        %vm2584 = vweird.f32 %v2577
        %vm2585 = vmor %vm2583, %vm2584
        %v2586 = vsel %vm2585, %v2577, %v2582
        %v2587 = vrsqrt.pop %v2283
        %v2588 = vmul.f32 %v2587, %v2283
        %v2589 = vmul.f32 %v2588, %v2587
        %v2590 = vmul.f32 0.5, %v2589
        %v2591 = vsub.f32 1.5, %v2590
        %v2592 = vmul.f32 %v2587, %v2591
        %vm2593 = vweird.f32 %v2283
        %vm2594 = vweird.f32 %v2587
        %vm2595 = vmor %vm2593, %vm2594
        %v2596 = vsel %vm2595, %v2587, %v2592
        %v2597 = vrsqrt.pop %v2285
        %v2598 = vmul.f32 %v2597, %v2285
        %v2599 = vmul.f32 %v2598, %v2597
        %v2600 = vmul.f32 0.5, %v2599
        %v2601 = vsub.f32 1.5, %v2600
        %v2602 = vmul.f32 %v2597, %v2601
        %vm2603 = vweird.f32 %v2285
        %vm2604 = vweird.f32 %v2597
        %vm2605 = vmor %vm2603, %vm2604
        %v2606 = vsel %vm2605, %v2597, %v2602
        %v2607 = vpack.c.bf16 %v2306, %v2296
        %v2608 = vpack.c.bf16 %v2326, %v2316
        %v2609 = vpack.c.bf16 %v2346, %v2336
        %v2610 = vpack.c.bf16 %v2366, %v2356
        %v2611 = vpack.c.bf16 %v2386, %v2376
        %v2612 = vpack.c.bf16 %v2406, %v2396
        %v2613 = vpack.c.bf16 %v2426, %v2416
        %v2614 = vpack.c.bf16 %v2446, %v2436
        %v2615 = vpack.c.bf16 %v2466, %v2456
        %v2616 = vpack.c.bf16 %v2486, %v2476
        %v2617 = vpack.c.bf16 %v2506, %v2496
        %v2618 = vpack.c.bf16 %v2526, %v2516
        %v2619 = vpack.c.bf16 %v2546, %v2536
        %v2620 = vpack.c.bf16 %v2566, %v2556
        %v2621 = vpack.c.bf16 %v2586, %v2576
        %v2622 = vpack.c.bf16 %v2606, %v2596
        %2623 = vmatpush.bf16.msra.mxu0 %v2052
        %2624 = vmatpush.bf16.msra.mxu0 %v2051
        %2625 = vmatpush.bf16.msra.mxu0 %v2050
        %2626 = vmatpush.bf16.msra.mxu0 %v2049
        %2627 = vmatpush.bf16.msra.mxu0 %v2048
        %2628 = vmatpush.bf16.msra.mxu0 %v2047
        %2629 = vmatpush.bf16.msra.mxu0 %v2046
        %2630 = vmatpush.bf16.msra.mxu0 %v2045
        %2631 = vmatmul.bf16.gmra.mxu0 %v2607
        %v2632 = vpop.f32.mrf.mxu0
        %v2633 = vadd.f32 0.0, %v2632
        %v2634 = vpop.f32.mrf.mxu0
        %v2635 = vadd.f32 0.0, %v2634
        %2636 = vmatmul.bf16.gmra.mxu0 %v2608
        %v2637 = vpop.f32.mrf.mxu0
        %v2638 = vadd.f32 0.0, %v2637
        %v2639 = vpop.f32.mrf.mxu0
        %v2640 = vadd.f32 0.0, %v2639
        %2641 = vmatmul.bf16.gmra.mxu0 %v2609
        %v2642 = vpop.f32.mrf.mxu0
        %v2643 = vadd.f32 0.0, %v2642
        %v2644 = vpop.f32.mrf.mxu0
        %v2645 = vadd.f32 0.0, %v2644
        %2646 = vmatmul.bf16.gmra.mxu0 %v2610
        %v2647 = vpop.f32.mrf.mxu0
        %v2648 = vadd.f32 0.0, %v2647
        %v2649 = vpop.f32.mrf.mxu0
        %v2650 = vadd.f32 0.0, %v2649
        %2651 = vmatmul.bf16.gmra.mxu0 %v2611
        %v2652 = vpop.f32.mrf.mxu0
        %v2653 = vadd.f32 0.0, %v2652
        %v2654 = vpop.f32.mrf.mxu0
        %v2655 = vadd.f32 0.0, %v2654
        %2656 = vmatmul.bf16.gmra.mxu0 %v2612
        %v2657 = vpop.f32.mrf.mxu0
        %v2658 = vadd.f32 0.0, %v2657
        %v2659 = vpop.f32.mrf.mxu0
        %v2660 = vadd.f32 0.0, %v2659
        %2661 = vmatmul.bf16.gmra.mxu0 %v2613
        %v2662 = vpop.f32.mrf.mxu0
        %v2663 = vadd.f32 0.0, %v2662
        %v2664 = vpop.f32.mrf.mxu0
        %v2665 = vadd.f32 0.0, %v2664
        %2666 = vmatmul.bf16.gmra.mxu0 %v2614
        %v2667 = vpop.f32.mrf.mxu0
        %v2668 = vadd.f32 0.0, %v2667
        %v2669 = vpop.f32.mrf.mxu0
        %v2670 = vadd.f32 0.0, %v2669
        %2671 = vmatmul.bf16.gmra.mxu0 %v2615
        %v2672 = vpop.f32.mrf.mxu0
        %v2673 = vadd.f32 0.0, %v2672
        %v2674 = vpop.f32.mrf.mxu0
        %v2675 = vadd.f32 0.0, %v2674
        %2676 = vmatmul.bf16.gmra.mxu0 %v2616
        %v2677 = vpop.f32.mrf.mxu0
        %v2678 = vadd.f32 0.0, %v2677
        %v2679 = vpop.f32.mrf.mxu0
        %v2680 = vadd.f32 0.0, %v2679
        %2681 = vmatmul.bf16.gmra.mxu0 %v2617
        %v2682 = vpop.f32.mrf.mxu0
        %v2683 = vadd.f32 0.0, %v2682
        %v2684 = vpop.f32.mrf.mxu0
        %v2685 = vadd.f32 0.0, %v2684
        %2686 = vmatmul.bf16.gmra.mxu0 %v2618
        %v2687 = vpop.f32.mrf.mxu0
        %v2688 = vadd.f32 0.0, %v2687
        %v2689 = vpop.f32.mrf.mxu0
        %v2690 = vadd.f32 0.0, %v2689
        %2691 = vmatmul.bf16.gmra.mxu0 %v2619
        %v2692 = vpop.f32.mrf.mxu0
        %v2693 = vadd.f32 0.0, %v2692
        %v2694 = vpop.f32.mrf.mxu0
        %v2695 = vadd.f32 0.0, %v2694
        %2696 = vmatmul.bf16.gmra.mxu0 %v2620
        %v2697 = vpop.f32.mrf.mxu0
        %v2698 = vadd.f32 0.0, %v2697
        %v2699 = vpop.f32.mrf.mxu0
        %v2700 = vadd.f32 0.0, %v2699
        %2701 = vmatmul.bf16.gmra.mxu0 %v2621
        %v2702 = vpop.f32.mrf.mxu0
        %v2703 = vadd.f32 0.0, %v2702
        %v2704 = vpop.f32.mrf.mxu0
        %v2705 = vadd.f32 0.0, %v2704
        %2706 = vmatmul.bf16.gmra.mxu0 %v2622
        %v2707 = vpop.f32.mrf.mxu0
        %v2708 = vadd.f32 0.0, %v2707
        %v2709 = vpop.f32.mrf.mxu0
        %v2710 = vadd.f32 0.0, %v2709
        %2711 = vdwg.mxu0
        %v2712 = vmul.f32 %v865, %v2071
        %v2713 = vmul.f32 %v867, %v2073
        %v2714 = vmul.f32 %v870, %v2076
        %v2715 = vmul.f32 %v872, %v2078
        %v2716 = vmul.f32 %v875, %v2081
        %v2717 = vmul.f32 %v877, %v2083
        %v2718 = vmul.f32 %v880, %v2086
        %v2719 = vmul.f32 %v882, %v2088
        %v2720 = vmul.f32 %v885, %v2091
        %v2721 = vmul.f32 %v887, %v2093
        %v2722 = vmul.f32 %v890, %v2096
        %v2723 = vmul.f32 %v892, %v2098
        %v2724 = vmul.f32 %v895, %v2101
        %v2725 = vmul.f32 %v897, %v2103
        %v2726 = vmul.f32 %v900, %v2106
        %v2727 = vmul.f32 %v902, %v2108
        %v2728 = vmul.f32 %v905, %v2111
        %v2729 = vmul.f32 %v907, %v2113
        %v2730 = vmul.f32 %v910, %v2116
        %v2731 = vmul.f32 %v912, %v2118
        %v2732 = vmul.f32 %v915, %v2121
        %v2733 = vmul.f32 %v917, %v2123
        %v2734 = vmul.f32 %v920, %v2126
        %v2735 = vmul.f32 %v922, %v2128
        %v2736 = vmul.f32 %v925, %v2131
        %v2737 = vmul.f32 %v927, %v2133
        %v2738 = vmul.f32 %v930, %v2136
        %v2739 = vmul.f32 %v932, %v2138
        %v2740 = vmul.f32 %v935, %v2141
        %v2741 = vmul.f32 %v937, %v2143
        %v2742 = vmul.f32 %v940, %v2146
        %v2743 = vmul.f32 %v942, %v2148
        %v2744 = vmul.f32 %v2712, %v1332
        %v2745 = vmul.f32 %v2713, %v1333
        %v2746 = vmul.f32 %v2714, %v1334
        %v2747 = vmul.f32 %v2715, %v1335
        %v2748 = vmul.f32 %v2716, %v1336
        %v2749 = vmul.f32 %v2717, %v1337
        %v2750 = vmul.f32 %v2718, %v1338
        %v2751 = vmul.f32 %v2719, %v1339
        %v2752 = vmul.f32 %v2720, %v1340
        %v2753 = vmul.f32 %v2721, %v1341
        %v2754 = vmul.f32 %v2722, %v1342
        %v2755 = vmul.f32 %v2723, %v1343
        %v2756 = vmul.f32 %v2724, %v1344
        %v2757 = vmul.f32 %v2725, %v1345
        %v2758 = vmul.f32 %v2726, %v1346
        %v2759 = vmul.f32 %v2727, %v1347
        %v2760 = vmul.f32 %v2728, %v1348
        %v2761 = vmul.f32 %v2729, %v1349
        %v2762 = vmul.f32 %v2730, %v1350
        %v2763 = vmul.f32 %v2731, %v1351
        %v2764 = vmul.f32 %v2732, %v1352
        %v2765 = vmul.f32 %v2733, %v1353
        %v2766 = vmul.f32 %v2734, %v1354
        %v2767 = vmul.f32 %v2735, %v1355
        %v2768 = vmul.f32 %v2736, %v1356
        %v2769 = vmul.f32 %v2737, %v1357
        %v2770 = vmul.f32 %v2738, %v1358
        %v2771 = vmul.f32 %v2739, %v1359
        %v2772 = vmul.f32 %v2740, %v1360
        %v2773 = vmul.f32 %v2741, %v1361
        %v2774 = vmul.f32 %v2742, %v1362
        %v2775 = vmul.f32 %v2743, %v1363
        %v2776 = vmul.f32 %v1132, %v2071
        %v2777 = vmul.f32 %v1134, %v2073
        %v2778 = vmul.f32 %v1137, %v2076
        %v2779 = vmul.f32 %v1139, %v2078
        %v2780 = vmul.f32 %v1142, %v2081
        %v2781 = vmul.f32 %v1144, %v2083
        %v2782 = vmul.f32 %v1147, %v2086
        %v2783 = vmul.f32 %v1149, %v2088
        %v2784 = vmul.f32 %v1152, %v2091
        %v2785 = vmul.f32 %v1154, %v2093
        %v2786 = vmul.f32 %v1157, %v2096
        %v2787 = vmul.f32 %v1159, %v2098
        %v2788 = vmul.f32 %v1162, %v2101
        %v2789 = vmul.f32 %v1164, %v2103
        %v2790 = vmul.f32 %v1167, %v2106
        %v2791 = vmul.f32 %v1169, %v2108
        %v2792 = vmul.f32 %v1172, %v2111
        %v2793 = vmul.f32 %v1174, %v2113
        %v2794 = vmul.f32 %v1177, %v2116
        %v2795 = vmul.f32 %v1179, %v2118
        %v2796 = vmul.f32 %v1182, %v2121
        %v2797 = vmul.f32 %v1184, %v2123
        %v2798 = vmul.f32 %v1187, %v2126
        %v2799 = vmul.f32 %v1189, %v2128
        %v2800 = vmul.f32 %v1192, %v2131
        %v2801 = vmul.f32 %v1194, %v2133
        %v2802 = vmul.f32 %v1197, %v2136
        %v2803 = vmul.f32 %v1199, %v2138
        %v2804 = vmul.f32 %v1202, %v2141
        %v2805 = vmul.f32 %v1204, %v2143
        %v2806 = vmul.f32 %v1207, %v2146
        %v2807 = vmul.f32 %v1209, %v2148
        %v2808 = vmul.f32 %v2776, %v1396
        %v2809 = vmul.f32 %v2777, %v1397
        %v2810 = vmul.f32 %v2778, %v1398
        %v2811 = vmul.f32 %v2779, %v1399
        %v2812 = vmul.f32 %v2780, %v1400
        %v2813 = vmul.f32 %v2781, %v1401
        %v2814 = vmul.f32 %v2782, %v1402
        %v2815 = vmul.f32 %v2783, %v1403
        %v2816 = vmul.f32 %v2784, %v1404
        %v2817 = vmul.f32 %v2785, %v1405
        %v2818 = vmul.f32 %v2786, %v1406
        %v2819 = vmul.f32 %v2787, %v1407
        %v2820 = vmul.f32 %v2788, %v1408
        %v2821 = vmul.f32 %v2789, %v1409
        %v2822 = vmul.f32 %v2790, %v1410
        %v2823 = vmul.f32 %v2791, %v1411
        %v2824 = vmul.f32 %v2792, %v1412
        %v2825 = vmul.f32 %v2793, %v1413
        %v2826 = vmul.f32 %v2794, %v1414
        %v2827 = vmul.f32 %v2795, %v1415
        %v2828 = vmul.f32 %v2796, %v1416
        %v2829 = vmul.f32 %v2797, %v1417
        %v2830 = vmul.f32 %v2798, %v1418
        %v2831 = vmul.f32 %v2799, %v1419
        %v2832 = vmul.f32 %v2800, %v1420
        %v2833 = vmul.f32 %v2801, %v1421
        %v2834 = vmul.f32 %v2802, %v1422
        %v2835 = vmul.f32 %v2803, %v1423
        %v2836 = vmul.f32 %v2804, %v1424
        %v2837 = vmul.f32 %v2805, %v1425
        %v2838 = vmul.f32 %v2806, %v1426
        %v2839 = vmul.f32 %v2807, %v1427
        %v2840 = vadd.f32 %v2744, %v2808
        %v2841 = vadd.f32 %v2745, %v2809
        %v2842 = vadd.f32 %v2746, %v2810
        %v2843 = vadd.f32 %v2747, %v2811
        %v2844 = vadd.f32 %v2748, %v2812
        %v2845 = vadd.f32 %v2749, %v2813
        %v2846 = vadd.f32 %v2750, %v2814
        %v2847 = vadd.f32 %v2751, %v2815
        %v2848 = vadd.f32 %v2752, %v2816
        %v2849 = vadd.f32 %v2753, %v2817
        %v2850 = vadd.f32 %v2754, %v2818
        %v2851 = vadd.f32 %v2755, %v2819
        %v2852 = vadd.f32 %v2756, %v2820
        %v2853 = vadd.f32 %v2757, %v2821
        %v2854 = vadd.f32 %v2758, %v2822
        %v2855 = vadd.f32 %v2759, %v2823
        %v2856 = vadd.f32 %v2760, %v2824
        %v2857 = vadd.f32 %v2761, %v2825
        %v2858 = vadd.f32 %v2762, %v2826
        %v2859 = vadd.f32 %v2763, %v2827
        %v2860 = vadd.f32 %v2764, %v2828
        %v2861 = vadd.f32 %v2765, %v2829
        %v2862 = vadd.f32 %v2766, %v2830
        %v2863 = vadd.f32 %v2767, %v2831
        %v2864 = vadd.f32 %v2768, %v2832
        %v2865 = vadd.f32 %v2769, %v2833
        %v2866 = vadd.f32 %v2770, %v2834
        %v2867 = vadd.f32 %v2771, %v2835
        %v2868 = vadd.f32 %v2772, %v2836
        %v2869 = vadd.f32 %v2773, %v2837
        %v2870 = vadd.f32 %v2774, %v2838
        %v2871 = vadd.f32 %v2775, %v2839
        %v2872 = vpack.c.bf16 %v2840, %v2840
        %v2873 = vpack.c.bf16 %v2841, %v2841
        %v2874 = vpack.c.bf16 %v2842, %v2842
        %v2875 = vpack.c.bf16 %v2843, %v2843
        %v2876 = vpack.c.bf16 %v2844, %v2844
        %v2877 = vpack.c.bf16 %v2845, %v2845
        %v2878 = vpack.c.bf16 %v2846, %v2846
        %v2879 = vpack.c.bf16 %v2847, %v2847
        %v2880 = vpack.c.bf16 %v2848, %v2848
        %v2881 = vpack.c.bf16 %v2849, %v2849
        %v2882 = vpack.c.bf16 %v2850, %v2850
        %v2883 = vpack.c.bf16 %v2851, %v2851
        %v2884 = vpack.c.bf16 %v2852, %v2852
        %v2885 = vpack.c.bf16 %v2853, %v2853
        %v2886 = vpack.c.bf16 %v2854, %v2854
        %v2887 = vpack.c.bf16 %v2855, %v2855
        %v2888 = vpack.c.bf16 %v2856, %v2856
        %v2889 = vpack.c.bf16 %v2857, %v2857
        %v2890 = vpack.c.bf16 %v2858, %v2858
        %v2891 = vpack.c.bf16 %v2859, %v2859
        %v2892 = vpack.c.bf16 %v2860, %v2860
        %v2893 = vpack.c.bf16 %v2861, %v2861
        %v2894 = vpack.c.bf16 %v2862, %v2862
        %v2895 = vpack.c.bf16 %v2863, %v2863
        %v2896 = vpack.c.bf16 %v2864, %v2864
        %v2897 = vpack.c.bf16 %v2865, %v2865
        %v2898 = vpack.c.bf16 %v2866, %v2866
        %v2899 = vpack.c.bf16 %v2867, %v2867
        %v2900 = vpack.c.bf16 %v2868, %v2868
        %v2901 = vpack.c.bf16 %v2869, %v2869
        %v2902 = vpack.c.bf16 %v2870, %v2870
        %v2903 = vpack.c.bf16 %v2871, %v2871
        %2904 = vst [vmem:[%s450] sm:$0xf] %v2872
        %2905 = vst [vmem:[%s450 + $0x4] sm:$0xf] %v2873
        %2906 = vst [vmem:[%s450 + $0x8] sm:$0xf] %v2874
        %2907 = vst [vmem:[%s450 + $0xc] sm:$0xf] %v2875
        %2908 = vst [vmem:[%s450 + $0x10] sm:$0xf] %v2876
        %2909 = vst [vmem:[%s450 + $0x14] sm:$0xf] %v2877
        %2910 = vst [vmem:[%s450 + $0x18] sm:$0xf] %v2878
        %2911 = vst [vmem:[%s450 + $0x1c] sm:$0xf] %v2879
        %2912 = vst [vmem:[%s450 + $0x20] sm:$0xf] %v2880
        %2913 = vst [vmem:[%s450 + $0x24] sm:$0xf] %v2881
        %2914 = vst [vmem:[%s450 + $0x28] sm:$0xf] %v2882
        %2915 = vst [vmem:[%s450 + $0x2c] sm:$0xf] %v2883
        %2916 = vst [vmem:[%s450 + $0x30] sm:$0xf] %v2884
        %2917 = vst [vmem:[%s450 + $0x34] sm:$0xf] %v2885
        %2918 = vst [vmem:[%s450 + $0x38] sm:$0xf] %v2886
        %2919 = vst [vmem:[%s450 + $0x3c] sm:$0xf] %v2887
        %2920 = vst [vmem:[%s450 + $0x40] sm:$0xf] %v2888
        %2921 = vst [vmem:[%s450 + $0x44] sm:$0xf] %v2889
        %2922 = vst [vmem:[%s450 + $0x48] sm:$0xf] %v2890
        %2923 = vst [vmem:[%s450 + $0x4c] sm:$0xf] %v2891
        %2924 = vst [vmem:[%s450 + $0x50] sm:$0xf] %v2892
        %2925 = vst [vmem:[%s450 + $0x54] sm:$0xf] %v2893
        %2926 = vst [vmem:[%s450 + $0x58] sm:$0xf] %v2894
        %2927 = vst [vmem:[%s450 + $0x5c] sm:$0xf] %v2895
        %2928 = vst [vmem:[%s450 + $0x60] sm:$0xf] %v2896
        %2929 = vst [vmem:[%s450 + $0x64] sm:$0xf] %v2897
        %2930 = vst [vmem:[%s450 + $0x68] sm:$0xf] %v2898
        %2931 = vst [vmem:[%s450 + $0x6c] sm:$0xf] %v2899
        %2932 = vst [vmem:[%s450 + $0x70] sm:$0xf] %v2900
        %2933 = vst [vmem:[%s450 + $0x74] sm:$0xf] %v2901
        %2934 = vst [vmem:[%s450 + $0x78] sm:$0xf] %v2902
        %2935 = vst [vmem:[%s450 + $0x7c] sm:$0xf] %v2903
        %v2936 = vmul.f32 %v954, %v2633
        %v2937 = vmul.f32 %v956, %v2635
        %v2938 = vmul.f32 %v959, %v2638
        %v2939 = vmul.f32 %v961, %v2640
        %v2940 = vmul.f32 %v964, %v2643
        %v2941 = vmul.f32 %v966, %v2645
        %v2942 = vmul.f32 %v969, %v2648
        %v2943 = vmul.f32 %v971, %v2650
        %v2944 = vmul.f32 %v974, %v2653
        %v2945 = vmul.f32 %v976, %v2655
        %v2946 = vmul.f32 %v979, %v2658
        %v2947 = vmul.f32 %v981, %v2660
        %v2948 = vmul.f32 %v984, %v2663
        %v2949 = vmul.f32 %v986, %v2665
        %v2950 = vmul.f32 %v989, %v2668
        %v2951 = vmul.f32 %v991, %v2670
        %v2952 = vmul.f32 %v994, %v2673
        %v2953 = vmul.f32 %v996, %v2675
        %v2954 = vmul.f32 %v999, %v2678
        %v2955 = vmul.f32 %v1001, %v2680
        %v2956 = vmul.f32 %v1004, %v2683
        %v2957 = vmul.f32 %v1006, %v2685
        %v2958 = vmul.f32 %v1009, %v2688
        %v2959 = vmul.f32 %v1011, %v2690
        %v2960 = vmul.f32 %v1014, %v2693
        %v2961 = vmul.f32 %v1016, %v2695
        %v2962 = vmul.f32 %v1019, %v2698
        %v2963 = vmul.f32 %v1021, %v2700
        %v2964 = vmul.f32 %v1024, %v2703
        %v2965 = vmul.f32 %v1026, %v2705
        %v2966 = vmul.f32 %v1029, %v2708
        %v2967 = vmul.f32 %v1031, %v2710
        %v2968 = vmul.f32 %v2936, %v1332
        %v2969 = vmul.f32 %v2937, %v1333
        %v2970 = vmul.f32 %v2938, %v1334
        %v2971 = vmul.f32 %v2939, %v1335
        %v2972 = vmul.f32 %v2940, %v1336
        %v2973 = vmul.f32 %v2941, %v1337
        %v2974 = vmul.f32 %v2942, %v1338
        %v2975 = vmul.f32 %v2943, %v1339
        %v2976 = vmul.f32 %v2944, %v1340
        %v2977 = vmul.f32 %v2945, %v1341
        %v2978 = vmul.f32 %v2946, %v1342
        %v2979 = vmul.f32 %v2947, %v1343
        %v2980 = vmul.f32 %v2948, %v1344
        %v2981 = vmul.f32 %v2949, %v1345
        %v2982 = vmul.f32 %v2950, %v1346
        %v2983 = vmul.f32 %v2951, %v1347
        %v2984 = vmul.f32 %v2952, %v1348
        %v2985 = vmul.f32 %v2953, %v1349
        %v2986 = vmul.f32 %v2954, %v1350
        %v2987 = vmul.f32 %v2955, %v1351
        %v2988 = vmul.f32 %v2956, %v1352
        %v2989 = vmul.f32 %v2957, %v1353
        %v2990 = vmul.f32 %v2958, %v1354
        %v2991 = vmul.f32 %v2959, %v1355
        %v2992 = vmul.f32 %v2960, %v1356
        %v2993 = vmul.f32 %v2961, %v1357
        %v2994 = vmul.f32 %v2962, %v1358
        %v2995 = vmul.f32 %v2963, %v1359
        %v2996 = vmul.f32 %v2964, %v1360
        %v2997 = vmul.f32 %v2965, %v1361
        %v2998 = vmul.f32 %v2966, %v1362
        %v2999 = vmul.f32 %v2967, %v1363
        %v3000 = vmul.f32 %v1221, %v2633
        %v3001 = vmul.f32 %v1223, %v2635
        %v3002 = vmul.f32 %v1226, %v2638
        %v3003 = vmul.f32 %v1228, %v2640
        %v3004 = vmul.f32 %v1231, %v2643
        %v3005 = vmul.f32 %v1233, %v2645
        %v3006 = vmul.f32 %v1236, %v2648
        %v3007 = vmul.f32 %v1238, %v2650
        %v3008 = vmul.f32 %v1241, %v2653
        %v3009 = vmul.f32 %v1243, %v2655
        %v3010 = vmul.f32 %v1246, %v2658
        %v3011 = vmul.f32 %v1248, %v2660
        %v3012 = vmul.f32 %v1251, %v2663
        %v3013 = vmul.f32 %v1253, %v2665
        %v3014 = vmul.f32 %v1256, %v2668
        %v3015 = vmul.f32 %v1258, %v2670
        %v3016 = vmul.f32 %v1261, %v2673
        %v3017 = vmul.f32 %v1263, %v2675
        %v3018 = vmul.f32 %v1266, %v2678
        %v3019 = vmul.f32 %v1268, %v2680
        %v3020 = vmul.f32 %v1271, %v2683
        %v3021 = vmul.f32 %v1273, %v2685
        %v3022 = vmul.f32 %v1276, %v2688
        %v3023 = vmul.f32 %v1278, %v2690
        %v3024 = vmul.f32 %v1281, %v2693
        %v3025 = vmul.f32 %v1283, %v2695
        %v3026 = vmul.f32 %v1286, %v2698
        %v3027 = vmul.f32 %v1288, %v2700
        %v3028 = vmul.f32 %v1291, %v2703
        %v3029 = vmul.f32 %v1293, %v2705
        %v3030 = vmul.f32 %v1296, %v2708
        %v3031 = vmul.f32 %v1298, %v2710
        %v3032 = vmul.f32 %v3000, %v1396
        %v3033 = vmul.f32 %v3001, %v1397
        %v3034 = vmul.f32 %v3002, %v1398
        %v3035 = vmul.f32 %v3003, %v1399
        %v3036 = vmul.f32 %v3004, %v1400
        %v3037 = vmul.f32 %v3005, %v1401
        %v3038 = vmul.f32 %v3006, %v1402
        %v3039 = vmul.f32 %v3007, %v1403
        %v3040 = vmul.f32 %v3008, %v1404
        %v3041 = vmul.f32 %v3009, %v1405
        %v3042 = vmul.f32 %v3010, %v1406
        %v3043 = vmul.f32 %v3011, %v1407
        %v3044 = vmul.f32 %v3012, %v1408
        %v3045 = vmul.f32 %v3013, %v1409
        %v3046 = vmul.f32 %v3014, %v1410
        %v3047 = vmul.f32 %v3015, %v1411
        %v3048 = vmul.f32 %v3016, %v1412
        %v3049 = vmul.f32 %v3017, %v1413
        %v3050 = vmul.f32 %v3018, %v1414
        %v3051 = vmul.f32 %v3019, %v1415
        %v3052 = vmul.f32 %v3020, %v1416
        %v3053 = vmul.f32 %v3021, %v1417
        %v3054 = vmul.f32 %v3022, %v1418
        %v3055 = vmul.f32 %v3023, %v1419
        %v3056 = vmul.f32 %v3024, %v1420
        %v3057 = vmul.f32 %v3025, %v1421
        %v3058 = vmul.f32 %v3026, %v1422
        %v3059 = vmul.f32 %v3027, %v1423
        %v3060 = vmul.f32 %v3028, %v1424
        %v3061 = vmul.f32 %v3029, %v1425
        %v3062 = vmul.f32 %v3030, %v1426
        %v3063 = vmul.f32 %v3031, %v1427
        %v3064 = vadd.f32 %v2968, %v3032
        %v3065 = vadd.f32 %v2969, %v3033
        %v3066 = vadd.f32 %v2970, %v3034
        %v3067 = vadd.f32 %v2971, %v3035
        %v3068 = vadd.f32 %v2972, %v3036
        %v3069 = vadd.f32 %v2973, %v3037
        %v3070 = vadd.f32 %v2974, %v3038
        %v3071 = vadd.f32 %v2975, %v3039
        %v3072 = vadd.f32 %v2976, %v3040
        %v3073 = vadd.f32 %v2977, %v3041
        %v3074 = vadd.f32 %v2978, %v3042
        %v3075 = vadd.f32 %v2979, %v3043
        %v3076 = vadd.f32 %v2980, %v3044
        %v3077 = vadd.f32 %v2981, %v3045
        %v3078 = vadd.f32 %v2982, %v3046
        %v3079 = vadd.f32 %v2983, %v3047
        %v3080 = vadd.f32 %v2984, %v3048
        %v3081 = vadd.f32 %v2985, %v3049
        %v3082 = vadd.f32 %v2986, %v3050
        %v3083 = vadd.f32 %v2987, %v3051
        %v3084 = vadd.f32 %v2988, %v3052
        %v3085 = vadd.f32 %v2989, %v3053
        %v3086 = vadd.f32 %v2990, %v3054
        %v3087 = vadd.f32 %v2991, %v3055
        %v3088 = vadd.f32 %v2992, %v3056
        %v3089 = vadd.f32 %v2993, %v3057
        %v3090 = vadd.f32 %v2994, %v3058
        %v3091 = vadd.f32 %v2995, %v3059
        %v3092 = vadd.f32 %v2996, %v3060
        %v3093 = vadd.f32 %v2997, %v3061
        %v3094 = vadd.f32 %v2998, %v3062
        %v3095 = vadd.f32 %v2999, %v3063
        %v3096 = vpack.c.bf16 %v3064, %v3064
        %v3097 = vpack.c.bf16 %v3065, %v3065
        %v3098 = vpack.c.bf16 %v3066, %v3066
        %v3099 = vpack.c.bf16 %v3067, %v3067
        %v3100 = vpack.c.bf16 %v3068, %v3068
        %v3101 = vpack.c.bf16 %v3069, %v3069
        %v3102 = vpack.c.bf16 %v3070, %v3070
        %v3103 = vpack.c.bf16 %v3071, %v3071
        %v3104 = vpack.c.bf16 %v3072, %v3072
        %v3105 = vpack.c.bf16 %v3073, %v3073
        %v3106 = vpack.c.bf16 %v3074, %v3074
        %v3107 = vpack.c.bf16 %v3075, %v3075
        %v3108 = vpack.c.bf16 %v3076, %v3076
        %v3109 = vpack.c.bf16 %v3077, %v3077
        %v3110 = vpack.c.bf16 %v3078, %v3078
        %v3111 = vpack.c.bf16 %v3079, %v3079
        %v3112 = vpack.c.bf16 %v3080, %v3080
        %v3113 = vpack.c.bf16 %v3081, %v3081
        %v3114 = vpack.c.bf16 %v3082, %v3082
        %v3115 = vpack.c.bf16 %v3083, %v3083
        %v3116 = vpack.c.bf16 %v3084, %v3084
        %v3117 = vpack.c.bf16 %v3085, %v3085
        %v3118 = vpack.c.bf16 %v3086, %v3086
        %v3119 = vpack.c.bf16 %v3087, %v3087
        %v3120 = vpack.c.bf16 %v3088, %v3088
        %v3121 = vpack.c.bf16 %v3089, %v3089
        %v3122 = vpack.c.bf16 %v3090, %v3090
        %v3123 = vpack.c.bf16 %v3091, %v3091
        %v3124 = vpack.c.bf16 %v3092, %v3092
        %v3125 = vpack.c.bf16 %v3093, %v3093
        %v3126 = vpack.c.bf16 %v3094, %v3094
        %v3127 = vpack.c.bf16 %v3095, %v3095
        %3128 = vst [vmem:[%s457] sm:$0xf] %v3096
        %3129 = vst [vmem:[%s457 + $0x4] sm:$0xf] %v3097
        %3130 = vst [vmem:[%s457 + $0x8] sm:$0xf] %v3098
        %3131 = vst [vmem:[%s457 + $0xc] sm:$0xf] %v3099
        %3132 = vst [vmem:[%s457 + $0x10] sm:$0xf] %v3100
        %3133 = vst [vmem:[%s457 + $0x14] sm:$0xf] %v3101
        %3134 = vst [vmem:[%s457 + $0x18] sm:$0xf] %v3102
        %3135 = vst [vmem:[%s457 + $0x1c] sm:$0xf] %v3103
        %3136 = vst [vmem:[%s457 + $0x20] sm:$0xf] %v3104
        %3137 = vst [vmem:[%s457 + $0x24] sm:$0xf] %v3105
        %3138 = vst [vmem:[%s457 + $0x28] sm:$0xf] %v3106
        %3139 = vst [vmem:[%s457 + $0x2c] sm:$0xf] %v3107
        %3140 = vst [vmem:[%s457 + $0x30] sm:$0xf] %v3108
        %3141 = vst [vmem:[%s457 + $0x34] sm:$0xf] %v3109
        %3142 = vst [vmem:[%s457 + $0x38] sm:$0xf] %v3110
        %3143 = vst [vmem:[%s457 + $0x3c] sm:$0xf] %v3111
        %3144 = vst [vmem:[%s457 + $0x40] sm:$0xf] %v3112
        %3145 = vst [vmem:[%s457 + $0x44] sm:$0xf] %v3113
        %3146 = vst [vmem:[%s457 + $0x48] sm:$0xf] %v3114
        %3147 = vst [vmem:[%s457 + $0x4c] sm:$0xf] %v3115
        %3148 = vst [vmem:[%s457 + $0x50] sm:$0xf] %v3116
        %3149 = vst [vmem:[%s457 + $0x54] sm:$0xf] %v3117
        %3150 = vst [vmem:[%s457 + $0x58] sm:$0xf] %v3118
        %3151 = vst [vmem:[%s457 + $0x5c] sm:$0xf] %v3119
        %3152 = vst [vmem:[%s457 + $0x60] sm:$0xf] %v3120
        %3153 = vst [vmem:[%s457 + $0x64] sm:$0xf] %v3121
        %3154 = vst [vmem:[%s457 + $0x68] sm:$0xf] %v3122
        %3155 = vst [vmem:[%s457 + $0x6c] sm:$0xf] %v3123
        %3156 = vst [vmem:[%s457 + $0x70] sm:$0xf] %v3124
        %3157 = vst [vmem:[%s457 + $0x74] sm:$0xf] %v3125
        %3158 = vst [vmem:[%s457 + $0x78] sm:$0xf] %v3126
        %3159 = vst [vmem:[%s457 + $0x7c] sm:$0xf] %v3127
        %v3160 = vpack.c.bf16 %v1043, %v1043
        %v3161 = vpack.c.bf16 %v1045, %v1045
        %v3162 = vpack.c.bf16 %v1048, %v1048
        %v3163 = vpack.c.bf16 %v1050, %v1050
        %v3164 = vpack.c.bf16 %v1053, %v1053
        %v3165 = vpack.c.bf16 %v1055, %v1055
        %v3166 = vpack.c.bf16 %v1058, %v1058
        %v3167 = vpack.c.bf16 %v1060, %v1060
        %v3168 = vpack.c.bf16 %v1063, %v1063
        %v3169 = vpack.c.bf16 %v1065, %v1065
        %v3170 = vpack.c.bf16 %v1068, %v1068
        %v3171 = vpack.c.bf16 %v1070, %v1070
        %v3172 = vpack.c.bf16 %v1073, %v1073
        %v3173 = vpack.c.bf16 %v1075, %v1075
        %v3174 = vpack.c.bf16 %v1078, %v1078
        %v3175 = vpack.c.bf16 %v1080, %v1080
        %v3176 = vpack.c.bf16 %v1083, %v1083
        %v3177 = vpack.c.bf16 %v1085, %v1085
        %v3178 = vpack.c.bf16 %v1088, %v1088
        %v3179 = vpack.c.bf16 %v1090, %v1090
        %v3180 = vpack.c.bf16 %v1093, %v1093
        %v3181 = vpack.c.bf16 %v1095, %v1095
        %v3182 = vpack.c.bf16 %v1098, %v1098
        %v3183 = vpack.c.bf16 %v1100, %v1100
        %v3184 = vpack.c.bf16 %v1103, %v1103
        %v3185 = vpack.c.bf16 %v1105, %v1105
        %v3186 = vpack.c.bf16 %v1108, %v1108
        %v3187 = vpack.c.bf16 %v1110, %v1110
        %v3188 = vpack.c.bf16 %v1113, %v1113
        %v3189 = vpack.c.bf16 %v1115, %v1115
        %v3190 = vpack.c.bf16 %v1118, %v1118
        %v3191 = vpack.c.bf16 %v1120, %v1120
        %3192 = vst [vmem:[%s464] sm:$0xf] %v3160
        %3193 = vst [vmem:[%s464 + $0x4] sm:$0xf] %v3161
        %3194 = vst [vmem:[%s464 + $0x8] sm:$0xf] %v3162
        %3195 = vst [vmem:[%s464 + $0xc] sm:$0xf] %v3163
        %3196 = vst [vmem:[%s464 + $0x10] sm:$0xf] %v3164
        %3197 = vst [vmem:[%s464 + $0x14] sm:$0xf] %v3165
        %3198 = vst [vmem:[%s464 + $0x18] sm:$0xf] %v3166
        %3199 = vst [vmem:[%s464 + $0x1c] sm:$0xf] %v3167
        %3200 = vst [vmem:[%s464 + $0x20] sm:$0xf] %v3168
        %3201 = vst [vmem:[%s464 + $0x24] sm:$0xf] %v3169
        %3202 = vst [vmem:[%s464 + $0x28] sm:$0xf] %v3170
        %3203 = vst [vmem:[%s464 + $0x2c] sm:$0xf] %v3171
        %3204 = vst [vmem:[%s464 + $0x30] sm:$0xf] %v3172
        %3205 = vst [vmem:[%s464 + $0x34] sm:$0xf] %v3173
        %3206 = vst [vmem:[%s464 + $0x38] sm:$0xf] %v3174
        %3207 = vst [vmem:[%s464 + $0x3c] sm:$0xf] %v3175
        %3208 = vst [vmem:[%s464 + $0x40] sm:$0xf] %v3176
        %3209 = vst [vmem:[%s464 + $0x44] sm:$0xf] %v3177
        %3210 = vst [vmem:[%s464 + $0x48] sm:$0xf] %v3178
        %3211 = vst [vmem:[%s464 + $0x4c] sm:$0xf] %v3179
        %3212 = vst [vmem:[%s464 + $0x50] sm:$0xf] %v3180
        %3213 = vst [vmem:[%s464 + $0x54] sm:$0xf] %v3181
        %3214 = vst [vmem:[%s464 + $0x58] sm:$0xf] %v3182
        %3215 = vst [vmem:[%s464 + $0x5c] sm:$0xf] %v3183
        %3216 = vst [vmem:[%s464 + $0x60] sm:$0xf] %v3184
        %3217 = vst [vmem:[%s464 + $0x64] sm:$0xf] %v3185
        %3218 = vst [vmem:[%s464 + $0x68] sm:$0xf] %v3186
        %3219 = vst [vmem:[%s464 + $0x6c] sm:$0xf] %v3187
        %3220 = vst [vmem:[%s464 + $0x70] sm:$0xf] %v3188
        %3221 = vst [vmem:[%s464 + $0x74] sm:$0xf] %v3189
        %3222 = vst [vmem:[%s464 + $0x78] sm:$0xf] %v3190
        %3223 = vst [vmem:[%s464 + $0x7c] sm:$0xf] %v3191
        %s3224 = sand.u32 %s197, 1
        %s3225 = scalar_lea.sflag [#allocation4], %s3224
        %s3226 = sand.u32 %s197, 1
        %s3227 = smul.addr %s3226, 128
        %s3228 = scalar_lea.vmem [#allocation13], %s3227
        %s3229 = sand.u32 %s32, 1
        %s3230 = scalar_lea.sflag [#allocation15], %s3229
        %s3231 = sand.u32 %s225, 1
        %s3232 = smul.addr %s3231, 128
        %s3233 = scalar_lea.vmem [#allocation14], %s3232
        %s3234 = sand.u32 %s32, 1
        %s3235 = scalar_lea.sflag [#allocation15], %s3234
        %s3236 = sand.u32 %s253, 1
        %s3237 = smul.addr %s3236, 128
        %s3238 = scalar_lea.vmem [#allocation16], %s3237
        // Predicated region
        $region69: #{tpu_custom_call.1} parent=43 // pred_check
          %p3239 = pneg %p207
        $region70: #{tpu_custom_call.1} parent=43 // pred_check_branch
          %3241 = sbr.rel (%p3239) target = $region72
        $region71: #{tpu_custom_call.1} parent=43 // pred_region
          %s3242 = smul.u32 32, %s37
          %3244 = vsyncadd %s3225, 0
          %s3245 = smul.addr %s36, 32
          %s3246 = sadd.s32 %s3242, %s3245
          %s3247 = smul.addr %s3246, 4
          %s3248 = scalar_lea.hbm %s6, %s3247
          %s3249 = sshll.u32 %s3228, 4
          %s3250 = int_to_ptr.vmem [resolvable:$true] %s3249
          %s3251 = sshll.u32 %s3248, 4
          %s3252 = int_to_ptr.hbm [resolvable:$true] %s3251
          %3257 = dma.vmem_to_hbm [thread:$0]  %s3250, 2048, %s3252, %s3225, 64, 64, 4
        $region72: #{tpu_custom_call.1} parent=43 // pred_fallthru
          _
        // Predicated region
        $region73: #{tpu_custom_call.1} parent=43 // pred_check
          %p3258 = pneg %p235
        $region74: #{tpu_custom_call.1} parent=43 // pred_check_branch
          %3260 = sbr.rel (%p3258) target = $region76
        $region75: #{tpu_custom_call.1} parent=43 // pred_region
          %s3261 = smul.u32 32, %s37
          %3263 = vsyncadd %s3230, 0
          %s3264 = smul.addr %s36, 32
          %s3265 = sadd.s32 %s3261, %s3264
          %s3266 = smul.addr %s3265, 4
          %s3267 = scalar_lea.hbm %s7, %s3266
          %s3268 = sshll.u32 %s3233, 4
          %s3269 = int_to_ptr.vmem [resolvable:$true] %s3268
          %s3270 = sshll.u32 %s3267, 4
          %s3271 = int_to_ptr.hbm [resolvable:$true] %s3270
          %3276 = dma.vmem_to_hbm [thread:$0]  %s3269, 2048, %s3271, %s3230, 64, 64, 4
        $region76: #{tpu_custom_call.1} parent=43 // pred_fallthru
          _
        // Predicated region
        $region77: #{tpu_custom_call.1} parent=43 // pred_check
          %p3277 = pneg %p263
        $region78: #{tpu_custom_call.1} parent=43 // pred_check_branch
          %3279 = sbr.rel (%p3277) target = $region80
        $region79: #{tpu_custom_call.1} parent=43 // pred_region
          %s3280 = smul.u32 32, %s37
          %3282 = vsyncadd %s3235, 0
          %s3283 = smul.addr %s36, 32
          %s3284 = sadd.s32 %s3280, %s3283
          %s3285 = smul.addr %s3284, 4
          %s3286 = scalar_lea.hbm %s8, %s3285
          %s3287 = sshll.u32 %s3238, 4
          %s3288 = int_to_ptr.vmem [resolvable:$true] %s3287
          %s3289 = sshll.u32 %s3286, 4
          %s3290 = int_to_ptr.hbm [resolvable:$true] %s3289
          %3295 = dma.vmem_to_hbm [thread:$0]  %s3288, 2048, %s3290, %s3235, 64, 64, 4
        $region80: #{tpu_custom_call.1} parent=43 // pred_fallthru
          _
      $region44: #{tpu_custom_call.1} parent=5 // pred_fallthru
        _
      %p3296 = scmp.le.s32.totalorder 2, %s27
      // Predicated region
      $region81: #{tpu_custom_call.1} parent=5 // pred_check
        %p3297 = pneg %p3296
      $region82: #{tpu_custom_call.1} parent=5 // pred_check_branch
        %3299 = sbr.rel (%p3297) target = $region84
      $region83: #{tpu_custom_call.1} parent=5 // pred_region
        %s3300 = ssub.s32 %s27, 2
        // Predicated region
        $region85: #{tpu_custom_call.1} parent=83 // pred_check
          %p3301 = pneg %p213
        $region86: #{tpu_custom_call.1} parent=83 // pred_check_branch
          %3303 = sbr.rel (%p3301) target = $region88
        $region87: #{tpu_custom_call.1} parent=83 // pred_region
          %s3304 = sand.u32 %s198, 1
          %s3305 = scalar_lea.sflag [#allocation4], %s3304
          %s3306 = sand.u32 %s198, 1
          %s3307 = smul.addr %s3306, 128
          %s3308 = scalar_lea.vmem [#allocation13], %s3307
          %3310 = dma.done %s3305, 2048
        $region88: #{tpu_custom_call.1} parent=83 // pred_fallthru
          _
        // Predicated region
        $region89: #{tpu_custom_call.1} parent=83 // pred_check
          %p3311 = pneg %p241
        $region90: #{tpu_custom_call.1} parent=83 // pred_check_branch
          %3313 = sbr.rel (%p3311) target = $region92
        $region91: #{tpu_custom_call.1} parent=83 // pred_region
          %s3314 = sand.u32 %s33, 1
          %s3315 = scalar_lea.sflag [#allocation15], %s3314
          %s3316 = sand.u32 %s226, 1
          %s3317 = smul.addr %s3316, 128
          %s3318 = scalar_lea.vmem [#allocation14], %s3317
          %3320 = dma.done %s3315, 2048
        $region92: #{tpu_custom_call.1} parent=83 // pred_fallthru
          _
        // Predicated region
        $region93: #{tpu_custom_call.1} parent=83 // pred_check
          %p3321 = pneg %p269
        $region94: #{tpu_custom_call.1} parent=83 // pred_check_branch
          %3323 = sbr.rel (%p3321) target = $region96
        $region95: #{tpu_custom_call.1} parent=83 // pred_region
          %s3324 = sand.u32 %s33, 1
          %s3325 = scalar_lea.sflag [#allocation15], %s3324
          %s3326 = sand.u32 %s254, 1
          %s3327 = smul.addr %s3326, 128
          %s3328 = scalar_lea.vmem [#allocation16], %s3327
          %3330 = dma.done %s3325, 2048
        $region96: #{tpu_custom_call.1} parent=83 // pred_fallthru
          _
      $region84: #{tpu_custom_call.1} parent=5 // pred_fallthru
        _
    $region6: #{tpu_custom_call.1} parent=1 // loop_footer
      %s31 = sadd.s32 1, %s27
    $region7: #{tpu_custom_call.1} parent=1 // loop_footer_branch
      %26 = sbr.rel target = $region3
    $region8: #{tpu_custom_call.1} parent=1 // loop_exit
      _
    %3331 = vsyncpa [#allocation3], 1
    %s3332 = scalar_lea.sflag [#allocation3], 1
    %3333 = vsyncpa %s3332, 1
    %3334 = vsyncpa [#allocation6], 1
    %3335 = vsyncpa [#allocation9], 1
    %3336 = vsyncpa [#allocation12], 1
    %3337 = vsyncpa [#allocation4], 1
    %s3338 = scalar_lea.sflag [#allocation4], 1
    %3339 = vsyncpa %s3338, 1
    %3340 = vsyncpa [#allocation15], 1
    %s3341 = scalar_lea.sflag [#allocation15], 1
    %3342 = vsyncpa %s3341, 1

</llo_original>
